<compile_context>
chip_gen: v6e
topology: v6e:2x2x1
jax: 0.10.0
libtpu: 0.0.40
codegen_flags: <defaults>
</compile_context>

<pallas_src>
import jax
import jax.numpy as jnp
from jax.experimental import pallas as pl
from jax.experimental.pallas import tpu as pltpu

EPS = 1e-5
LANE = 128                      # channel padding target (lane width)
ROW_BLOCK = 8                   # H-rows per in-kernel chunk (bounds live ranges)
MXU_DTYPE = jnp.bfloat16        # MXU input dtype (f32 accumulation always)


# --------------------------------------------------------------------------
# Shared helper: 3x3 same-conv via 9 tap-accumulated MXU matmuls + BN partial
# statistics, chunked over row blocks.
# --------------------------------------------------------------------------
def _conv3x3_with_stats(pad_ref, w_ref, y_ref, st_ref, *, row_block):
    """pad_ref: (H+2, W+2, CP) bf16, zero halo.  w_ref: (9, CP, CP) bf16.
    y_ref: (H, W, CP) f32 conv output.  st_ref: (2, CP) f32 [sum; sum_sq]."""
    Hp, Wp, CP = pad_ref.shape
    H, W = Hp - 2, Wp - 2
    HB = row_block
    assert H % HB == 0
    M = HB * W

    def chunk(c, carry):
        s, ss = carry
        h0 = pl.multiple_of(c * HB, HB)
        acc = jnp.zeros((M, CP), jnp.float32)
        for dh in range(3):
            for dw in range(3):
                win = pad_ref[pl.ds(h0 + dh, HB), dw:dw + W, :].reshape(M, CP)
                acc = acc + jnp.dot(win, w_ref[dh * 3 + dw],
                                    preferred_element_type=jnp.float32)
        y_ref[pl.ds(h0, HB), :, :] = acc.reshape(HB, W, CP)
        s = s + jnp.sum(acc, axis=0, keepdims=True)
        ss = ss + jnp.sum(acc * acc, axis=0, keepdims=True)
        return s, ss

    zero = jnp.zeros((1, CP), jnp.float32)
    s, ss = jax.lax.fori_loop(0, H // HB, chunk, (zero, zero), unroll=True)
    st_ref[0:1, :] = s
    st_ref[1:2, :] = ss


# --------------------------------------------------------------------------
# Phase 1 kernel: conv1 + BN1 partial statistics (one batch element per step).
# --------------------------------------------------------------------------
def conv_bn_stats_kernel(xp_ref, w_ref, y_ref, st_ref):
    _conv3x3_with_stats(xp_ref, w_ref, y_ref, st_ref, row_block=ROW_BLOCK)


# --------------------------------------------------------------------------
# Phase 2 kernel: apply BN1 + ReLU (chunked, stored straight into the padded
# scratch interior as bf16), then conv2 + BN2 partial statistics.
# --------------------------------------------------------------------------
def bn_relu_conv_stats_kernel(y1_ref, p_ref, w_ref, y2_ref, st_ref, pad_ref):
    H, W, CP = y1_ref.shape
    Hp, Wp = H + 2, W + 2

    # Zero only the four 1-px halo strips; the interior is written below.
    pad_ref[0:1, :, :] = jnp.zeros((1, Wp, CP), pad_ref.dtype)
    pad_ref[Hp - 1:Hp, :, :] = jnp.zeros((1, Wp, CP), pad_ref.dtype)
    pad_ref[1:Hp - 1, 0:1, :] = jnp.zeros((H, 1, CP), pad_ref.dtype)
    pad_ref[1:Hp - 1, Wp - 1:Wp, :] = jnp.zeros((H, 1, CP), pad_ref.dtype)

    scale = p_ref[0:1, :].reshape(1, 1, CP)
    shift = p_ref[1:2, :].reshape(1, 1, CP)

    HB = ROW_BLOCK

    def bn_chunk(c, carry):
        h0 = pl.multiple_of(c * HB, HB)
        a = y1_ref[pl.ds(h0, HB), :, :]                       # (HB, W, CP) f32
        a = jnp.maximum(a * scale + shift, 0.0)               # bn1 + relu
        pad_ref[pl.ds(h0 + 1, HB), 1:W + 1, :] = a.astype(pad_ref.dtype)
        return carry

    jax.lax.fori_loop(0, H // HB, bn_chunk, 0, unroll=True)

    _conv3x3_with_stats(pad_ref, w_ref, y2_ref, st_ref, row_block=HB)


# --------------------------------------------------------------------------
# Phase 3 kernel: apply BN2, add identity residual, final ReLU.
# --------------------------------------------------------------------------
def bn_add_relu_kernel(y2_ref, x_ref, p_ref, o_ref):
    H, W, CP = y2_ref.shape
    scale = p_ref[0:1, :].reshape(1, 1, CP)
    shift = p_ref[1:2, :].reshape(1, 1, CP)
    o_ref[...] = jnp.maximum(y2_ref[...] * scale + shift + x_ref[...], 0.0)


# --------------------------------------------------------------------------
# Wrapper
# --------------------------------------------------------------------------
def basic_block_pallas(x_nchw, w1, g1, b1, w2, g2, b2):
    """x_nchw: (N, C, H, W) f32; w*: (3,3,C,C) HWIO; g*/b*: (C,). -> (N,C,H,W)."""
    N, C, H, W = x_nchw.shape
    Cout = w1.shape[-1]
    assert C == Cout, "identity residual requires in_channels == out_channels"
    assert H % ROW_BLOCK == 0
    CP = ((max(C, 1) + LANE - 1) // LANE) * LANE
    Hp, Wp = H + 2, W + 2
    NHW = N * H * W

    # NHWC, lane-dense channel padding; spatial halo padded once here so the
    # input DMA lands directly in the padded layout (no in-kernel copy).
    x_nhwc = jnp.transpose(x_nchw, (0, 2, 3, 1))
    x_cp = jnp.pad(x_nhwc, ((0, 0), (0, 0), (0, 0), (0, CP - C)))      # f32
    xp = jnp.pad(x_cp, ((0, 0), (1, 1), (1, 1), (0, 0))).astype(MXU_DTYPE)

    def prep_w(w):
        w = jnp.pad(w, ((0, 0), (0, 0), (0, CP - C), (0, CP - Cout)))
        return w.reshape(9, CP, CP).astype(MXU_DTYPE)                  # per-tap

    w1t, w2t = prep_w(w1), prep_w(w2)

    def pad_vec(v):
        return jnp.pad(v, (0, CP - Cout))

    def scale_shift(st, g, b):
        # Reduce per-tile partials -> global batch stats -> fused scale/shift.
        s = jnp.sum(st[:, 0, :], axis=0)
        ss = jnp.sum(st[:, 1, :], axis=0)
        mean = s / NHW
        var = jnp.maximum(ss / NHW - mean * mean, 0.0)
        sc = pad_vec(g) * jax.lax.rsqrt(var + EPS)
        sh = pad_vec(b) - mean * sc
        return jnp.stack([sc, sh], axis=0)                             # (2, CP)

    cparams = pltpu.CompilerParams(
        dimension_semantics=("parallel",),        # batch tiles -> 2 TCs on v7x
        vmem_limit_bytes=32 * 1024 * 1024)        # re-derive per generation

    def per_batch(shape):
        return pl.BlockSpec((None,) + shape, lambda b: (b,) + (0,) * len(shape))

    def resident(shape):
        return pl.BlockSpec(shape, lambda b: (0,) * len(shape))

    # ---- Phase 1: conv1 + BN1 partial stats -------------------------------
    y1, st1 = pl.pallas_call(
        conv_bn_stats_kernel,
        grid=(N,),
        in_specs=[per_batch((Hp, Wp, CP)), resident((9, CP, CP))],
        out_specs=[per_batch((H, W, CP)), per_batch((2, CP))],
        out_shape=(jax.ShapeDtypeStruct((N, H, W, CP), jnp.float32),
                   jax.ShapeDtypeStruct((N, 2, CP), jnp.float32)),
        compiler_params=cparams,
    )(xp, w1t)

    p1 = scale_shift(st1, g1, b1)

    # ---- Phase 2: BN1 + ReLU + conv2 + BN2 partial stats -------------------
    y2, st2 = pl.pallas_call(
        bn_relu_conv_stats_kernel,
        grid=(N,),
        in_specs=[per_batch((H, W, CP)), resident((2, CP)), resident((9, CP, CP))],
        out_specs=[per_batch((H, W, CP)), per_batch((2, CP))],
        out_shape=(jax.ShapeDtypeStruct((N, H, W, CP), jnp.float32),
                   jax.ShapeDtypeStruct((N, 2, CP), jnp.float32)),
        scratch_shapes=[pltpu.VMEM((Hp, Wp, CP), MXU_DTYPE)],
        compiler_params=cparams,
    )(y1, p1, w2t)

    p2 = scale_shift(st2, g2, b2)

    # ---- Phase 3: BN2 + identity residual + ReLU ---------------------------
    out = pl.pallas_call(
        bn_add_relu_kernel,
        grid=(N,),
        in_specs=[per_batch((H, W, CP)), per_batch((H, W, CP)), resident((2, CP))],
        out_specs=per_batch((H, W, CP)),
        out_shape=jax.ShapeDtypeStruct((N, H, W, CP), jnp.float32),
        compiler_params=cparams,
    )(y2, x_cp, p2)

    return jnp.transpose(out[..., :Cout], (0, 3, 1, 2))


# --------------------------------------------------------------------------
# Pure-JAX reference (same semantics as the PyTorch module in train mode).
# --------------------------------------------------------------------------
def basic_block_reference(x_nchw, w1, g1, b1, w2, g2, b2):
    x = jnp.transpose(x_nchw, (0, 2, 3, 1))

    def conv(a, w):
        return jax.lax.conv_general_dilated(
            a, w, window_strides=(1, 1), padding="SAME",
            dimension_numbers=("NHWC", "HWIO", "NHWC"))

    def bn(a, g, b):
        m = a.mean(axis=(0, 1, 2), keepdims=True)
        v = ((a - m) ** 2).mean(axis=(0, 1, 2), keepdims=True)
        return (a - m) * jax.lax.rsqrt(v + EPS) * g.reshape(1, 1, 1, -1) \
            + b.reshape(1, 1, 1, -1)

    out = jax.nn.relu(bn(conv(x, w1), g1, b1))
    out = bn(conv(out, w2), g2, b2)
    out = jax.nn.relu(out + x)
    return jnp.transpose(out, (0, 3, 1, 2))


if __name__ == "__main__":
    # Small shapes consistent with the module: N=2, C_in=C_out=4, H=W=16.
    N, C, H, W = 2, 4, 16, 16
    key = jax.random.PRNGKey(0)
    k_x, k_w1, k_w2, k_g1, k_b1, k_g2, k_b2 = jax.random.split(key, 7)

    x = jax.random.normal(k_x, (N, C, H, W), dtype=jnp.float32)

    # Deterministic parameter init (shapes per nn.Conv2d / nn.BatchNorm2d).
    w1 = jax.random.normal(k_w1, (3, 3, C, C), dtype=jnp.float32) * 0.1   # HWIO
    w2 = jax.random.normal(k_w2, (3, 3, C, C), dtype=jnp.float32) * 0.1   # HWIO
    g1 = 1.0 + 0.1 * jax.random.normal(k_g1, (C,), dtype=jnp.float32)
    b1 = 0.1 * jax.random.normal(k_b1, (C,), dtype=jnp.float32)
    g2 = 1.0 + 0.1 * jax.random.normal(k_g2, (C,), dtype=jnp.float32)
    b2 = 0.1 * jax.random.normal(k_b2, (C,), dtype=jnp.float32)

    out = basic_block_pallas(x, w1, g1, b1, w2, g2, b2)
    out = jax.block_until_ready(out)

    ref = basic_block_reference(x, w1, g1, b1, w2, g2, b2)
    ref = jax.block_until_ready(ref)

    assert out.shape == (N, C, H, W)
    err = float(jnp.max(jnp.abs(out - ref)))
    # bf16 MXU inputs (f32 accumulation) introduce ~1e-2 max-abs deviation
    # through two conv+BN layers; f32 MXU inputs match the module to <5e-4.
    tol = 5e-4 if MXU_DTYPE == jnp.float32 else 5e-2
    assert err < tol, f"max abs err {err} (tol {tol})"

    print("KERNEL_OK")
</pallas_src>

<mosaic_0001>
module attributes {stable_mosaic.version = 11 : i64} {
  func.func @conv_bn_stats_kernel(%arg0: i32, %arg1: memref<1x18x18x128xbf16, #tpu.memory_space<vmem>>, %arg2: memref<9x128x128xbf16, #tpu.memory_space<vmem>>, %arg3: memref<1x16x16x128xf32, #tpu.memory_space<vmem>>, %arg4: memref<1x2x128xf32, #tpu.memory_space<vmem>>) attributes {dimension_semantics = [#tpu.dimension_semantics<parallel>], iteration_bounds = array<i64: 2>, scalar_prefetch = 0 : i64, scratch_operands = 0 : i64, tpu.core_type = #tpu.core_type<tc>, window_params = [{transform_indices = @transform_0, window_bounds = array<i64: 1, 18, 18, 128>}, {pipeline_mode = #tpu.pipeline_mode<synchronous>, transform_indices = @transform_1, window_bounds = array<i64: 9, 128, 128>}, {transform_indices = @transform_2, window_bounds = array<i64: 1, 16, 16, 128>}, {transform_indices = @transform_3, window_bounds = array<i64: 1, 2, 128>}]} {
    %cst = arith.constant 0.000000e+00 : f32
    %0 = vector.broadcast %cst : f32 to vector<1x128xf32>
    %c0_i32 = arith.constant 0 : i32
    %c8_i32 = arith.constant 8 : i32
    %1 = arith.muli %c0_i32, %c8_i32 : i32
    %2 = tpu.assume_multiple %1, 8 : i32
    %cst_0 = arith.constant 0.000000e+00 : f32
    %3 = vector.broadcast %cst_0 : f32 to vector<128x128xf32>
    %c0_i32_1 = arith.constant 0 : i32
    %4 = arith.addi %2, %c0_i32_1 : i32
    %c0 = arith.constant 0 : index
    %5 = arith.index_cast %4 : i32 to index
    %c0_2 = arith.constant 0 : index
    %c0_3 = arith.constant 0 : index
    %6 = vector.load %arg1[%c0, %5, %c0_2, %c0_3] : memref<1x18x18x128xbf16, #tpu.memory_space<vmem>>, vector<1x8x16x128xbf16>
    %7 = vector.shape_cast %6 : vector<1x8x16x128xbf16> to vector<8x16x128xbf16>
    %8 = vector.shape_cast %7 : vector<8x16x128xbf16> to vector<128x128xbf16>
    %c0_4 = arith.constant 0 : index
    %c0_5 = arith.constant 0 : index
    %c0_6 = arith.constant 0 : index
    %9 = vector.load %arg2[%c0_4, %c0_5, %c0_6] : memref<9x128x128xbf16, #tpu.memory_space<vmem>>, vector<1x128x128xbf16>
    %10 = vector.shape_cast %9 : vector<1x128x128xbf16> to vector<128x128xbf16>
    %cst_7 = arith.constant dense<0.000000e+00> : vector<128x128xf32>
    %11 = tpu.matmul %8, %10, %cst_7 {dimension_numbers = #tpu.dot_dimension_numbers<[1], [0], [0], [1], [0, 0, 1, 1], [], []>} : vector<128x128xbf16>, vector<128x128xbf16>, vector<128x128xf32> -> vector<128x128xf32>
    %12 = arith.addf %3, %11 : vector<128x128xf32>
    %c0_i32_8 = arith.constant 0 : i32
    %13 = arith.addi %2, %c0_i32_8 : i32
    %c0_9 = arith.constant 0 : index
    %14 = arith.index_cast %13 : i32 to index
    %c1 = arith.constant 1 : index
    %c0_10 = arith.constant 0 : index
    %15 = vector.load %arg1[%c0_9, %14, %c1, %c0_10] : memref<1x18x18x128xbf16, #tpu.memory_space<vmem>>, vector<1x8x16x128xbf16>
    %16 = vector.shape_cast %15 : vector<1x8x16x128xbf16> to vector<8x16x128xbf16>
    %17 = vector.shape_cast %16 : vector<8x16x128xbf16> to vector<128x128xbf16>
    %c1_11 = arith.constant 1 : index
    %c0_12 = arith.constant 0 : index
    %c0_13 = arith.constant 0 : index
    %18 = vector.load %arg2[%c1_11, %c0_12, %c0_13] : memref<9x128x128xbf16, #tpu.memory_space<vmem>>, vector<1x128x128xbf16>
    %19 = vector.shape_cast %18 : vector<1x128x128xbf16> to vector<128x128xbf16>
    %cst_14 = arith.constant dense<0.000000e+00> : vector<128x128xf32>
    %20 = tpu.matmul %17, %19, %cst_14 {dimension_numbers = #tpu.dot_dimension_numbers<[1], [0], [0], [1], [0, 0, 1, 1], [], []>} : vector<128x128xbf16>, vector<128x128xbf16>, vector<128x128xf32> -> vector<128x128xf32>
    %21 = arith.addf %12, %20 : vector<128x128xf32>
    %c0_i32_15 = arith.constant 0 : i32
    %22 = arith.addi %2, %c0_i32_15 : i32
    %c0_16 = arith.constant 0 : index
    %23 = arith.index_cast %22 : i32 to index
    %c2 = arith.constant 2 : index
    %c0_17 = arith.constant 0 : index
    %24 = vector.load %arg1[%c0_16, %23, %c2, %c0_17] : memref<1x18x18x128xbf16, #tpu.memory_space<vmem>>, vector<1x8x16x128xbf16>
    %25 = vector.shape_cast %24 : vector<1x8x16x128xbf16> to vector<8x16x128xbf16>
    %26 = vector.shape_cast %25 : vector<8x16x128xbf16> to vector<128x128xbf16>
    %c2_18 = arith.constant 2 : index
    %c0_19 = arith.constant 0 : index
    %c0_20 = arith.constant 0 : index
    %27 = vector.load %arg2[%c2_18, %c0_19, %c0_20] : memref<9x128x128xbf16, #tpu.memory_space<vmem>>, vector<1x128x128xbf16>
    %28 = vector.shape_cast %27 : vector<1x128x128xbf16> to vector<128x128xbf16>
    %cst_21 = arith.constant dense<0.000000e+00> : vector<128x128xf32>
    %29 = tpu.matmul %26, %28, %cst_21 {dimension_numbers = #tpu.dot_dimension_numbers<[1], [0], [0], [1], [0, 0, 1, 1], [], []>} : vector<128x128xbf16>, vector<128x128xbf16>, vector<128x128xf32> -> vector<128x128xf32>
    %30 = arith.addf %21, %29 : vector<128x128xf32>
    %c1_i32 = arith.constant 1 : i32
    %31 = arith.addi %2, %c1_i32 : i32
    %c0_22 = arith.constant 0 : index
    %32 = arith.index_cast %31 : i32 to index
    %c0_23 = arith.constant 0 : index
    %c0_24 = arith.constant 0 : index
    %33 = vector.load %arg1[%c0_22, %32, %c0_23, %c0_24] : memref<1x18x18x128xbf16, #tpu.memory_space<vmem>>, vector<1x8x16x128xbf16>
    %34 = vector.shape_cast %33 : vector<1x8x16x128xbf16> to vector<8x16x128xbf16>
    %35 = vector.shape_cast %34 : vector<8x16x128xbf16> to vector<128x128xbf16>
    %c3 = arith.constant 3 : index
    %c0_25 = arith.constant 0 : index
    %c0_26 = arith.constant 0 : index
    %36 = vector.load %arg2[%c3, %c0_25, %c0_26] : memref<9x128x128xbf16, #tpu.memory_space<vmem>>, vector<1x128x128xbf16>
    %37 = vector.shape_cast %36 : vector<1x128x128xbf16> to vector<128x128xbf16>
    %cst_27 = arith.constant dense<0.000000e+00> : vector<128x128xf32>
    %38 = tpu.matmul %35, %37, %cst_27 {dimension_numbers = #tpu.dot_dimension_numbers<[1], [0], [0], [1], [0, 0, 1, 1], [], []>} : vector<128x128xbf16>, vector<128x128xbf16>, vector<128x128xf32> -> vector<128x128xf32>
    %39 = arith.addf %30, %38 : vector<128x128xf32>
    %c1_i32_28 = arith.constant 1 : i32
    %40 = arith.addi %2, %c1_i32_28 : i32
    %c0_29 = arith.constant 0 : index
    %41 = arith.index_cast %40 : i32 to index
    %c1_30 = arith.constant 1 : index
    %c0_31 = arith.constant 0 : index
    %42 = vector.load %arg1[%c0_29, %41, %c1_30, %c0_31] : memref<1x18x18x128xbf16, #tpu.memory_space<vmem>>, vector<1x8x16x128xbf16>
    %43 = vector.shape_cast %42 : vector<1x8x16x128xbf16> to vector<8x16x128xbf16>
    %44 = vector.shape_cast %43 : vector<8x16x128xbf16> to vector<128x128xbf16>
    %c4 = arith.constant 4 : index
    %c0_32 = arith.constant 0 : index
    %c0_33 = arith.constant 0 : index
    %45 = vector.load %arg2[%c4, %c0_32, %c0_33] : memref<9x128x128xbf16, #tpu.memory_space<vmem>>, vector<1x128x128xbf16>
    %46 = vector.shape_cast %45 : vector<1x128x128xbf16> to vector<128x128xbf16>
    %cst_34 = arith.constant dense<0.000000e+00> : vector<128x128xf32>
    %47 = tpu.matmul %44, %46, %cst_34 {dimension_numbers = #tpu.dot_dimension_numbers<[1], [0], [0], [1], [0, 0, 1, 1], [], []>} : vector<128x128xbf16>, vector<128x128xbf16>, vector<128x128xf32> -> vector<128x128xf32>
    %48 = arith.addf %39, %47 : vector<128x128xf32>
    %c1_i32_35 = arith.constant 1 : i32
    %49 = arith.addi %2, %c1_i32_35 : i32
    %c0_36 = arith.constant 0 : index
    %50 = arith.index_cast %49 : i32 to index
    %c2_37 = arith.constant 2 : index
    %c0_38 = arith.constant 0 : index
    %51 = vector.load %arg1[%c0_36, %50, %c2_37, %c0_38] : memref<1x18x18x128xbf16, #tpu.memory_space<vmem>>, vector<1x8x16x128xbf16>
    %52 = vector.shape_cast %51 : vector<1x8x16x128xbf16> to vector<8x16x128xbf16>
    %53 = vector.shape_cast %52 : vector<8x16x128xbf16> to vector<128x128xbf16>
    %c5 = arith.constant 5 : index
    %c0_39 = arith.constant 0 : index
    %c0_40 = arith.constant 0 : index
    %54 = vector.load %arg2[%c5, %c0_39, %c0_40] : memref<9x128x128xbf16, #tpu.memory_space<vmem>>, vector<1x128x128xbf16>
    %55 = vector.shape_cast %54 : vector<1x128x128xbf16> to vector<128x128xbf16>
    %cst_41 = arith.constant dense<0.000000e+00> : vector<128x128xf32>
    %56 = tpu.matmul %53, %55, %cst_41 {dimension_numbers = #tpu.dot_dimension_numbers<[1], [0], [0], [1], [0, 0, 1, 1], [], []>} : vector<128x128xbf16>, vector<128x128xbf16>, vector<128x128xf32> -> vector<128x128xf32>
    %57 = arith.addf %48, %56 : vector<128x128xf32>
    %c2_i32 = arith.constant 2 : i32
    %58 = arith.addi %2, %c2_i32 : i32
    %c0_42 = arith.constant 0 : index
    %59 = arith.index_cast %58 : i32 to index
    %c0_43 = arith.constant 0 : index
    %c0_44 = arith.constant 0 : index
    %60 = vector.load %arg1[%c0_42, %59, %c0_43, %c0_44] : memref<1x18x18x128xbf16, #tpu.memory_space<vmem>>, vector<1x8x16x128xbf16>
    %61 = vector.shape_cast %60 : vector<1x8x16x128xbf16> to vector<8x16x128xbf16>
    %62 = vector.shape_cast %61 : vector<8x16x128xbf16> to vector<128x128xbf16>
    %c6 = arith.constant 6 : index
    %c0_45 = arith.constant 0 : index
    %c0_46 = arith.constant 0 : index
    %63 = vector.load %arg2[%c6, %c0_45, %c0_46] : memref<9x128x128xbf16, #tpu.memory_space<vmem>>, vector<1x128x128xbf16>
    %64 = vector.shape_cast %63 : vector<1x128x128xbf16> to vector<128x128xbf16>
    %cst_47 = arith.constant dense<0.000000e+00> : vector<128x128xf32>
    %65 = tpu.matmul %62, %64, %cst_47 {dimension_numbers = #tpu.dot_dimension_numbers<[1], [0], [0], [1], [0, 0, 1, 1], [], []>} : vector<128x128xbf16>, vector<128x128xbf16>, vector<128x128xf32> -> vector<128x128xf32>
    %66 = arith.addf %57, %65 : vector<128x128xf32>
    %c2_i32_48 = arith.constant 2 : i32
    %67 = arith.addi %2, %c2_i32_48 : i32
    %c0_49 = arith.constant 0 : index
    %68 = arith.index_cast %67 : i32 to index
    %c1_50 = arith.constant 1 : index
    %c0_51 = arith.constant 0 : index
    %69 = vector.load %arg1[%c0_49, %68, %c1_50, %c0_51] : memref<1x18x18x128xbf16, #tpu.memory_space<vmem>>, vector<1x8x16x128xbf16>
    %70 = vector.shape_cast %69 : vector<1x8x16x128xbf16> to vector<8x16x128xbf16>
    %71 = vector.shape_cast %70 : vector<8x16x128xbf16> to vector<128x128xbf16>
    %c7 = arith.constant 7 : index
    %c0_52 = arith.constant 0 : index
    %c0_53 = arith.constant 0 : index
    %72 = vector.load %arg2[%c7, %c0_52, %c0_53] : memref<9x128x128xbf16, #tpu.memory_space<vmem>>, vector<1x128x128xbf16>
    %73 = vector.shape_cast %72 : vector<1x128x128xbf16> to vector<128x128xbf16>
    %cst_54 = arith.constant dense<0.000000e+00> : vector<128x128xf32>
    %74 = tpu.matmul %71, %73, %cst_54 {dimension_numbers = #tpu.dot_dimension_numbers<[1], [0], [0], [1], [0, 0, 1, 1], [], []>} : vector<128x128xbf16>, vector<128x128xbf16>, vector<128x128xf32> -> vector<128x128xf32>
    %75 = arith.addf %66, %74 : vector<128x128xf32>
    %c2_i32_55 = arith.constant 2 : i32
    %76 = arith.addi %2, %c2_i32_55 : i32
    %c0_56 = arith.constant 0 : index
    %77 = arith.index_cast %76 : i32 to index
    %c2_57 = arith.constant 2 : index
    %c0_58 = arith.constant 0 : index
    %78 = vector.load %arg1[%c0_56, %77, %c2_57, %c0_58] : memref<1x18x18x128xbf16, #tpu.memory_space<vmem>>, vector<1x8x16x128xbf16>
    %79 = vector.shape_cast %78 : vector<1x8x16x128xbf16> to vector<8x16x128xbf16>
    %80 = vector.shape_cast %79 : vector<8x16x128xbf16> to vector<128x128xbf16>
    %c8 = arith.constant 8 : index
    %c0_59 = arith.constant 0 : index
    %c0_60 = arith.constant 0 : index
    %81 = vector.load %arg2[%c8, %c0_59, %c0_60] : memref<9x128x128xbf16, #tpu.memory_space<vmem>>, vector<1x128x128xbf16>
    %82 = vector.shape_cast %81 : vector<1x128x128xbf16> to vector<128x128xbf16>
    %cst_61 = arith.constant dense<0.000000e+00> : vector<128x128xf32>
    %83 = tpu.matmul %80, %82, %cst_61 {dimension_numbers = #tpu.dot_dimension_numbers<[1], [0], [0], [1], [0, 0, 1, 1], [], []>} : vector<128x128xbf16>, vector<128x128xbf16>, vector<128x128xf32> -> vector<128x128xf32>
    %84 = arith.addf %75, %83 : vector<128x128xf32>
    %85 = vector.shape_cast %84 : vector<128x128xf32> to vector<8x16x128xf32>
    %c0_62 = arith.constant 0 : index
    %86 = arith.index_cast %2 : i32 to index
    %c0_63 = arith.constant 0 : index
    %c0_64 = arith.constant 0 : index
    %87 = vector.load %arg3[%c0_62, %86, %c0_63, %c0_64] : memref<1x16x16x128xf32, #tpu.memory_space<vmem>>, vector<1x8x16x128xf32>
    %88 = vector.shape_cast %87 : vector<1x8x16x128xf32> to vector<8x16x128xf32>
    %89 = vector.shape_cast %85 : vector<8x16x128xf32> to vector<1x8x16x128xf32>
    tpu.vector_store %arg3[%c0_62, %86, %c0_63, %c0_64], %89 {strides = array<i32>} : memref<1x16x16x128xf32, #tpu.memory_space<vmem>>, vector<1x8x16x128xf32>,
    %cst_65 = arith.constant dense<0.000000e+00> : vector<128xf32>
    %90 = vector.multi_reduction <add>, %84, %cst_65 [0] : vector<128x128xf32> to vector<128xf32>
    %91 = vector.shape_cast %90 : vector<128xf32> to vector<1x128xf32>
    %92 = arith.addf %0, %91 : vector<1x128xf32>
    %93 = arith.mulf %84, %84 : vector<128x128xf32>
    %cst_66 = arith.constant dense<0.000000e+00> : vector<128xf32>
    %94 = vector.multi_reduction <add>, %93, %cst_66 [0] : vector<128x128xf32> to vector<128xf32>
    %95 = vector.shape_cast %94 : vector<128xf32> to vector<1x128xf32>
    %96 = arith.addf %0, %95 : vector<1x128xf32>
    %c1_i32_67 = arith.constant 1 : i32
    %c8_i32_68 = arith.constant 8 : i32
    %97 = arith.muli %c1_i32_67, %c8_i32_68 : i32
    %98 = tpu.assume_multiple %97, 8 : i32
    %cst_69 = arith.constant 0.000000e+00 : f32
    %99 = vector.broadcast %cst_69 : f32 to vector<128x128xf32>
    %c0_i32_70 = arith.constant 0 : i32
    %100 = arith.addi %98, %c0_i32_70 : i32
    %c0_71 = arith.constant 0 : index
    %101 = arith.index_cast %100 : i32 to index
    %c0_72 = arith.constant 0 : index
    %c0_73 = arith.constant 0 : index
    %102 = vector.load %arg1[%c0_71, %101, %c0_72, %c0_73] : memref<1x18x18x128xbf16, #tpu.memory_space<vmem>>, vector<1x8x16x128xbf16>
    %103 = vector.shape_cast %102 : vector<1x8x16x128xbf16> to vector<8x16x128xbf16>
    %104 = vector.shape_cast %103 : vector<8x16x128xbf16> to vector<128x128xbf16>
    %c0_74 = arith.constant 0 : index
    %c0_75 = arith.constant 0 : index
    %c0_76 = arith.constant 0 : index
    %105 = vector.load %arg2[%c0_74, %c0_75, %c0_76] : memref<9x128x128xbf16, #tpu.memory_space<vmem>>, vector<1x128x128xbf16>
    %106 = vector.shape_cast %105 : vector<1x128x128xbf16> to vector<128x128xbf16>
    %cst_77 = arith.constant dense<0.000000e+00> : vector<128x128xf32>
    %107 = tpu.matmul %104, %106, %cst_77 {dimension_numbers = #tpu.dot_dimension_numbers<[1], [0], [0], [1], [0, 0, 1, 1], [], []>} : vector<128x128xbf16>, vector<128x128xbf16>, vector<128x128xf32> -> vector<128x128xf32>
    %108 = arith.addf %99, %107 : vector<128x128xf32>
    %c0_i32_78 = arith.constant 0 : i32
    %109 = arith.addi %98, %c0_i32_78 : i32
    %c0_79 = arith.constant 0 : index
    %110 = arith.index_cast %109 : i32 to index
    %c1_80 = arith.constant 1 : index
    %c0_81 = arith.constant 0 : index
    %111 = vector.load %arg1[%c0_79, %110, %c1_80, %c0_81] : memref<1x18x18x128xbf16, #tpu.memory_space<vmem>>, vector<1x8x16x128xbf16>
    %112 = vector.shape_cast %111 : vector<1x8x16x128xbf16> to vector<8x16x128xbf16>
    %113 = vector.shape_cast %112 : vector<8x16x128xbf16> to vector<128x128xbf16>
    %c1_82 = arith.constant 1 : index
    %c0_83 = arith.constant 0 : index
    %c0_84 = arith.constant 0 : index
    %114 = vector.load %arg2[%c1_82, %c0_83, %c0_84] : memref<9x128x128xbf16, #tpu.memory_space<vmem>>, vector<1x128x128xbf16>
    %115 = vector.shape_cast %114 : vector<1x128x128xbf16> to vector<128x128xbf16>
    %cst_85 = arith.constant dense<0.000000e+00> : vector<128x128xf32>
    %116 = tpu.matmul %113, %115, %cst_85 {dimension_numbers = #tpu.dot_dimension_numbers<[1], [0], [0], [1], [0, 0, 1, 1], [], []>} : vector<128x128xbf16>, vector<128x128xbf16>, vector<128x128xf32> -> vector<128x128xf32>
    %117 = arith.addf %108, %116 : vector<128x128xf32>
    %c0_i32_86 = arith.constant 0 : i32
    %118 = arith.addi %98, %c0_i32_86 : i32
    %c0_87 = arith.constant 0 : index
    %119 = arith.index_cast %118 : i32 to index
    %c2_88 = arith.constant 2 : index
    %c0_89 = arith.constant 0 : index
    %120 = vector.load %arg1[%c0_87, %119, %c2_88, %c0_89] : memref<1x18x18x128xbf16, #tpu.memory_space<vmem>>, vector<1x8x16x128xbf16>
    %121 = vector.shape_cast %120 : vector<1x8x16x128xbf16> to vector<8x16x128xbf16>
    %122 = vector.shape_cast %121 : vector<8x16x128xbf16> to vector<128x128xbf16>
    %c2_90 = arith.constant 2 : index
    %c0_91 = arith.constant 0 : index
    %c0_92 = arith.constant 0 : index
    %123 = vector.load %arg2[%c2_90, %c0_91, %c0_92] : memref<9x128x128xbf16, #tpu.memory_space<vmem>>, vector<1x128x128xbf16>
    %124 = vector.shape_cast %123 : vector<1x128x128xbf16> to vector<128x128xbf16>
    %cst_93 = arith.constant dense<0.000000e+00> : vector<128x128xf32>
    %125 = tpu.matmul %122, %124, %cst_93 {dimension_numbers = #tpu.dot_dimension_numbers<[1], [0], [0], [1], [0, 0, 1, 1], [], []>} : vector<128x128xbf16>, vector<128x128xbf16>, vector<128x128xf32> -> vector<128x128xf32>
    %126 = arith.addf %117, %125 : vector<128x128xf32>
    %c1_i32_94 = arith.constant 1 : i32
    %127 = arith.addi %98, %c1_i32_94 : i32
    %c0_95 = arith.constant 0 : index
    %128 = arith.index_cast %127 : i32 to index
    %c0_96 = arith.constant 0 : index
    %c0_97 = arith.constant 0 : index
    %129 = vector.load %arg1[%c0_95, %128, %c0_96, %c0_97] : memref<1x18x18x128xbf16, #tpu.memory_space<vmem>>, vector<1x8x16x128xbf16>
    %130 = vector.shape_cast %129 : vector<1x8x16x128xbf16> to vector<8x16x128xbf16>
    %131 = vector.shape_cast %130 : vector<8x16x128xbf16> to vector<128x128xbf16>
    %c3_98 = arith.constant 3 : index
    %c0_99 = arith.constant 0 : index
    %c0_100 = arith.constant 0 : index
    %132 = vector.load %arg2[%c3_98, %c0_99, %c0_100] : memref<9x128x128xbf16, #tpu.memory_space<vmem>>, vector<1x128x128xbf16>
    %133 = vector.shape_cast %132 : vector<1x128x128xbf16> to vector<128x128xbf16>
    %cst_101 = arith.constant dense<0.000000e+00> : vector<128x128xf32>
    %134 = tpu.matmul %131, %133, %cst_101 {dimension_numbers = #tpu.dot_dimension_numbers<[1], [0], [0], [1], [0, 0, 1, 1], [], []>} : vector<128x128xbf16>, vector<128x128xbf16>, vector<128x128xf32> -> vector<128x128xf32>
    %135 = arith.addf %126, %134 : vector<128x128xf32>
    %c1_i32_102 = arith.constant 1 : i32
    %136 = arith.addi %98, %c1_i32_102 : i32
    %c0_103 = arith.constant 0 : index
    %137 = arith.index_cast %136 : i32 to index
    %c1_104 = arith.constant 1 : index
    %c0_105 = arith.constant 0 : index
    %138 = vector.load %arg1[%c0_103, %137, %c1_104, %c0_105] : memref<1x18x18x128xbf16, #tpu.memory_space<vmem>>, vector<1x8x16x128xbf16>
    %139 = vector.shape_cast %138 : vector<1x8x16x128xbf16> to vector<8x16x128xbf16>
    %140 = vector.shape_cast %139 : vector<8x16x128xbf16> to vector<128x128xbf16>
    %c4_106 = arith.constant 4 : index
    %c0_107 = arith.constant 0 : index
    %c0_108 = arith.constant 0 : index
    %141 = vector.load %arg2[%c4_106, %c0_107, %c0_108] : memref<9x128x128xbf16, #tpu.memory_space<vmem>>, vector<1x128x128xbf16>
    %142 = vector.shape_cast %141 : vector<1x128x128xbf16> to vector<128x128xbf16>
    %cst_109 = arith.constant dense<0.000000e+00> : vector<128x128xf32>
    %143 = tpu.matmul %140, %142, %cst_109 {dimension_numbers = #tpu.dot_dimension_numbers<[1], [0], [0], [1], [0, 0, 1, 1], [], []>} : vector<128x128xbf16>, vector<128x128xbf16>, vector<128x128xf32> -> vector<128x128xf32>
    %144 = arith.addf %135, %143 : vector<128x128xf32>
    %c1_i32_110 = arith.constant 1 : i32
    %145 = arith.addi %98, %c1_i32_110 : i32
    %c0_111 = arith.constant 0 : index
    %146 = arith.index_cast %145 : i32 to index
    %c2_112 = arith.constant 2 : index
    %c0_113 = arith.constant 0 : index
    %147 = vector.load %arg1[%c0_111, %146, %c2_112, %c0_113] : memref<1x18x18x128xbf16, #tpu.memory_space<vmem>>, vector<1x8x16x128xbf16>
    %148 = vector.shape_cast %147 : vector<1x8x16x128xbf16> to vector<8x16x128xbf16>
    %149 = vector.shape_cast %148 : vector<8x16x128xbf16> to vector<128x128xbf16>
    %c5_114 = arith.constant 5 : index
    %c0_115 = arith.constant 0 : index
    %c0_116 = arith.constant 0 : index
    %150 = vector.load %arg2[%c5_114, %c0_115, %c0_116] : memref<9x128x128xbf16, #tpu.memory_space<vmem>>, vector<1x128x128xbf16>
    %151 = vector.shape_cast %150 : vector<1x128x128xbf16> to vector<128x128xbf16>
    %cst_117 = arith.constant dense<0.000000e+00> : vector<128x128xf32>
    %152 = tpu.matmul %149, %151, %cst_117 {dimension_numbers = #tpu.dot_dimension_numbers<[1], [0], [0], [1], [0, 0, 1, 1], [], []>} : vector<128x128xbf16>, vector<128x128xbf16>, vector<128x128xf32> -> vector<128x128xf32>
    %153 = arith.addf %144, %152 : vector<128x128xf32>
    %c2_i32_118 = arith.constant 2 : i32
    %154 = arith.addi %98, %c2_i32_118 : i32
    %c0_119 = arith.constant 0 : index
    %155 = arith.index_cast %154 : i32 to index
    %c0_120 = arith.constant 0 : index
    %c0_121 = arith.constant 0 : index
    %156 = vector.load %arg1[%c0_119, %155, %c0_120, %c0_121] : memref<1x18x18x128xbf16, #tpu.memory_space<vmem>>, vector<1x8x16x128xbf16>
    %157 = vector.shape_cast %156 : vector<1x8x16x128xbf16> to vector<8x16x128xbf16>
    %158 = vector.shape_cast %157 : vector<8x16x128xbf16> to vector<128x128xbf16>
    %c6_122 = arith.constant 6 : index
    %c0_123 = arith.constant 0 : index
    %c0_124 = arith.constant 0 : index
    %159 = vector.load %arg2[%c6_122, %c0_123, %c0_124] : memref<9x128x128xbf16, #tpu.memory_space<vmem>>, vector<1x128x128xbf16>
    %160 = vector.shape_cast %159 : vector<1x128x128xbf16> to vector<128x128xbf16>
    %cst_125 = arith.constant dense<0.000000e+00> : vector<128x128xf32>
    %161 = tpu.matmul %158, %160, %cst_125 {dimension_numbers = #tpu.dot_dimension_numbers<[1], [0], [0], [1], [0, 0, 1, 1], [], []>} : vector<128x128xbf16>, vector<128x128xbf16>, vector<128x128xf32> -> vector<128x128xf32>
    %162 = arith.addf %153, %161 : vector<128x128xf32>
    %c2_i32_126 = arith.constant 2 : i32
    %163 = arith.addi %98, %c2_i32_126 : i32
    %c0_127 = arith.constant 0 : index
    %164 = arith.index_cast %163 : i32 to index
    %c1_128 = arith.constant 1 : index
    %c0_129 = arith.constant 0 : index
    %165 = vector.load %arg1[%c0_127, %164, %c1_128, %c0_129] : memref<1x18x18x128xbf16, #tpu.memory_space<vmem>>, vector<1x8x16x128xbf16>
    %166 = vector.shape_cast %165 : vector<1x8x16x128xbf16> to vector<8x16x128xbf16>
    %167 = vector.shape_cast %166 : vector<8x16x128xbf16> to vector<128x128xbf16>
    %c7_130 = arith.constant 7 : index
    %c0_131 = arith.constant 0 : index
    %c0_132 = arith.constant 0 : index
    %168 = vector.load %arg2[%c7_130, %c0_131, %c0_132] : memref<9x128x128xbf16, #tpu.memory_space<vmem>>, vector<1x128x128xbf16>
    %169 = vector.shape_cast %168 : vector<1x128x128xbf16> to vector<128x128xbf16>
    %cst_133 = arith.constant dense<0.000000e+00> : vector<128x128xf32>
    %170 = tpu.matmul %167, %169, %cst_133 {dimension_numbers = #tpu.dot_dimension_numbers<[1], [0], [0], [1], [0, 0, 1, 1], [], []>} : vector<128x128xbf16>, vector<128x128xbf16>, vector<128x128xf32> -> vector<128x128xf32>
    %171 = arith.addf %162, %170 : vector<128x128xf32>
    %c2_i32_134 = arith.constant 2 : i32
    %172 = arith.addi %98, %c2_i32_134 : i32
    %c0_135 = arith.constant 0 : index
    %173 = arith.index_cast %172 : i32 to index
    %c2_136 = arith.constant 2 : index
    %c0_137 = arith.constant 0 : index
    %174 = vector.load %arg1[%c0_135, %173, %c2_136, %c0_137] : memref<1x18x18x128xbf16, #tpu.memory_space<vmem>>, vector<1x8x16x128xbf16>
    %175 = vector.shape_cast %174 : vector<1x8x16x128xbf16> to vector<8x16x128xbf16>
    %176 = vector.shape_cast %175 : vector<8x16x128xbf16> to vector<128x128xbf16>
    %c8_138 = arith.constant 8 : index
    %c0_139 = arith.constant 0 : index
    %c0_140 = arith.constant 0 : index
    %177 = vector.load %arg2[%c8_138, %c0_139, %c0_140] : memref<9x128x128xbf16, #tpu.memory_space<vmem>>, vector<1x128x128xbf16>
    %178 = vector.shape_cast %177 : vector<1x128x128xbf16> to vector<128x128xbf16>
    %cst_141 = arith.constant dense<0.000000e+00> : vector<128x128xf32>
    %179 = tpu.matmul %176, %178, %cst_141 {dimension_numbers = #tpu.dot_dimension_numbers<[1], [0], [0], [1], [0, 0, 1, 1], [], []>} : vector<128x128xbf16>, vector<128x128xbf16>, vector<128x128xf32> -> vector<128x128xf32>
    %180 = arith.addf %171, %179 : vector<128x128xf32>
    %181 = vector.shape_cast %180 : vector<128x128xf32> to vector<8x16x128xf32>
    %c0_142 = arith.constant 0 : index
    %182 = arith.index_cast %98 : i32 to index
    %c0_143 = arith.constant 0 : index
    %c0_144 = arith.constant 0 : index
    %183 = vector.load %arg3[%c0_142, %182, %c0_143, %c0_144] : memref<1x16x16x128xf32, #tpu.memory_space<vmem>>, vector<1x8x16x128xf32>
    %184 = vector.shape_cast %183 : vector<1x8x16x128xf32> to vector<8x16x128xf32>
    %185 = vector.shape_cast %181 : vector<8x16x128xf32> to vector<1x8x16x128xf32>
    tpu.vector_store %arg3[%c0_142, %182, %c0_143, %c0_144], %185 {strides = array<i32>} : memref<1x16x16x128xf32, #tpu.memory_space<vmem>>, vector<1x8x16x128xf32>,
    %cst_145 = arith.constant dense<0.000000e+00> : vector<128xf32>
    %186 = vector.multi_reduction <add>, %180, %cst_145 [0] : vector<128x128xf32> to vector<128xf32>
    %187 = vector.shape_cast %186 : vector<128xf32> to vector<1x128xf32>
    %188 = arith.addf %92, %187 : vector<1x128xf32>
    %189 = arith.mulf %180, %180 : vector<128x128xf32>
    %cst_146 = arith.constant dense<0.000000e+00> : vector<128xf32>
    %190 = vector.multi_reduction <add>, %189, %cst_146 [0] : vector<128x128xf32> to vector<128xf32>
    %191 = vector.shape_cast %190 : vector<128xf32> to vector<1x128xf32>
    %192 = arith.addf %96, %191 : vector<1x128xf32>
    %c2_i32_147 = arith.constant 2 : i32
    %c0_148 = arith.constant 0 : index
    %c0_149 = arith.constant 0 : index
    %c0_150 = arith.constant 0 : index
    %193 = vector.load %arg4[%c0_148, %c0_149, %c0_150] : memref<1x2x128xf32, #tpu.memory_space<vmem>>, vector<1x1x128xf32>
    %194 = vector.shape_cast %193 : vector<1x1x128xf32> to vector<1x128xf32>
    %195 = vector.shape_cast %188 : vector<1x128xf32> to vector<1x1x128xf32>
    tpu.vector_store %arg4[%c0_148, %c0_149, %c0_150], %195 {strides = array<i32>} : memref<1x2x128xf32, #tpu.memory_space<vmem>>, vector<1x1x128xf32>,
    %c0_151 = arith.constant 0 : index
    %c1_152 = arith.constant 1 : index
    %c0_153 = arith.constant 0 : index
    %196 = vector.load %arg4[%c0_151, %c1_152, %c0_153] : memref<1x2x128xf32, #tpu.memory_space<vmem>>, vector<1x1x128xf32>
    %197 = vector.shape_cast %196 : vector<1x1x128xf32> to vector<1x128xf32>
    %198 = vector.shape_cast %192 : vector<1x128xf32> to vector<1x1x128xf32>
    tpu.vector_store %arg4[%c0_151, %c1_152, %c0_153], %198 {strides = array<i32>} : memref<1x2x128xf32, #tpu.memory_space<vmem>>, vector<1x1x128xf32>,
    return
  }
  func.func @transform_0(%arg0: i32) -> (i32, i32, i32, i32) {
    %c0_i32 = arith.constant 0 : i32
    %c0_i32_0 = arith.constant 0 : i32
    %c0_i32_1 = arith.constant 0 : i32
    %c0_i32_2 = arith.constant 0 : i32
    return %arg0, %c0_i32, %c0_i32_0, %c0_i32_1 : i32, i32, i32, i32
  }
  func.func @transform_1(%arg0: i32) -> (i32, i32, i32) {
    %c0_i32 = arith.constant 0 : i32
    %c0_i32_0 = arith.constant 0 : i32
    %c0_i32_1 = arith.constant 0 : i32
    %c0_i32_2 = arith.constant 0 : i32
    return %c0_i32, %c0_i32_0, %c0_i32_1 : i32, i32, i32
  }
  func.func @transform_2(%arg0: i32) -> (i32, i32, i32, i32) {
    %c0_i32 = arith.constant 0 : i32
    %c0_i32_0 = arith.constant 0 : i32
    %c0_i32_1 = arith.constant 0 : i32
    %c0_i32_2 = arith.constant 0 : i32
    return %arg0, %c0_i32, %c0_i32_0, %c0_i32_1 : i32, i32, i32, i32
  }
  func.func @transform_3(%arg0: i32) -> (i32, i32, i32) {
    %c0_i32 = arith.constant 0 : i32
    %c0_i32_0 = arith.constant 0 : i32
    %c0_i32_1 = arith.constant 0 : i32
    return %arg0, %c0_i32, %c0_i32_0 : i32, i32, i32
  }
}

</mosaic_0001>

<llo_original>
// kernel: tpu_custom_call.1
$region0: #{tpu_custom_call.1}
  #allocation0 [shape = 'u32[]', space=smem, size = 0x4, offset = 0x4, fixed_abs, tag = 'smem constant byte address 0x4 - core index']
  #allocation1 [shape = 'u32[144,128]{1,0:T(1,128)}', space=vmem, size = 0x12000, scoped, tag = 'internal scratch']
  %s0 = inlined_call_operand.vmem [shape: bf16[2,18,18,128], index: 0, kind: input, shape index: {}]
  %s1 = inlined_call_operand.vmem [shape: bf16[9,128,128], index: 1, kind: input, shape index: {}]
  %s2 = inlined_call_operand.hbm [shape: f32[2,16,16,128], index: 2, kind: output, shape index: {0}]
  %s3 = inlined_call_operand.hbm [shape: f32[2,2,128], index: 3, kind: output, shape index: {1}]
  %4 = xla_tuple %s2, %s3
  %s5 = sld [smem:[#allocation0]]
  $region49: #{tpu_custom_call.1} parent=0
    _
  %s7 = ssub.s32 1, %s5
  %s8 = scalar_select 0, %s7, %s5
  $region1: #{tpu_custom_call.1} parent=0
    #allocation2 [shape = 'u8[262144]{0}', space=vmem, size = 0x40000, scoped, tag = 'output window, operand 0']
    #allocation3 [shape = 's32[2]{0}', space=sflag, size = 0x8, scoped, tag = 'scoped memory for tpu_custom_call.1']
    #allocation4 [shape = 'u8[2048]{0}', space=vmem, size = 0x800, scoped, tag = 'output window, operand 1']
    #allocation5 [shape = 's32[2]{0}', space=sflag, size = 0x8, scoped, tag = 'scoped memory for tpu_custom_call.1']
    %9 = vsyncpa [#allocation3], 0
    %s10 = scalar_lea.sflag [#allocation3], 1
    %11 = vsyncpa %s10, 0
    %12 = vsyncpa [#allocation5], 0
    %s13 = scalar_lea.sflag [#allocation5], 1
    %14 = vsyncpa %s13, 0
    loop: start=0, step=1, limit=4
    $region2: #{tpu_custom_call.1} parent=1 // loop_pre_header
      _
    $region3: #{tpu_custom_call.1} parent=1 // loop_header
      %s16 = sphi 0, %s20
      %p17 = scmp.ge.s32.totalorder %s16, 4
      %s26 = sphi 0, %s28
      %s29 = sphi 0, %s26
      %s30 = sphi 0, %s29
      %s46 = sphi 0, %s30
      %s50 = sphi 0, %s50
      %s52 = sphi 0, %s50
      %s53 = sphi 0, %s52
      %s67 = sphi 0, %s53
      %s73 = sphi 0, %s75
      %s76 = sphi 0, %s73
      %s77 = sphi 0, %s76
      %s93 = sphi 0, %s77
      %s99 = sphi 0, %s101
      %s102 = sphi 0, %s99
      %s103 = sphi 0, %s102
      %s119 = sphi 0, %s103
    $region4: #{tpu_custom_call.1} parent=1 // loop_header_branch
      %19 = sbr.rel (%p17) target = $region8
    $region5: #{tpu_custom_call.1} parent=1 // loop_body
      %s21 = ssub.s32 %s16, 1
      %s22 = ssub.s32 %s16, 2
      %s23 = sadd.s32 %s16, 1
      %s24 = ssub.s32 %s16, %s23
      %p25 = scmp.eq.s32.totalorder %s24, 0
      %s27 = sadd.s32 %s26, 1
      %s28 = scalar_select %p25, %s26, %s27
      %p31 = pneg %p25
      %p32 = scmp.eq.s32.totalorder %s16, 1
      %p33 = por %p31, %p32
      %p34 = scmp.ne.s32.totalorder %s26, %s29
      %p35 = scmp.eq.s32.totalorder %s16, 0
      %p36 = por %p34, %p35
      %p37 = scmp.ne.s32.totalorder %s26, %s29
      %p38 = scmp.eq.s32.totalorder %s21, 1
      %p39 = por %p37, %p38
      %p40 = scmp.ne.s32.totalorder %s29, %s30
      %p41 = scmp.eq.s32.totalorder %s21, 0
      %p42 = por %p40, %p41
      %p43 = scmp.ne.s32.totalorder %s29, %s30
      %p44 = scmp.eq.s32.totalorder %s22, 1
      %p45 = por %p43, %p44
      %p47 = scmp.ne.s32.totalorder %s30, %s46
      %p48 = scmp.eq.s32.totalorder %s22, 0
      %p49 = por %p47, %p48
      %s51 = sadd.s32 %s50, 1
      %p54 = scmp.eq.s32.totalorder %s16, 1
      %p55 = scmp.ne.s32.totalorder %s50, %s52
      %p56 = scmp.eq.s32.totalorder %s16, 0
      %p57 = por %p55, %p56
      %p58 = scmp.ne.s32.totalorder %s50, %s52
      %p59 = scmp.eq.s32.totalorder %s21, 1
      %p60 = por %p58, %p59
      %p61 = scmp.ne.s32.totalorder %s52, %s53
      %p62 = scmp.eq.s32.totalorder %s21, 0
      %p63 = por %p61, %p62
      %p64 = scmp.ne.s32.totalorder %s52, %s53
      %p65 = scmp.eq.s32.totalorder %s22, 1
      %p66 = por %p64, %p65
      %p68 = scmp.ne.s32.totalorder %s53, %s67
      %p69 = scmp.eq.s32.totalorder %s22, 0
      %p70 = por %p68, %p69
      %s71 = ssub.s32 %s16, %s23
      %p72 = scmp.eq.s32.totalorder %s71, 0
      %s74 = sadd.s32 %s73, 1
      %s75 = scalar_select %p72, %s73, %s74
      %p78 = pneg %p72
      %p79 = scmp.eq.s32.totalorder %s16, 1
      %p80 = por %p78, %p79
      %p81 = scmp.ne.s32.totalorder %s73, %s76
      %p82 = scmp.eq.s32.totalorder %s16, 0
      %p83 = por %p81, %p82
      %p84 = scmp.ne.s32.totalorder %s73, %s76
      %p85 = scmp.eq.s32.totalorder %s21, 1
      %p86 = por %p84, %p85
      %p87 = scmp.ne.s32.totalorder %s76, %s77
      %p88 = scmp.eq.s32.totalorder %s21, 0
      %p89 = por %p87, %p88
      %p90 = scmp.ne.s32.totalorder %s76, %s77
      %p91 = scmp.eq.s32.totalorder %s22, 1
      %p92 = por %p90, %p91
      %p94 = scmp.ne.s32.totalorder %s77, %s93
      %p95 = scmp.eq.s32.totalorder %s22, 0
      %p96 = por %p94, %p95
      %s97 = ssub.s32 %s16, %s23
      %p98 = scmp.eq.s32.totalorder %s97, 0
      %s100 = sadd.s32 %s99, 1
      %s101 = scalar_select %p98, %s99, %s100
      %p104 = pneg %p98
      %p105 = scmp.eq.s32.totalorder %s16, 1
      %p106 = por %p104, %p105
      %p107 = scmp.ne.s32.totalorder %s99, %s102
      %p108 = scmp.eq.s32.totalorder %s16, 0
      %p109 = por %p107, %p108
      %p110 = scmp.ne.s32.totalorder %s99, %s102
      %p111 = scmp.eq.s32.totalorder %s21, 1
      %p112 = por %p110, %p111
      %p113 = scmp.ne.s32.totalorder %s102, %s103
      %p114 = scmp.eq.s32.totalorder %s21, 0
      %p115 = por %p113, %p114
      %p116 = scmp.ne.s32.totalorder %s102, %s103
      %p117 = scmp.eq.s32.totalorder %s22, 1
      %p118 = por %p116, %p117
      %p120 = scmp.ne.s32.totalorder %s103, %s119
      %p121 = scmp.eq.s32.totalorder %s22, 0
      %p122 = por %p120, %p121
      %p123 = scmp.le.s32.totalorder 1, %s16
      %p124 = scmp.lt.s32.totalorder %s16, 3
      %p125 = pnand %p123, %p124
      %p126 = pneg %p125
      // Predicated region
      $region9: #{tpu_custom_call.1} parent=5 // pred_check
        _
      $region10: #{tpu_custom_call.1} parent=5 // pred_check_branch
        %128 = sbr.rel (%p125) target = $region12
      $region11: #{tpu_custom_call.1} parent=5 // pred_region
        %s129 = ssub.s32 %s16, 1
        // Predicated region
        $region13: #{tpu_custom_call.1} parent=11 // pred_check
          %p130 = pneg %p63
        $region14: #{tpu_custom_call.1} parent=11 // pred_check_branch
          %132 = sbr.rel (%p130) target = $region16
        $region15: #{tpu_custom_call.1} parent=11 // pred_region
          _
        $region16: #{tpu_custom_call.1} parent=11 // pred_fallthru
          _
      $region12: #{tpu_custom_call.1} parent=5 // pred_fallthru
        _
      %p133 = scmp.lt.s32.totalorder %s16, 2
      // Predicated region
      $region17: #{tpu_custom_call.1} parent=5 // pred_check
        %p134 = pneg %p133
      $region18: #{tpu_custom_call.1} parent=5 // pred_check_branch
        %136 = sbr.rel (%p134) target = $region20
      $region19: #{tpu_custom_call.1} parent=5 // pred_region
        // Predicated region
        $region21: #{tpu_custom_call.1} parent=19 // pred_check
          %p137 = pneg %p36
        $region22: #{tpu_custom_call.1} parent=19 // pred_check_branch
          %139 = sbr.rel (%p137) target = $region24
        $region23: #{tpu_custom_call.1} parent=19 // pred_region
          %p140 = scmp.lt.s32.totalorder %s16, 1
          %s141 = scalar_select %p140, %s16, 1
          %s142 = smul.addr %s141, 54
          %s143 = smul.addr %s142, 4
          %s144 = scalar_lea.vmem %s0, %s143
        $region24: #{tpu_custom_call.1} parent=19 // pred_fallthru
          _
      $region20: #{tpu_custom_call.1} parent=5 // pred_fallthru
        _
      %p145 = scmp.le.s32.totalorder 1, %s16
      %p146 = scmp.lt.s32.totalorder %s16, 3
      %p147 = pnand %p145, %p146
      %p148 = pneg %p147
      // Predicated region
      $region25: #{tpu_custom_call.1} parent=5 // pred_check
        _
      $region26: #{tpu_custom_call.1} parent=5 // pred_check_branch
        %150 = sbr.rel (%p147) target = $region28
      $region27: #{tpu_custom_call.1} parent=5 // pred_region
        %s151 = ssub.s32 %s16, 1
        %p152 = scmp.lt.s32.totalorder %s21, 1
        %s153 = scalar_select %p152, %s21, 1
        %s154 = smul.addr %s153, 54
        %s155 = smul.addr %s154, 4
        %s156 = scalar_lea.vmem %s0, %s155
        %p157 = pneg %p42
        %p158 = pneg %p39
        %p159 = pneg %p63
        %p160 = pneg %p60
        %p161 = pneg %p89
        %p162 = pneg %p86
        %s163 = sand.u32 %s76, 1
        %s164 = scalar_lea.sflag [#allocation3], %s163
        %s165 = sand.u32 %s76, 1
        %s166 = smul.addr %s165, 256
        %s167 = scalar_lea.vmem [#allocation2], %s166
        %p168 = pneg %p115
        %p169 = pneg %p112
        %s170 = sand.u32 %s102, 1
        %s171 = scalar_lea.sflag [#allocation5], %s170
        %s172 = sand.u32 %s102, 1
        %s173 = smul.addr %s172, 2
        %s174 = scalar_lea.vmem [#allocation4], %s173
        %p175 = scmp.lt.s32.totalorder %s21, 1
        %s176 = scalar_select %p175, %s21, 1
        %s177 = smul.addr %s176, 54
        %s178 = smul.addr %s177, 4
        %s179 = scalar_lea.vmem %s0, %s178
        %s181 = smul.u32 0, 3
        %s182 = smul.addr %s181, 4
        %s183 = scalar_lea.vmem %s179, %s182
        %v184 = vld [vmem:[%s183] sm:$0xf]
        %v185 = vld [vmem:[%s183 + $0x4] sm:$0xf]
        %v186 = vld [vmem:[%s183 + $0xc] sm:$0xf]
        %v187 = vld [vmem:[%s183 + $0x10] sm:$0xf]
        %v188 = vld [vmem:[%s183 + $0x18] sm:$0xf]
        %v189 = vld [vmem:[%s183 + $0x1c] sm:$0xf]
        %v190 = vld [vmem:[%s183 + $0x24] sm:$0xf]
        %v191 = vld [vmem:[%s183 + $0x28] sm:$0xf]
        %v192 = vld [vmem:[%s183 + $0x30] sm:$0xf]
        %v193 = vld [vmem:[%s183 + $0x34] sm:$0xf]
        %v194 = vld [vmem:[%s183 + $0x3c] sm:$0xf]
        %v195 = vld [vmem:[%s183 + $0x40] sm:$0xf]
        %v196 = vld [vmem:[%s183 + $0x48] sm:$0xf]
        %v197 = vld [vmem:[%s183 + $0x4c] sm:$0xf]
        %v198 = vld [vmem:[%s183 + $0x54] sm:$0xf]
        %v199 = vld [vmem:[%s183 + $0x58] sm:$0xf]
        %v200 = vld [vmem:[%s1] sm:$0xf]
        %v201 = vld [vmem:[%s1 + $0x4] sm:$0xf]
        %v202 = vld [vmem:[%s1 + $0x8] sm:$0xf]
        %v203 = vld [vmem:[%s1 + $0xc] sm:$0xf]
        %v204 = vld [vmem:[%s1 + $0x10] sm:$0xf]
        %v205 = vld [vmem:[%s1 + $0x14] sm:$0xf]
        %v206 = vld [vmem:[%s1 + $0x18] sm:$0xf]
        %v207 = vld [vmem:[%s1 + $0x1c] sm:$0xf]
        %v208 = vld [vmem:[%s1 + $0x20] sm:$0xf]
        %v209 = vld [vmem:[%s1 + $0x24] sm:$0xf]
        %v210 = vld [vmem:[%s1 + $0x28] sm:$0xf]
        %v211 = vld [vmem:[%s1 + $0x2c] sm:$0xf]
        %v212 = vld [vmem:[%s1 + $0x30] sm:$0xf]
        %v213 = vld [vmem:[%s1 + $0x34] sm:$0xf]
        %v214 = vld [vmem:[%s1 + $0x38] sm:$0xf]
        %v215 = vld [vmem:[%s1 + $0x3c] sm:$0xf]
        %v216 = vld [vmem:[%s183 + $0x8] sm:$0x1]
        %v217 = vld [vmem:[%s183 + $0x14] sm:$0x1]
        %v218 = vld [vmem:[%s183 + $0x20] sm:$0x1]
        %v219 = vld [vmem:[%s183 + $0x2c] sm:$0x1]
        %v220 = vld [vmem:[%s183 + $0x38] sm:$0x1]
        %v221 = vld [vmem:[%s183 + $0x44] sm:$0x1]
        %v222 = vld [vmem:[%s183 + $0x50] sm:$0x1]
        %v223 = vld [vmem:[%s183 + $0x5c] sm:$0x1]
        %vm224 = vsmask.f32 3328
        %vm225 = vsmask.f32 7440
        %vm226 = vmor %vm224, %vm225
        %v228 = vshrl.u32 %v184, 16
        %v230 = vrot.slane %v228, 4
        %v231 = vshll.u32 %v184, 16
        %v233 = vrot.slane %v231, 5
        %v234 = vor.u32 %v230, %v233
        %v235 = vrot.slane %v234, 4
        %v237 = vshll.u32 %v185, 16
        %v239 = vrot.slane %v237, 5
        %v240 = vsel %vm226, %v235, %v239
        %v241 = vshrl.u32 %v185, 16
        %v243 = vrot.slane %v241, 4
        %v244 = vor.u32 %v243, %v239
        %v245 = vrot.slane %v244, 4
        %v247 = vshll.u32 %v216, 16
        %v249 = vrot.slane %v247, 5
        %v250 = vsel %vm226, %v245, %v249
        %v252 = vshrl.u32 %v186, 16
        %v254 = vrot.slane %v252, 4
        %v255 = vshll.u32 %v186, 16
        %v257 = vrot.slane %v255, 5
        %v258 = vor.u32 %v254, %v257
        %v259 = vrot.slane %v258, 4
        %v261 = vshll.u32 %v187, 16
        %v263 = vrot.slane %v261, 5
        %v264 = vsel %vm226, %v259, %v263
        %v265 = vshrl.u32 %v187, 16
        %v267 = vrot.slane %v265, 4
        %v268 = vor.u32 %v267, %v263
        %v269 = vrot.slane %v268, 4
        %v271 = vshll.u32 %v217, 16
        %v273 = vrot.slane %v271, 5
        %v274 = vsel %vm226, %v269, %v273
        %v276 = vshrl.u32 %v188, 16
        %v278 = vrot.slane %v276, 4
        %v279 = vshll.u32 %v188, 16
        %v281 = vrot.slane %v279, 5
        %v282 = vor.u32 %v278, %v281
        %v283 = vrot.slane %v282, 4
        %v285 = vshll.u32 %v189, 16
        %v287 = vrot.slane %v285, 5
        %v288 = vsel %vm226, %v283, %v287
        %v289 = vshrl.u32 %v189, 16
        %v291 = vrot.slane %v289, 4
        %v292 = vor.u32 %v291, %v287
        %v293 = vrot.slane %v292, 4
        %v295 = vshll.u32 %v218, 16
        %v297 = vrot.slane %v295, 5
        %v298 = vsel %vm226, %v293, %v297
        %v300 = vshrl.u32 %v190, 16
        %v302 = vrot.slane %v300, 4
        %v303 = vshll.u32 %v190, 16
        %v305 = vrot.slane %v303, 5
        %v306 = vor.u32 %v302, %v305
        %v307 = vrot.slane %v306, 4
        %v309 = vshll.u32 %v191, 16
        %v311 = vrot.slane %v309, 5
        %v312 = vsel %vm226, %v307, %v311
        %v313 = vshrl.u32 %v191, 16
        %v315 = vrot.slane %v313, 4
        %v316 = vor.u32 %v315, %v311
        %v317 = vrot.slane %v316, 4
        %v319 = vshll.u32 %v219, 16
        %v321 = vrot.slane %v319, 5
        %v322 = vsel %vm226, %v317, %v321
        %v324 = vshrl.u32 %v192, 16
        %v326 = vrot.slane %v324, 4
        %v327 = vshll.u32 %v192, 16
        %v329 = vrot.slane %v327, 5
        %v330 = vor.u32 %v326, %v329
        %v331 = vrot.slane %v330, 4
        %v333 = vshll.u32 %v193, 16
        %v335 = vrot.slane %v333, 5
        %v336 = vsel %vm226, %v331, %v335
        %v337 = vshrl.u32 %v193, 16
        %v339 = vrot.slane %v337, 4
        %v340 = vor.u32 %v339, %v335
        %v341 = vrot.slane %v340, 4
        %v343 = vshll.u32 %v220, 16
        %v345 = vrot.slane %v343, 5
        %v346 = vsel %vm226, %v341, %v345
        %v348 = vshrl.u32 %v194, 16
        %v350 = vrot.slane %v348, 4
        %v351 = vshll.u32 %v194, 16
        %v353 = vrot.slane %v351, 5
        %v354 = vor.u32 %v350, %v353
        %v355 = vrot.slane %v354, 4
        %v357 = vshll.u32 %v195, 16
        %v359 = vrot.slane %v357, 5
        %v360 = vsel %vm226, %v355, %v359
        %v361 = vshrl.u32 %v195, 16
        %v363 = vrot.slane %v361, 4
        %v364 = vor.u32 %v363, %v359
        %v365 = vrot.slane %v364, 4
        %v367 = vshll.u32 %v221, 16
        %v369 = vrot.slane %v367, 5
        %v370 = vsel %vm226, %v365, %v369
        %v372 = vshrl.u32 %v196, 16
        %v374 = vrot.slane %v372, 4
        %v375 = vshll.u32 %v196, 16
        %v377 = vrot.slane %v375, 5
        %v378 = vor.u32 %v374, %v377
        %v379 = vrot.slane %v378, 4
        %v381 = vshll.u32 %v197, 16
        %v383 = vrot.slane %v381, 5
        %v384 = vsel %vm226, %v379, %v383
        %v385 = vshrl.u32 %v197, 16
        %v387 = vrot.slane %v385, 4
        %v388 = vor.u32 %v387, %v383
        %v389 = vrot.slane %v388, 4
        %v391 = vshll.u32 %v222, 16
        %v393 = vrot.slane %v391, 5
        %v394 = vsel %vm226, %v389, %v393
        %v396 = vshrl.u32 %v198, 16
        %v398 = vrot.slane %v396, 4
        %v399 = vshll.u32 %v198, 16
        %v401 = vrot.slane %v399, 5
        %v402 = vor.u32 %v398, %v401
        %v403 = vrot.slane %v402, 4
        %v405 = vshll.u32 %v199, 16
        %v407 = vrot.slane %v405, 5
        %v408 = vsel %vm226, %v403, %v407
        %v409 = vshrl.u32 %v199, 16
        %v411 = vrot.slane %v409, 4
        %v412 = vor.u32 %v411, %v407
        %v413 = vrot.slane %v412, 4
        %v415 = vshll.u32 %v223, 16
        %v417 = vrot.slane %v415, 5
        %v418 = vsel %vm226, %v413, %v417
        %s419 = scalar_lea.vmem %s1, 64
        %v420 = vld [vmem:[%s419] sm:$0xf]
        %v421 = vld [vmem:[%s419 + $0x4] sm:$0xf]
        %v422 = vld [vmem:[%s419 + $0x8] sm:$0xf]
        %v423 = vld [vmem:[%s419 + $0xc] sm:$0xf]
        %v424 = vld [vmem:[%s419 + $0x10] sm:$0xf]
        %v425 = vld [vmem:[%s419 + $0x14] sm:$0xf]
        %v426 = vld [vmem:[%s419 + $0x18] sm:$0xf]
        %v427 = vld [vmem:[%s419 + $0x1c] sm:$0xf]
        %v428 = vld [vmem:[%s419 + $0x20] sm:$0xf]
        %v429 = vld [vmem:[%s419 + $0x24] sm:$0xf]
        %v430 = vld [vmem:[%s419 + $0x28] sm:$0xf]
        %v431 = vld [vmem:[%s419 + $0x2c] sm:$0xf]
        %v432 = vld [vmem:[%s419 + $0x30] sm:$0xf]
        %v433 = vld [vmem:[%s419 + $0x34] sm:$0xf]
        %v434 = vld [vmem:[%s419 + $0x38] sm:$0xf]
        %v435 = vld [vmem:[%s419 + $0x3c] sm:$0xf]
        %v436 = vunpack.c.l.b16 %v240
        %v437 = vunpack.c.l.b16 %v250
        %v438 = vunpack.c.l.b16 %v264
        %v439 = vunpack.c.l.b16 %v274
        %v440 = vunpack.c.l.b16 %v288
        %v441 = vunpack.c.l.b16 %v298
        %v442 = vunpack.c.l.b16 %v312
        %v443 = vunpack.c.l.b16 %v322
        %v444 = vunpack.c.l.b16 %v336
        %v445 = vunpack.c.l.b16 %v346
        %v446 = vunpack.c.l.b16 %v360
        %v447 = vunpack.c.l.b16 %v370
        %v448 = vunpack.c.l.b16 %v384
        %v449 = vunpack.c.l.b16 %v394
        %v450 = vunpack.c.l.b16 %v408
        %v451 = vunpack.c.l.b16 %v418
        %v452 = vpack.c.b16 %v437, %v436
        %v453 = vpack.c.b16 %v439, %v438
        %v454 = vpack.c.b16 %v441, %v440
        %v455 = vpack.c.b16 %v443, %v442
        %v456 = vpack.c.b16 %v445, %v444
        %v457 = vpack.c.b16 %v447, %v446
        %v458 = vpack.c.b16 %v449, %v448
        %v459 = vpack.c.b16 %v451, %v450
        %v484 = vunpack.c.l.b16 %v420
        %v485 = vunpack.c.l.b16 %v421
        %v486 = vunpack.c.l.b16 %v422
        %v487 = vunpack.c.l.b16 %v423
        %v488 = vunpack.c.l.b16 %v424
        %v489 = vunpack.c.l.b16 %v425
        %v490 = vunpack.c.l.b16 %v426
        %v491 = vunpack.c.l.b16 %v427
        %v492 = vunpack.c.l.b16 %v428
        %v493 = vunpack.c.l.b16 %v429
        %v494 = vunpack.c.l.b16 %v430
        %v495 = vunpack.c.l.b16 %v431
        %v496 = vunpack.c.l.b16 %v432
        %v497 = vunpack.c.l.b16 %v433
        %v498 = vunpack.c.l.b16 %v434
        %v499 = vunpack.c.l.b16 %v435
        %v500 = vpack.c.b16 %v485, %v484
        %v501 = vpack.c.b16 %v487, %v486
        %v502 = vpack.c.b16 %v489, %v488
        %v503 = vpack.c.b16 %v491, %v490
        %v504 = vpack.c.b16 %v493, %v492
        %v505 = vpack.c.b16 %v495, %v494
        %v506 = vpack.c.b16 %v497, %v496
        %v507 = vpack.c.b16 %v499, %v498
        %516 = vmatprep.subr.bf16.mxu0 0
        %517 = vmatpush1.bf16.msra.mxu0 %v507
        %518 = vmatprep.subr.bf16.mxu0 0
        %519 = vmatpush1.bf16.msra.mxu0 %v506
        %520 = vmatprep.subr.bf16.mxu0 0
        %521 = vmatpush1.bf16.msra.mxu0 %v505
        %522 = vmatprep.subr.bf16.mxu0 0
        %523 = vmatpush1.bf16.msra.mxu0 %v504
        %524 = vmatprep.subr.bf16.mxu0 0
        %525 = vmatpush1.bf16.msra.mxu0 %v503
        %526 = vmatprep.subr.bf16.mxu0 0
        %527 = vmatpush1.bf16.msra.mxu0 %v502
        %528 = vmatprep.subr.bf16.mxu0 0
        %529 = vmatpush1.bf16.msra.mxu0 %v501
        %530 = vmatprep.subr.bf16.mxu0 0
        %531 = vmatpush1.bf16.msra.mxu0 %v500
        %532 = vmatprep.subr.bf16.mxu0 0
        %533 = vmatpush2.bf16.msra.mxu0 0
        %534 = vmatprep.subr.bf16.mxu0 0
        %535 = vmatpush2.bf16.msra.mxu0 0
        %536 = vmatprep.subr.bf16.mxu0 0
        %537 = vmatpush2.bf16.msra.mxu0 0
        %538 = vmatprep.subr.bf16.mxu0 0
        %539 = vmatpush2.bf16.msra.mxu0 0
        %540 = vmatprep.subr.bf16.mxu0 0
        %541 = vmatpush2.bf16.msra.mxu0 0
        %542 = vmatprep.subr.bf16.mxu0 0
        %543 = vmatpush2.bf16.msra.mxu0 0
        %544 = vmatprep.subr.bf16.mxu0 0
        %545 = vmatpush2.bf16.msra.mxu0 0
        %546 = vmatprep.subr.bf16.mxu0 0
        %547 = vmatpush2.bf16.msra.mxu0 0
        %548 = vmatprep.mubr.bf16.mxu0 0
        %549 = vmatmul.mubr.bf16.gmra.mxu0 %v452
        %v550 = vpop.f32.mrf.mxu0
        %v551 = vadd.f32 0.0, %v550
        %v552 = vpop.f32.mrf.mxu0
        %v553 = vpop.f32.mrf.mxu0
        %v554 = vadd.f32 0.0, %v553
        %v555 = vpop.f32.mrf.mxu0
        %556 = vmatprep.mubr.bf16.mxu0 0
        %557 = vmatmul.mubr.bf16.gmra.mxu0 %v453
        %v558 = vpop.f32.mrf.mxu0
        %v559 = vadd.f32 0.0, %v558
        %v560 = vpop.f32.mrf.mxu0
        %v561 = vpop.f32.mrf.mxu0
        %v562 = vadd.f32 0.0, %v561
        %v563 = vpop.f32.mrf.mxu0
        %564 = vmatprep.mubr.bf16.mxu0 0
        %565 = vmatmul.mubr.bf16.gmra.mxu0 %v454
        %v566 = vpop.f32.mrf.mxu0
        %v567 = vadd.f32 0.0, %v566
        %v568 = vpop.f32.mrf.mxu0
        %v569 = vpop.f32.mrf.mxu0
        %v570 = vadd.f32 0.0, %v569
        %v571 = vpop.f32.mrf.mxu0
        %572 = vmatprep.mubr.bf16.mxu0 0
        %573 = vmatmul.mubr.bf16.gmra.mxu0 %v455
        %v574 = vpop.f32.mrf.mxu0
        %v575 = vadd.f32 0.0, %v574
        %v576 = vpop.f32.mrf.mxu0
        %v577 = vpop.f32.mrf.mxu0
        %v578 = vadd.f32 0.0, %v577
        %v579 = vpop.f32.mrf.mxu0
        %580 = vmatprep.mubr.bf16.mxu0 0
        %581 = vmatmul.mubr.bf16.gmra.mxu0 %v456
        %v582 = vpop.f32.mrf.mxu0
        %v583 = vadd.f32 0.0, %v582
        %v584 = vpop.f32.mrf.mxu0
        %v585 = vpop.f32.mrf.mxu0
        %v586 = vadd.f32 0.0, %v585
        %v587 = vpop.f32.mrf.mxu0
        %588 = vmatprep.mubr.bf16.mxu0 0
        %589 = vmatmul.mubr.bf16.gmra.mxu0 %v457
        %v590 = vpop.f32.mrf.mxu0
        %v591 = vadd.f32 0.0, %v590
        %v592 = vpop.f32.mrf.mxu0
        %v593 = vpop.f32.mrf.mxu0
        %v594 = vadd.f32 0.0, %v593
        %v595 = vpop.f32.mrf.mxu0
        %596 = vmatprep.mubr.bf16.mxu0 0
        %597 = vmatmul.mubr.bf16.gmra.mxu0 %v458
        %v598 = vpop.f32.mrf.mxu0
        %v599 = vadd.f32 0.0, %v598
        %v600 = vpop.f32.mrf.mxu0
        %v601 = vpop.f32.mrf.mxu0
        %v602 = vadd.f32 0.0, %v601
        %v603 = vpop.f32.mrf.mxu0
        %604 = vmatprep.mubr.bf16.mxu0 0
        %605 = vmatmul.mubr.bf16.gmra.mxu0 %v459
        %v606 = vpop.f32.mrf.mxu0
        %v607 = vadd.f32 0.0, %v606
        %v608 = vpop.f32.mrf.mxu0
        %v609 = vpop.f32.mrf.mxu0
        %v610 = vadd.f32 0.0, %v609
        %v611 = vpop.f32.mrf.mxu0
        %612 = vdwg.mxu0
        %v629 = vunpack.c.l.b16 %v184
        %v630 = vunpack.c.l.b16 %v185
        %v631 = vunpack.c.l.b16 %v186
        %v632 = vunpack.c.l.b16 %v187
        %v633 = vunpack.c.l.b16 %v188
        %v634 = vunpack.c.l.b16 %v189
        %v635 = vunpack.c.l.b16 %v190
        %v636 = vunpack.c.l.b16 %v191
        %v637 = vunpack.c.l.b16 %v192
        %v638 = vunpack.c.l.b16 %v193
        %v639 = vunpack.c.l.b16 %v194
        %v640 = vunpack.c.l.b16 %v195
        %v641 = vunpack.c.l.b16 %v196
        %v642 = vunpack.c.l.b16 %v197
        %v643 = vunpack.c.l.b16 %v198
        %v644 = vunpack.c.l.b16 %v199
        %v645 = vpack.c.b16 %v630, %v629
        %v646 = vpack.c.b16 %v632, %v631
        %v647 = vpack.c.b16 %v634, %v633
        %v648 = vpack.c.b16 %v636, %v635
        %v649 = vpack.c.b16 %v638, %v637
        %v650 = vpack.c.b16 %v640, %v639
        %v651 = vpack.c.b16 %v642, %v641
        %v652 = vpack.c.b16 %v644, %v643
        %v677 = vunpack.c.l.b16 %v200
        %v678 = vunpack.c.l.b16 %v201
        %v679 = vunpack.c.l.b16 %v202
        %v680 = vunpack.c.l.b16 %v203
        %v681 = vunpack.c.l.b16 %v204
        %v682 = vunpack.c.l.b16 %v205
        %v683 = vunpack.c.l.b16 %v206
        %v684 = vunpack.c.l.b16 %v207
        %v685 = vunpack.c.l.b16 %v208
        %v686 = vunpack.c.l.b16 %v209
        %v687 = vunpack.c.l.b16 %v210
        %v688 = vunpack.c.l.b16 %v211
        %v689 = vunpack.c.l.b16 %v212
        %v690 = vunpack.c.l.b16 %v213
        %v691 = vunpack.c.l.b16 %v214
        %v692 = vunpack.c.l.b16 %v215
        %v693 = vpack.c.b16 %v678, %v677
        %v694 = vpack.c.b16 %v680, %v679
        %v695 = vpack.c.b16 %v682, %v681
        %v696 = vpack.c.b16 %v684, %v683
        %v697 = vpack.c.b16 %v686, %v685
        %v698 = vpack.c.b16 %v688, %v687
        %v699 = vpack.c.b16 %v690, %v689
        %v700 = vpack.c.b16 %v692, %v691
        %709 = vmatprep.subr.bf16.mxu0 0
        %710 = vmatpush1.bf16.msra.mxu0 %v700
        %711 = vmatprep.subr.bf16.mxu0 0
        %712 = vmatpush1.bf16.msra.mxu0 %v699
        %713 = vmatprep.subr.bf16.mxu0 0
        %714 = vmatpush1.bf16.msra.mxu0 %v698
        %715 = vmatprep.subr.bf16.mxu0 0
        %716 = vmatpush1.bf16.msra.mxu0 %v697
        %717 = vmatprep.subr.bf16.mxu0 0
        %718 = vmatpush1.bf16.msra.mxu0 %v696
        %719 = vmatprep.subr.bf16.mxu0 0
        %720 = vmatpush1.bf16.msra.mxu0 %v695
        %721 = vmatprep.subr.bf16.mxu0 0
        %722 = vmatpush1.bf16.msra.mxu0 %v694
        %723 = vmatprep.subr.bf16.mxu0 0
        %724 = vmatpush1.bf16.msra.mxu0 %v693
        %725 = vmatprep.subr.bf16.mxu0 0
        %726 = vmatpush2.bf16.msra.mxu0 0
        %727 = vmatprep.subr.bf16.mxu0 0
        %728 = vmatpush2.bf16.msra.mxu0 0
        %729 = vmatprep.subr.bf16.mxu0 0
        %730 = vmatpush2.bf16.msra.mxu0 0
        %731 = vmatprep.subr.bf16.mxu0 0
        %732 = vmatpush2.bf16.msra.mxu0 0
        %733 = vmatprep.subr.bf16.mxu0 0
        %734 = vmatpush2.bf16.msra.mxu0 0
        %735 = vmatprep.subr.bf16.mxu0 0
        %736 = vmatpush2.bf16.msra.mxu0 0
        %737 = vmatprep.subr.bf16.mxu0 0
        %738 = vmatpush2.bf16.msra.mxu0 0
        %739 = vmatprep.subr.bf16.mxu0 0
        %740 = vmatpush2.bf16.msra.mxu0 0
        %741 = vmatprep.mubr.bf16.mxu0 0
        %742 = vmatmul.mubr.bf16.gmra.mxu0 %v645
        %v743 = vpop.f32.mrf.mxu0
        %v744 = vadd.f32 %v551, %v743
        %v745 = vpop.f32.mrf.mxu0
        %v746 = vpop.f32.mrf.mxu0
        %v747 = vadd.f32 %v554, %v746
        %v748 = vpop.f32.mrf.mxu0
        %749 = vmatprep.mubr.bf16.mxu0 0
        %750 = vmatmul.mubr.bf16.gmra.mxu0 %v646
        %v751 = vpop.f32.mrf.mxu0
        %v752 = vadd.f32 %v559, %v751
        %v753 = vpop.f32.mrf.mxu0
        %v754 = vpop.f32.mrf.mxu0
        %v755 = vadd.f32 %v562, %v754
        %v756 = vpop.f32.mrf.mxu0
        %757 = vmatprep.mubr.bf16.mxu0 0
        %758 = vmatmul.mubr.bf16.gmra.mxu0 %v647
        %v759 = vpop.f32.mrf.mxu0
        %v760 = vadd.f32 %v567, %v759
        %v761 = vpop.f32.mrf.mxu0
        %v762 = vpop.f32.mrf.mxu0
        %v763 = vadd.f32 %v570, %v762
        %v764 = vpop.f32.mrf.mxu0
        %765 = vmatprep.mubr.bf16.mxu0 0
        %766 = vmatmul.mubr.bf16.gmra.mxu0 %v648
        %v767 = vpop.f32.mrf.mxu0
        %v768 = vadd.f32 %v575, %v767
        %v769 = vpop.f32.mrf.mxu0
        %v770 = vpop.f32.mrf.mxu0
        %v771 = vadd.f32 %v578, %v770
        %v772 = vpop.f32.mrf.mxu0
        %773 = vmatprep.mubr.bf16.mxu0 0
        %774 = vmatmul.mubr.bf16.gmra.mxu0 %v649
        %v775 = vpop.f32.mrf.mxu0
        %v776 = vadd.f32 %v583, %v775
        %v777 = vpop.f32.mrf.mxu0
        %v778 = vpop.f32.mrf.mxu0
        %v779 = vadd.f32 %v586, %v778
        %v780 = vpop.f32.mrf.mxu0
        %781 = vmatprep.mubr.bf16.mxu0 0
        %782 = vmatmul.mubr.bf16.gmra.mxu0 %v650
        %v783 = vpop.f32.mrf.mxu0
        %v784 = vadd.f32 %v591, %v783
        %v785 = vpop.f32.mrf.mxu0
        %v786 = vpop.f32.mrf.mxu0
        %v787 = vadd.f32 %v594, %v786
        %v788 = vpop.f32.mrf.mxu0
        %789 = vmatprep.mubr.bf16.mxu0 0
        %790 = vmatmul.mubr.bf16.gmra.mxu0 %v651
        %v791 = vpop.f32.mrf.mxu0
        %v792 = vadd.f32 %v599, %v791
        %v793 = vpop.f32.mrf.mxu0
        %v794 = vpop.f32.mrf.mxu0
        %v795 = vadd.f32 %v602, %v794
        %v796 = vpop.f32.mrf.mxu0
        %797 = vmatprep.mubr.bf16.mxu0 0
        %798 = vmatmul.mubr.bf16.gmra.mxu0 %v652
        %v799 = vpop.f32.mrf.mxu0
        %v800 = vadd.f32 %v607, %v799
        %v801 = vpop.f32.mrf.mxu0
        %v802 = vpop.f32.mrf.mxu0
        %v803 = vadd.f32 %v610, %v802
        %v804 = vpop.f32.mrf.mxu0
        %805 = vdwg.mxu0
        %v806 = vld [vmem:[%s183] sm:$0xe]
        %v807 = vld [vmem:[%s183 + $0xc] sm:$0xe]
        %v808 = vld [vmem:[%s183 + $0x18] sm:$0xe]
        %v809 = vld [vmem:[%s183 + $0x24] sm:$0xe]
        %v810 = vld [vmem:[%s183 + $0x30] sm:$0xe]
        %v811 = vld [vmem:[%s183 + $0x3c] sm:$0xe]
        %v812 = vld [vmem:[%s183 + $0x48] sm:$0xe]
        %v813 = vld [vmem:[%s183 + $0x54] sm:$0xe]
        %vm830 = vcmask 1042432
        %vm831 = vcmask 1046532
        %vm832 = vmor %vm830, %vm831
        %v833 = vrot.slane %v806, 5
        %v834 = vrot.slane %v833, 4
        %v835 = vrot.slane %v185, 5
        %v836 = vsel %vm832, %v834, %v835
        %v837 = vrot.slane %v835, 4
        %v838 = vrot.slane %v216, 5
        %v839 = vsel %vm832, %v837, %v838
        %v840 = vrot.slane %v807, 5
        %v841 = vrot.slane %v840, 4
        %v842 = vrot.slane %v187, 5
        %v843 = vsel %vm832, %v841, %v842
        %v844 = vrot.slane %v842, 4
        %v845 = vrot.slane %v217, 5
        %v846 = vsel %vm832, %v844, %v845
        %v847 = vrot.slane %v808, 5
        %v848 = vrot.slane %v847, 4
        %v849 = vrot.slane %v189, 5
        %v850 = vsel %vm832, %v848, %v849
        %v851 = vrot.slane %v849, 4
        %v852 = vrot.slane %v218, 5
        %v853 = vsel %vm832, %v851, %v852
        %v854 = vrot.slane %v809, 5
        %v855 = vrot.slane %v854, 4
        %v856 = vrot.slane %v191, 5
        %v857 = vsel %vm832, %v855, %v856
        %v858 = vrot.slane %v856, 4
        %v859 = vrot.slane %v219, 5
        %v860 = vsel %vm832, %v858, %v859
        %v861 = vrot.slane %v810, 5
        %v862 = vrot.slane %v861, 4
        %v863 = vrot.slane %v193, 5
        %v864 = vsel %vm832, %v862, %v863
        %v865 = vrot.slane %v863, 4
        %v866 = vrot.slane %v220, 5
        %v867 = vsel %vm832, %v865, %v866
        %v868 = vrot.slane %v811, 5
        %v869 = vrot.slane %v868, 4
        %v870 = vrot.slane %v195, 5
        %v871 = vsel %vm832, %v869, %v870
        %v872 = vrot.slane %v870, 4
        %v873 = vrot.slane %v221, 5
        %v874 = vsel %vm832, %v872, %v873
        %v875 = vrot.slane %v812, 5
        %v876 = vrot.slane %v875, 4
        %v877 = vrot.slane %v197, 5
        %v878 = vsel %vm832, %v876, %v877
        %v879 = vrot.slane %v877, 4
        %v880 = vrot.slane %v222, 5
        %v881 = vsel %vm832, %v879, %v880
        %v882 = vrot.slane %v813, 5
        %v883 = vrot.slane %v882, 4
        %v884 = vrot.slane %v199, 5
        %v885 = vsel %vm832, %v883, %v884
        %v886 = vrot.slane %v884, 4
        %v887 = vrot.slane %v223, 5
        %v888 = vsel %vm832, %v886, %v887
        %s889 = scalar_lea.vmem %s1, 128
        %v890 = vld [vmem:[%s889] sm:$0xf]
        %v891 = vld [vmem:[%s889 + $0x4] sm:$0xf]
        %v892 = vld [vmem:[%s889 + $0x8] sm:$0xf]
        %v893 = vld [vmem:[%s889 + $0xc] sm:$0xf]
        %v894 = vld [vmem:[%s889 + $0x10] sm:$0xf]
        %v895 = vld [vmem:[%s889 + $0x14] sm:$0xf]
        %v896 = vld [vmem:[%s889 + $0x18] sm:$0xf]
        %v897 = vld [vmem:[%s889 + $0x1c] sm:$0xf]
        %v898 = vld [vmem:[%s889 + $0x20] sm:$0xf]
        %v899 = vld [vmem:[%s889 + $0x24] sm:$0xf]
        %v900 = vld [vmem:[%s889 + $0x28] sm:$0xf]
        %v901 = vld [vmem:[%s889 + $0x2c] sm:$0xf]
        %v902 = vld [vmem:[%s889 + $0x30] sm:$0xf]
        %v903 = vld [vmem:[%s889 + $0x34] sm:$0xf]
        %v904 = vld [vmem:[%s889 + $0x38] sm:$0xf]
        %v905 = vld [vmem:[%s889 + $0x3c] sm:$0xf]
        %v906 = vunpack.c.l.b16 %v836
        %v907 = vunpack.c.l.b16 %v839
        %v908 = vunpack.c.l.b16 %v843
        %v909 = vunpack.c.l.b16 %v846
        %v910 = vunpack.c.l.b16 %v850
        %v911 = vunpack.c.l.b16 %v853
        %v912 = vunpack.c.l.b16 %v857
        %v913 = vunpack.c.l.b16 %v860
        %v914 = vunpack.c.l.b16 %v864
        %v915 = vunpack.c.l.b16 %v867
        %v916 = vunpack.c.l.b16 %v871
        %v917 = vunpack.c.l.b16 %v874
        %v918 = vunpack.c.l.b16 %v878
        %v919 = vunpack.c.l.b16 %v881
        %v920 = vunpack.c.l.b16 %v885
        %v921 = vunpack.c.l.b16 %v888
        %v922 = vpack.c.b16 %v907, %v906
        %v923 = vpack.c.b16 %v909, %v908
        %v924 = vpack.c.b16 %v911, %v910
        %v925 = vpack.c.b16 %v913, %v912
        %v926 = vpack.c.b16 %v915, %v914
        %v927 = vpack.c.b16 %v917, %v916
        %v928 = vpack.c.b16 %v919, %v918
        %v929 = vpack.c.b16 %v921, %v920
        %v954 = vunpack.c.l.b16 %v890
        %v955 = vunpack.c.l.b16 %v891
        %v956 = vunpack.c.l.b16 %v892
        %v957 = vunpack.c.l.b16 %v893
        %v958 = vunpack.c.l.b16 %v894
        %v959 = vunpack.c.l.b16 %v895
        %v960 = vunpack.c.l.b16 %v896
        %v961 = vunpack.c.l.b16 %v897
        %v962 = vunpack.c.l.b16 %v898
        %v963 = vunpack.c.l.b16 %v899
        %v964 = vunpack.c.l.b16 %v900
        %v965 = vunpack.c.l.b16 %v901
        %v966 = vunpack.c.l.b16 %v902
        %v967 = vunpack.c.l.b16 %v903
        %v968 = vunpack.c.l.b16 %v904
        %v969 = vunpack.c.l.b16 %v905
        %v970 = vpack.c.b16 %v955, %v954
        %v971 = vpack.c.b16 %v957, %v956
        %v972 = vpack.c.b16 %v959, %v958
        %v973 = vpack.c.b16 %v961, %v960
        %v974 = vpack.c.b16 %v963, %v962
        %v975 = vpack.c.b16 %v965, %v964
        %v976 = vpack.c.b16 %v967, %v966
        %v977 = vpack.c.b16 %v969, %v968
        %986 = vmatprep.subr.bf16.mxu0 0
        %987 = vmatpush1.bf16.msra.mxu0 %v977
        %988 = vmatprep.subr.bf16.mxu0 0
        %989 = vmatpush1.bf16.msra.mxu0 %v976
        %990 = vmatprep.subr.bf16.mxu0 0
        %991 = vmatpush1.bf16.msra.mxu0 %v975
        %992 = vmatprep.subr.bf16.mxu0 0
        %993 = vmatpush1.bf16.msra.mxu0 %v974
        %994 = vmatprep.subr.bf16.mxu0 0
        %995 = vmatpush1.bf16.msra.mxu0 %v973
        %996 = vmatprep.subr.bf16.mxu0 0
        %997 = vmatpush1.bf16.msra.mxu0 %v972
        %998 = vmatprep.subr.bf16.mxu0 0
        %999 = vmatpush1.bf16.msra.mxu0 %v971
        %1000 = vmatprep.subr.bf16.mxu0 0
        %1001 = vmatpush1.bf16.msra.mxu0 %v970
        %1002 = vmatprep.subr.bf16.mxu0 0
        %1003 = vmatpush2.bf16.msra.mxu0 0
        %1004 = vmatprep.subr.bf16.mxu0 0
        %1005 = vmatpush2.bf16.msra.mxu0 0
        %1006 = vmatprep.subr.bf16.mxu0 0
        %1007 = vmatpush2.bf16.msra.mxu0 0
        %1008 = vmatprep.subr.bf16.mxu0 0
        %1009 = vmatpush2.bf16.msra.mxu0 0
        %1010 = vmatprep.subr.bf16.mxu0 0
        %1011 = vmatpush2.bf16.msra.mxu0 0
        %1012 = vmatprep.subr.bf16.mxu0 0
        %1013 = vmatpush2.bf16.msra.mxu0 0
        %1014 = vmatprep.subr.bf16.mxu0 0
        %1015 = vmatpush2.bf16.msra.mxu0 0
        %1016 = vmatprep.subr.bf16.mxu0 0
        %1017 = vmatpush2.bf16.msra.mxu0 0
        %1018 = vmatprep.mubr.bf16.mxu0 0
        %1019 = vmatmul.mubr.bf16.gmra.mxu0 %v922
        %v1020 = vpop.f32.mrf.mxu0
        %v1021 = vadd.f32 0.0, %v1020
        %v1022 = vpop.f32.mrf.mxu0
        %v1023 = vpop.f32.mrf.mxu0
        %v1024 = vadd.f32 0.0, %v1023
        %v1025 = vpop.f32.mrf.mxu0
        %1026 = vmatprep.mubr.bf16.mxu0 0
        %1027 = vmatmul.mubr.bf16.gmra.mxu0 %v923
        %v1028 = vpop.f32.mrf.mxu0
        %v1029 = vadd.f32 0.0, %v1028
        %v1030 = vpop.f32.mrf.mxu0
        %v1031 = vpop.f32.mrf.mxu0
        %v1032 = vadd.f32 0.0, %v1031
        %v1033 = vpop.f32.mrf.mxu0
        %1034 = vmatprep.mubr.bf16.mxu0 0
        %1035 = vmatmul.mubr.bf16.gmra.mxu0 %v924
        %v1036 = vpop.f32.mrf.mxu0
        %v1037 = vadd.f32 0.0, %v1036
        %v1038 = vpop.f32.mrf.mxu0
        %v1039 = vpop.f32.mrf.mxu0
        %v1040 = vadd.f32 0.0, %v1039
        %v1041 = vpop.f32.mrf.mxu0
        %1042 = vmatprep.mubr.bf16.mxu0 0
        %1043 = vmatmul.mubr.bf16.gmra.mxu0 %v925
        %v1044 = vpop.f32.mrf.mxu0
        %v1045 = vadd.f32 0.0, %v1044
        %v1046 = vpop.f32.mrf.mxu0
        %v1047 = vpop.f32.mrf.mxu0
        %v1048 = vadd.f32 0.0, %v1047
        %v1049 = vpop.f32.mrf.mxu0
        %1050 = vmatprep.mubr.bf16.mxu0 0
        %1051 = vmatmul.mubr.bf16.gmra.mxu0 %v926
        %v1052 = vpop.f32.mrf.mxu0
        %v1053 = vadd.f32 0.0, %v1052
        %v1054 = vpop.f32.mrf.mxu0
        %v1055 = vpop.f32.mrf.mxu0
        %v1056 = vadd.f32 0.0, %v1055
        %v1057 = vpop.f32.mrf.mxu0
        %1058 = vmatprep.mubr.bf16.mxu0 0
        %1059 = vmatmul.mubr.bf16.gmra.mxu0 %v927
        %v1060 = vpop.f32.mrf.mxu0
        %v1061 = vadd.f32 0.0, %v1060
        %v1062 = vpop.f32.mrf.mxu0
        %v1063 = vpop.f32.mrf.mxu0
        %v1064 = vadd.f32 0.0, %v1063
        %v1065 = vpop.f32.mrf.mxu0
        %1066 = vmatprep.mubr.bf16.mxu0 0
        %1067 = vmatmul.mubr.bf16.gmra.mxu0 %v928
        %v1068 = vpop.f32.mrf.mxu0
        %v1069 = vadd.f32 0.0, %v1068
        %v1070 = vpop.f32.mrf.mxu0
        %v1071 = vpop.f32.mrf.mxu0
        %v1072 = vadd.f32 0.0, %v1071
        %v1073 = vpop.f32.mrf.mxu0
        %1074 = vmatprep.mubr.bf16.mxu0 0
        %1075 = vmatmul.mubr.bf16.gmra.mxu0 %v929
        %v1076 = vpop.f32.mrf.mxu0
        %v1077 = vadd.f32 0.0, %v1076
        %v1078 = vpop.f32.mrf.mxu0
        %v1079 = vpop.f32.mrf.mxu0
        %v1080 = vadd.f32 0.0, %v1079
        %v1081 = vpop.f32.mrf.mxu0
        %1082 = vdwg.mxu0
        %v1083 = vadd.f32 %v744, %v1021
        %v1084 = vadd.f32 %v747, %v1024
        %v1085 = vadd.f32 %v752, %v1029
        %v1086 = vadd.f32 %v755, %v1032
        %v1087 = vadd.f32 %v760, %v1037
        %v1088 = vadd.f32 %v763, %v1040
        %v1089 = vadd.f32 %v768, %v1045
        %v1090 = vadd.f32 %v771, %v1048
        %v1091 = vadd.f32 %v776, %v1053
        %v1092 = vadd.f32 %v779, %v1056
        %v1093 = vadd.f32 %v784, %v1061
        %v1094 = vadd.f32 %v787, %v1064
        %v1095 = vadd.f32 %v792, %v1069
        %v1096 = vadd.f32 %v795, %v1072
        %v1097 = vadd.f32 %v800, %v1077
        %v1098 = vadd.f32 %v803, %v1080
        %s1099 = sadd.s32 0, 1
        %s1100 = smul.u32 %s1099, 3
        %s1101 = smul.addr %s1100, 4
        %s1102 = scalar_lea.vmem %s179, %s1101
        %v1103 = vld [vmem:[%s1102] sm:$0xf]
        %v1104 = vld [vmem:[%s1102 + $0x4] sm:$0xf]
        %v1105 = vld [vmem:[%s1102 + $0xc] sm:$0xf]
        %v1106 = vld [vmem:[%s1102 + $0x10] sm:$0xf]
        %v1107 = vld [vmem:[%s1102 + $0x18] sm:$0xf]
        %v1108 = vld [vmem:[%s1102 + $0x1c] sm:$0xf]
        %v1109 = vld [vmem:[%s1102 + $0x24] sm:$0xf]
        %v1110 = vld [vmem:[%s1102 + $0x28] sm:$0xf]
        %v1111 = vld [vmem:[%s1102 + $0x30] sm:$0xf]
        %v1112 = vld [vmem:[%s1102 + $0x34] sm:$0xf]
        %v1113 = vld [vmem:[%s1102 + $0x3c] sm:$0xf]
        %v1114 = vld [vmem:[%s1102 + $0x40] sm:$0xf]
        %v1115 = vld [vmem:[%s1102 + $0x48] sm:$0xf]
        %v1116 = vld [vmem:[%s1102 + $0x4c] sm:$0xf]
        %v1117 = vld [vmem:[%s1102 + $0x54] sm:$0xf]
        %v1118 = vld [vmem:[%s1102 + $0x58] sm:$0xf]
        %s1119 = scalar_lea.vmem %s1, 192
        %v1120 = vld [vmem:[%s1119] sm:$0xf]
        %v1121 = vld [vmem:[%s1119 + $0x4] sm:$0xf]
        %v1122 = vld [vmem:[%s1119 + $0x8] sm:$0xf]
        %v1123 = vld [vmem:[%s1119 + $0xc] sm:$0xf]
        %v1124 = vld [vmem:[%s1119 + $0x10] sm:$0xf]
        %v1125 = vld [vmem:[%s1119 + $0x14] sm:$0xf]
        %v1126 = vld [vmem:[%s1119 + $0x18] sm:$0xf]
        %v1127 = vld [vmem:[%s1119 + $0x1c] sm:$0xf]
        %v1128 = vld [vmem:[%s1119 + $0x20] sm:$0xf]
        %v1129 = vld [vmem:[%s1119 + $0x24] sm:$0xf]
        %v1130 = vld [vmem:[%s1119 + $0x28] sm:$0xf]
        %v1131 = vld [vmem:[%s1119 + $0x2c] sm:$0xf]
        %v1132 = vld [vmem:[%s1119 + $0x30] sm:$0xf]
        %v1133 = vld [vmem:[%s1119 + $0x34] sm:$0xf]
        %v1134 = vld [vmem:[%s1119 + $0x38] sm:$0xf]
        %v1135 = vld [vmem:[%s1119 + $0x3c] sm:$0xf]
        %v1152 = vunpack.c.l.b16 %v1103
        %v1153 = vunpack.c.l.b16 %v1104
        %v1154 = vunpack.c.l.b16 %v1105
        %v1155 = vunpack.c.l.b16 %v1106
        %v1156 = vunpack.c.l.b16 %v1107
        %v1157 = vunpack.c.l.b16 %v1108
        %v1158 = vunpack.c.l.b16 %v1109
        %v1159 = vunpack.c.l.b16 %v1110
        %v1160 = vunpack.c.l.b16 %v1111
        %v1161 = vunpack.c.l.b16 %v1112
        %v1162 = vunpack.c.l.b16 %v1113
        %v1163 = vunpack.c.l.b16 %v1114
        %v1164 = vunpack.c.l.b16 %v1115
        %v1165 = vunpack.c.l.b16 %v1116
        %v1166 = vunpack.c.l.b16 %v1117
        %v1167 = vunpack.c.l.b16 %v1118
        %v1168 = vpack.c.b16 %v1153, %v1152
        %v1169 = vpack.c.b16 %v1155, %v1154
        %v1170 = vpack.c.b16 %v1157, %v1156
        %v1171 = vpack.c.b16 %v1159, %v1158
        %v1172 = vpack.c.b16 %v1161, %v1160
        %v1173 = vpack.c.b16 %v1163, %v1162
        %v1174 = vpack.c.b16 %v1165, %v1164
        %v1175 = vpack.c.b16 %v1167, %v1166
        %v1200 = vunpack.c.l.b16 %v1120
        %v1201 = vunpack.c.l.b16 %v1121
        %v1202 = vunpack.c.l.b16 %v1122
        %v1203 = vunpack.c.l.b16 %v1123
        %v1204 = vunpack.c.l.b16 %v1124
        %v1205 = vunpack.c.l.b16 %v1125
        %v1206 = vunpack.c.l.b16 %v1126
        %v1207 = vunpack.c.l.b16 %v1127
        %v1208 = vunpack.c.l.b16 %v1128
        %v1209 = vunpack.c.l.b16 %v1129
        %v1210 = vunpack.c.l.b16 %v1130
        %v1211 = vunpack.c.l.b16 %v1131
        %v1212 = vunpack.c.l.b16 %v1132
        %v1213 = vunpack.c.l.b16 %v1133
        %v1214 = vunpack.c.l.b16 %v1134
        %v1215 = vunpack.c.l.b16 %v1135
        %v1216 = vpack.c.b16 %v1201, %v1200
        %v1217 = vpack.c.b16 %v1203, %v1202
        %v1218 = vpack.c.b16 %v1205, %v1204
        %v1219 = vpack.c.b16 %v1207, %v1206
        %v1220 = vpack.c.b16 %v1209, %v1208
        %v1221 = vpack.c.b16 %v1211, %v1210
        %v1222 = vpack.c.b16 %v1213, %v1212
        %v1223 = vpack.c.b16 %v1215, %v1214
        %1232 = vmatprep.subr.bf16.mxu0 0
        %1233 = vmatpush1.bf16.msra.mxu0 %v1223
        %1234 = vmatprep.subr.bf16.mxu0 0
        %1235 = vmatpush1.bf16.msra.mxu0 %v1222
        %1236 = vmatprep.subr.bf16.mxu0 0
        %1237 = vmatpush1.bf16.msra.mxu0 %v1221
        %1238 = vmatprep.subr.bf16.mxu0 0
        %1239 = vmatpush1.bf16.msra.mxu0 %v1220
        %1240 = vmatprep.subr.bf16.mxu0 0
        %1241 = vmatpush1.bf16.msra.mxu0 %v1219
        %1242 = vmatprep.subr.bf16.mxu0 0
        %1243 = vmatpush1.bf16.msra.mxu0 %v1218
        %1244 = vmatprep.subr.bf16.mxu0 0
        %1245 = vmatpush1.bf16.msra.mxu0 %v1217
        %1246 = vmatprep.subr.bf16.mxu0 0
        %1247 = vmatpush1.bf16.msra.mxu0 %v1216
        %1248 = vmatprep.subr.bf16.mxu0 0
        %1249 = vmatpush2.bf16.msra.mxu0 0
        %1250 = vmatprep.subr.bf16.mxu0 0
        %1251 = vmatpush2.bf16.msra.mxu0 0
        %1252 = vmatprep.subr.bf16.mxu0 0
        %1253 = vmatpush2.bf16.msra.mxu0 0
        %1254 = vmatprep.subr.bf16.mxu0 0
        %1255 = vmatpush2.bf16.msra.mxu0 0
        %1256 = vmatprep.subr.bf16.mxu0 0
        %1257 = vmatpush2.bf16.msra.mxu0 0
        %1258 = vmatprep.subr.bf16.mxu0 0
        %1259 = vmatpush2.bf16.msra.mxu0 0
        %1260 = vmatprep.subr.bf16.mxu0 0
        %1261 = vmatpush2.bf16.msra.mxu0 0
        %1262 = vmatprep.subr.bf16.mxu0 0
        %1263 = vmatpush2.bf16.msra.mxu0 0
        %1264 = vmatprep.mubr.bf16.mxu0 0
        %1265 = vmatmul.mubr.bf16.gmra.mxu0 %v1168
        %v1266 = vpop.f32.mrf.mxu0
        %v1267 = vadd.f32 0.0, %v1266
        %v1268 = vpop.f32.mrf.mxu0
        %v1269 = vpop.f32.mrf.mxu0
        %v1270 = vadd.f32 0.0, %v1269
        %v1271 = vpop.f32.mrf.mxu0
        %1272 = vmatprep.mubr.bf16.mxu0 0
        %1273 = vmatmul.mubr.bf16.gmra.mxu0 %v1169
        %v1274 = vpop.f32.mrf.mxu0
        %v1275 = vadd.f32 0.0, %v1274
        %v1276 = vpop.f32.mrf.mxu0
        %v1277 = vpop.f32.mrf.mxu0
        %v1278 = vadd.f32 0.0, %v1277
        %v1279 = vpop.f32.mrf.mxu0
        %1280 = vmatprep.mubr.bf16.mxu0 0
        %1281 = vmatmul.mubr.bf16.gmra.mxu0 %v1170
        %v1282 = vpop.f32.mrf.mxu0
        %v1283 = vadd.f32 0.0, %v1282
        %v1284 = vpop.f32.mrf.mxu0
        %v1285 = vpop.f32.mrf.mxu0
        %v1286 = vadd.f32 0.0, %v1285
        %v1287 = vpop.f32.mrf.mxu0
        %1288 = vmatprep.mubr.bf16.mxu0 0
        %1289 = vmatmul.mubr.bf16.gmra.mxu0 %v1171
        %v1290 = vpop.f32.mrf.mxu0
        %v1291 = vadd.f32 0.0, %v1290
        %v1292 = vpop.f32.mrf.mxu0
        %v1293 = vpop.f32.mrf.mxu0
        %v1294 = vadd.f32 0.0, %v1293
        %v1295 = vpop.f32.mrf.mxu0
        %1296 = vmatprep.mubr.bf16.mxu0 0
        %1297 = vmatmul.mubr.bf16.gmra.mxu0 %v1172
        %v1298 = vpop.f32.mrf.mxu0
        %v1299 = vadd.f32 0.0, %v1298
        %v1300 = vpop.f32.mrf.mxu0
        %v1301 = vpop.f32.mrf.mxu0
        %v1302 = vadd.f32 0.0, %v1301
        %v1303 = vpop.f32.mrf.mxu0
        %1304 = vmatprep.mubr.bf16.mxu0 0
        %1305 = vmatmul.mubr.bf16.gmra.mxu0 %v1173
        %v1306 = vpop.f32.mrf.mxu0
        %v1307 = vadd.f32 0.0, %v1306
        %v1308 = vpop.f32.mrf.mxu0
        %v1309 = vpop.f32.mrf.mxu0
        %v1310 = vadd.f32 0.0, %v1309
        %v1311 = vpop.f32.mrf.mxu0
        %1312 = vmatprep.mubr.bf16.mxu0 0
        %1313 = vmatmul.mubr.bf16.gmra.mxu0 %v1174
        %v1314 = vpop.f32.mrf.mxu0
        %v1315 = vadd.f32 0.0, %v1314
        %v1316 = vpop.f32.mrf.mxu0
        %v1317 = vpop.f32.mrf.mxu0
        %v1318 = vadd.f32 0.0, %v1317
        %v1319 = vpop.f32.mrf.mxu0
        %1320 = vmatprep.mubr.bf16.mxu0 0
        %1321 = vmatmul.mubr.bf16.gmra.mxu0 %v1175
        %v1322 = vpop.f32.mrf.mxu0
        %v1323 = vadd.f32 0.0, %v1322
        %v1324 = vpop.f32.mrf.mxu0
        %v1325 = vpop.f32.mrf.mxu0
        %v1326 = vadd.f32 0.0, %v1325
        %v1327 = vpop.f32.mrf.mxu0
        %1328 = vdwg.mxu0
        %v1329 = vadd.f32 %v1083, %v1267
        %v1330 = vadd.f32 %v1084, %v1270
        %v1331 = vadd.f32 %v1085, %v1275
        %v1332 = vadd.f32 %v1086, %v1278
        %v1333 = vadd.f32 %v1087, %v1283
        %v1334 = vadd.f32 %v1088, %v1286
        %v1335 = vadd.f32 %v1089, %v1291
        %v1336 = vadd.f32 %v1090, %v1294
        %v1337 = vadd.f32 %v1091, %v1299
        %v1338 = vadd.f32 %v1092, %v1302
        %v1339 = vadd.f32 %v1093, %v1307
        %v1340 = vadd.f32 %v1094, %v1310
        %v1341 = vadd.f32 %v1095, %v1315
        %v1342 = vadd.f32 %v1096, %v1318
        %v1343 = vadd.f32 %v1097, %v1323
        %v1344 = vadd.f32 %v1098, %v1326
        %v1345 = vld [vmem:[%s1102] sm:$0xf]
        %v1346 = vld [vmem:[%s1102 + $0x4] sm:$0xf]
        %v1347 = vld [vmem:[%s1102 + $0x8] sm:$0x1]
        %v1348 = vld [vmem:[%s1102 + $0xc] sm:$0xf]
        %v1349 = vld [vmem:[%s1102 + $0x10] sm:$0xf]
        %v1350 = vld [vmem:[%s1102 + $0x14] sm:$0x1]
        %v1351 = vld [vmem:[%s1102 + $0x18] sm:$0xf]
        %v1352 = vld [vmem:[%s1102 + $0x1c] sm:$0xf]
        %v1353 = vld [vmem:[%s1102 + $0x20] sm:$0x1]
        %v1354 = vld [vmem:[%s1102 + $0x24] sm:$0xf]
        %v1355 = vld [vmem:[%s1102 + $0x28] sm:$0xf]
        %v1356 = vld [vmem:[%s1102 + $0x2c] sm:$0x1]
        %v1357 = vld [vmem:[%s1102 + $0x30] sm:$0xf]
        %v1358 = vld [vmem:[%s1102 + $0x34] sm:$0xf]
        %v1359 = vld [vmem:[%s1102 + $0x38] sm:$0x1]
        %v1360 = vld [vmem:[%s1102 + $0x3c] sm:$0xf]
        %v1361 = vld [vmem:[%s1102 + $0x40] sm:$0xf]
        %v1362 = vld [vmem:[%s1102 + $0x44] sm:$0x1]
        %v1363 = vld [vmem:[%s1102 + $0x48] sm:$0xf]
        %v1364 = vld [vmem:[%s1102 + $0x4c] sm:$0xf]
        %v1365 = vld [vmem:[%s1102 + $0x50] sm:$0x1]
        %v1366 = vld [vmem:[%s1102 + $0x54] sm:$0xf]
        %v1367 = vld [vmem:[%s1102 + $0x58] sm:$0xf]
        %v1368 = vld [vmem:[%s1102 + $0x5c] sm:$0x1]
        %v1370 = vshrl.u32 %v1345, 16
        %v1372 = vrot.slane %v1370, 4
        %v1373 = vshll.u32 %v1345, 16
        %v1375 = vrot.slane %v1373, 5
        %v1376 = vor.u32 %v1372, %v1375
        %v1377 = vrot.slane %v1376, 4
        %v1379 = vshll.u32 %v1346, 16
        %v1381 = vrot.slane %v1379, 5
        %v1382 = vsel %vm226, %v1377, %v1381
        %v1383 = vshrl.u32 %v1346, 16
        %v1385 = vrot.slane %v1383, 4
        %v1386 = vor.u32 %v1385, %v1381
        %v1387 = vrot.slane %v1386, 4
        %v1389 = vshll.u32 %v1347, 16
        %v1391 = vrot.slane %v1389, 5
        %v1392 = vsel %vm226, %v1387, %v1391
        %v1394 = vshrl.u32 %v1348, 16
        %v1396 = vrot.slane %v1394, 4
        %v1397 = vshll.u32 %v1348, 16
        %v1399 = vrot.slane %v1397, 5
        %v1400 = vor.u32 %v1396, %v1399
        %v1401 = vrot.slane %v1400, 4
        %v1403 = vshll.u32 %v1349, 16
        %v1405 = vrot.slane %v1403, 5
        %v1406 = vsel %vm226, %v1401, %v1405
        %v1407 = vshrl.u32 %v1349, 16
        %v1409 = vrot.slane %v1407, 4
        %v1410 = vor.u32 %v1409, %v1405
        %v1411 = vrot.slane %v1410, 4
        %v1413 = vshll.u32 %v1350, 16
        %v1415 = vrot.slane %v1413, 5
        %v1416 = vsel %vm226, %v1411, %v1415
        %v1418 = vshrl.u32 %v1351, 16
        %v1420 = vrot.slane %v1418, 4
        %v1421 = vshll.u32 %v1351, 16
        %v1423 = vrot.slane %v1421, 5
        %v1424 = vor.u32 %v1420, %v1423
        %v1425 = vrot.slane %v1424, 4
        %v1427 = vshll.u32 %v1352, 16
        %v1429 = vrot.slane %v1427, 5
        %v1430 = vsel %vm226, %v1425, %v1429
        %v1431 = vshrl.u32 %v1352, 16
        %v1433 = vrot.slane %v1431, 4
        %v1434 = vor.u32 %v1433, %v1429
        %v1435 = vrot.slane %v1434, 4
        %v1437 = vshll.u32 %v1353, 16
        %v1439 = vrot.slane %v1437, 5
        %v1440 = vsel %vm226, %v1435, %v1439
        %v1442 = vshrl.u32 %v1354, 16
        %v1444 = vrot.slane %v1442, 4
        %v1445 = vshll.u32 %v1354, 16
        %v1447 = vrot.slane %v1445, 5
        %v1448 = vor.u32 %v1444, %v1447
        %v1449 = vrot.slane %v1448, 4
        %v1451 = vshll.u32 %v1355, 16
        %v1453 = vrot.slane %v1451, 5
        %v1454 = vsel %vm226, %v1449, %v1453
        %v1455 = vshrl.u32 %v1355, 16
        %v1457 = vrot.slane %v1455, 4
        %v1458 = vor.u32 %v1457, %v1453
        %v1459 = vrot.slane %v1458, 4
        %v1461 = vshll.u32 %v1356, 16
        %v1463 = vrot.slane %v1461, 5
        %v1464 = vsel %vm226, %v1459, %v1463
        %v1466 = vshrl.u32 %v1357, 16
        %v1468 = vrot.slane %v1466, 4
        %v1469 = vshll.u32 %v1357, 16
        %v1471 = vrot.slane %v1469, 5
        %v1472 = vor.u32 %v1468, %v1471
        %v1473 = vrot.slane %v1472, 4
        %v1475 = vshll.u32 %v1358, 16
        %v1477 = vrot.slane %v1475, 5
        %v1478 = vsel %vm226, %v1473, %v1477
        %v1479 = vshrl.u32 %v1358, 16
        %v1481 = vrot.slane %v1479, 4
        %v1482 = vor.u32 %v1481, %v1477
        %v1483 = vrot.slane %v1482, 4
        %v1485 = vshll.u32 %v1359, 16
        %v1487 = vrot.slane %v1485, 5
        %v1488 = vsel %vm226, %v1483, %v1487
        %v1490 = vshrl.u32 %v1360, 16
        %v1492 = vrot.slane %v1490, 4
        %v1493 = vshll.u32 %v1360, 16
        %v1495 = vrot.slane %v1493, 5
        %v1496 = vor.u32 %v1492, %v1495
        %v1497 = vrot.slane %v1496, 4
        %v1499 = vshll.u32 %v1361, 16
        %v1501 = vrot.slane %v1499, 5
        %v1502 = vsel %vm226, %v1497, %v1501
        %v1503 = vshrl.u32 %v1361, 16
        %v1505 = vrot.slane %v1503, 4
        %v1506 = vor.u32 %v1505, %v1501
        %v1507 = vrot.slane %v1506, 4
        %v1509 = vshll.u32 %v1362, 16
        %v1511 = vrot.slane %v1509, 5
        %v1512 = vsel %vm226, %v1507, %v1511
        %v1514 = vshrl.u32 %v1363, 16
        %v1516 = vrot.slane %v1514, 4
        %v1517 = vshll.u32 %v1363, 16
        %v1519 = vrot.slane %v1517, 5
        %v1520 = vor.u32 %v1516, %v1519
        %v1521 = vrot.slane %v1520, 4
        %v1523 = vshll.u32 %v1364, 16
        %v1525 = vrot.slane %v1523, 5
        %v1526 = vsel %vm226, %v1521, %v1525
        %v1527 = vshrl.u32 %v1364, 16
        %v1529 = vrot.slane %v1527, 4
        %v1530 = vor.u32 %v1529, %v1525
        %v1531 = vrot.slane %v1530, 4
        %v1533 = vshll.u32 %v1365, 16
        %v1535 = vrot.slane %v1533, 5
        %v1536 = vsel %vm226, %v1531, %v1535
        %v1538 = vshrl.u32 %v1366, 16
        %v1540 = vrot.slane %v1538, 4
        %v1541 = vshll.u32 %v1366, 16
        %v1543 = vrot.slane %v1541, 5
        %v1544 = vor.u32 %v1540, %v1543
        %v1545 = vrot.slane %v1544, 4
        %v1547 = vshll.u32 %v1367, 16
        %v1549 = vrot.slane %v1547, 5
        %v1550 = vsel %vm226, %v1545, %v1549
        %v1551 = vshrl.u32 %v1367, 16
        %v1553 = vrot.slane %v1551, 4
        %v1554 = vor.u32 %v1553, %v1549
        %v1555 = vrot.slane %v1554, 4
        %v1557 = vshll.u32 %v1368, 16
        %v1559 = vrot.slane %v1557, 5
        %v1560 = vsel %vm226, %v1555, %v1559
        %s1561 = scalar_lea.vmem %s1, 256
        %v1562 = vld [vmem:[%s1561] sm:$0xf]
        %v1563 = vld [vmem:[%s1561 + $0x4] sm:$0xf]
        %v1564 = vld [vmem:[%s1561 + $0x8] sm:$0xf]
        %v1565 = vld [vmem:[%s1561 + $0xc] sm:$0xf]
        %v1566 = vld [vmem:[%s1561 + $0x10] sm:$0xf]
        %v1567 = vld [vmem:[%s1561 + $0x14] sm:$0xf]
        %v1568 = vld [vmem:[%s1561 + $0x18] sm:$0xf]
        %v1569 = vld [vmem:[%s1561 + $0x1c] sm:$0xf]
        %v1570 = vld [vmem:[%s1561 + $0x20] sm:$0xf]
        %v1571 = vld [vmem:[%s1561 + $0x24] sm:$0xf]
        %v1572 = vld [vmem:[%s1561 + $0x28] sm:$0xf]
        %v1573 = vld [vmem:[%s1561 + $0x2c] sm:$0xf]
        %v1574 = vld [vmem:[%s1561 + $0x30] sm:$0xf]
        %v1575 = vld [vmem:[%s1561 + $0x34] sm:$0xf]
        %v1576 = vld [vmem:[%s1561 + $0x38] sm:$0xf]
        %v1577 = vld [vmem:[%s1561 + $0x3c] sm:$0xf]
        %v1578 = vunpack.c.l.b16 %v1382
        %v1579 = vunpack.c.l.b16 %v1392
        %v1580 = vunpack.c.l.b16 %v1406
        %v1581 = vunpack.c.l.b16 %v1416
        %v1582 = vunpack.c.l.b16 %v1430
        %v1583 = vunpack.c.l.b16 %v1440
        %v1584 = vunpack.c.l.b16 %v1454
        %v1585 = vunpack.c.l.b16 %v1464
        %v1586 = vunpack.c.l.b16 %v1478
        %v1587 = vunpack.c.l.b16 %v1488
        %v1588 = vunpack.c.l.b16 %v1502
        %v1589 = vunpack.c.l.b16 %v1512
        %v1590 = vunpack.c.l.b16 %v1526
        %v1591 = vunpack.c.l.b16 %v1536
        %v1592 = vunpack.c.l.b16 %v1550
        %v1593 = vunpack.c.l.b16 %v1560
        %v1594 = vpack.c.b16 %v1579, %v1578
        %v1595 = vpack.c.b16 %v1581, %v1580
        %v1596 = vpack.c.b16 %v1583, %v1582
        %v1597 = vpack.c.b16 %v1585, %v1584
        %v1598 = vpack.c.b16 %v1587, %v1586
        %v1599 = vpack.c.b16 %v1589, %v1588
        %v1600 = vpack.c.b16 %v1591, %v1590
        %v1601 = vpack.c.b16 %v1593, %v1592
        %v1626 = vunpack.c.l.b16 %v1562
        %v1627 = vunpack.c.l.b16 %v1563
        %v1628 = vunpack.c.l.b16 %v1564
        %v1629 = vunpack.c.l.b16 %v1565
        %v1630 = vunpack.c.l.b16 %v1566
        %v1631 = vunpack.c.l.b16 %v1567
        %v1632 = vunpack.c.l.b16 %v1568
        %v1633 = vunpack.c.l.b16 %v1569
        %v1634 = vunpack.c.l.b16 %v1570
        %v1635 = vunpack.c.l.b16 %v1571
        %v1636 = vunpack.c.l.b16 %v1572
        %v1637 = vunpack.c.l.b16 %v1573
        %v1638 = vunpack.c.l.b16 %v1574
        %v1639 = vunpack.c.l.b16 %v1575
        %v1640 = vunpack.c.l.b16 %v1576
        %v1641 = vunpack.c.l.b16 %v1577
        %v1642 = vpack.c.b16 %v1627, %v1626
        %v1643 = vpack.c.b16 %v1629, %v1628
        %v1644 = vpack.c.b16 %v1631, %v1630
        %v1645 = vpack.c.b16 %v1633, %v1632
        %v1646 = vpack.c.b16 %v1635, %v1634
        %v1647 = vpack.c.b16 %v1637, %v1636
        %v1648 = vpack.c.b16 %v1639, %v1638
        %v1649 = vpack.c.b16 %v1641, %v1640
        %1658 = vmatprep.subr.bf16.mxu0 0
        %1659 = vmatpush1.bf16.msra.mxu0 %v1649
        %1660 = vmatprep.subr.bf16.mxu0 0
        %1661 = vmatpush1.bf16.msra.mxu0 %v1648
        %1662 = vmatprep.subr.bf16.mxu0 0
        %1663 = vmatpush1.bf16.msra.mxu0 %v1647
        %1664 = vmatprep.subr.bf16.mxu0 0
        %1665 = vmatpush1.bf16.msra.mxu0 %v1646
        %1666 = vmatprep.subr.bf16.mxu0 0
        %1667 = vmatpush1.bf16.msra.mxu0 %v1645
        %1668 = vmatprep.subr.bf16.mxu0 0
        %1669 = vmatpush1.bf16.msra.mxu0 %v1644
        %1670 = vmatprep.subr.bf16.mxu0 0
        %1671 = vmatpush1.bf16.msra.mxu0 %v1643
        %1672 = vmatprep.subr.bf16.mxu0 0
        %1673 = vmatpush1.bf16.msra.mxu0 %v1642
        %1674 = vmatprep.subr.bf16.mxu0 0
        %1675 = vmatpush2.bf16.msra.mxu0 0
        %1676 = vmatprep.subr.bf16.mxu0 0
        %1677 = vmatpush2.bf16.msra.mxu0 0
        %1678 = vmatprep.subr.bf16.mxu0 0
        %1679 = vmatpush2.bf16.msra.mxu0 0
        %1680 = vmatprep.subr.bf16.mxu0 0
        %1681 = vmatpush2.bf16.msra.mxu0 0
        %1682 = vmatprep.subr.bf16.mxu0 0
        %1683 = vmatpush2.bf16.msra.mxu0 0
        %1684 = vmatprep.subr.bf16.mxu0 0
        %1685 = vmatpush2.bf16.msra.mxu0 0
        %1686 = vmatprep.subr.bf16.mxu0 0
        %1687 = vmatpush2.bf16.msra.mxu0 0
        %1688 = vmatprep.subr.bf16.mxu0 0
        %1689 = vmatpush2.bf16.msra.mxu0 0
        %1690 = vmatprep.mubr.bf16.mxu0 0
        %1691 = vmatmul.mubr.bf16.gmra.mxu0 %v1594
        %v1692 = vpop.f32.mrf.mxu0
        %v1693 = vadd.f32 0.0, %v1692
        %v1694 = vpop.f32.mrf.mxu0
        %v1695 = vpop.f32.mrf.mxu0
        %v1696 = vadd.f32 0.0, %v1695
        %v1697 = vpop.f32.mrf.mxu0
        %1698 = vmatprep.mubr.bf16.mxu0 0
        %1699 = vmatmul.mubr.bf16.gmra.mxu0 %v1595
        %v1700 = vpop.f32.mrf.mxu0
        %v1701 = vadd.f32 0.0, %v1700
        %v1702 = vpop.f32.mrf.mxu0
        %v1703 = vpop.f32.mrf.mxu0
        %v1704 = vadd.f32 0.0, %v1703
        %v1705 = vpop.f32.mrf.mxu0
        %1706 = vmatprep.mubr.bf16.mxu0 0
        %1707 = vmatmul.mubr.bf16.gmra.mxu0 %v1596
        %v1708 = vpop.f32.mrf.mxu0
        %v1709 = vadd.f32 0.0, %v1708
        %v1710 = vpop.f32.mrf.mxu0
        %v1711 = vpop.f32.mrf.mxu0
        %v1712 = vadd.f32 0.0, %v1711
        %v1713 = vpop.f32.mrf.mxu0
        %1714 = vmatprep.mubr.bf16.mxu0 0
        %1715 = vmatmul.mubr.bf16.gmra.mxu0 %v1597
        %v1716 = vpop.f32.mrf.mxu0
        %v1717 = vadd.f32 0.0, %v1716
        %v1718 = vpop.f32.mrf.mxu0
        %v1719 = vpop.f32.mrf.mxu0
        %v1720 = vadd.f32 0.0, %v1719
        %v1721 = vpop.f32.mrf.mxu0
        %1722 = vmatprep.mubr.bf16.mxu0 0
        %1723 = vmatmul.mubr.bf16.gmra.mxu0 %v1598
        %v1724 = vpop.f32.mrf.mxu0
        %v1725 = vadd.f32 0.0, %v1724
        %v1726 = vpop.f32.mrf.mxu0
        %v1727 = vpop.f32.mrf.mxu0
        %v1728 = vadd.f32 0.0, %v1727
        %v1729 = vpop.f32.mrf.mxu0
        %1730 = vmatprep.mubr.bf16.mxu0 0
        %1731 = vmatmul.mubr.bf16.gmra.mxu0 %v1599
        %v1732 = vpop.f32.mrf.mxu0
        %v1733 = vadd.f32 0.0, %v1732
        %v1734 = vpop.f32.mrf.mxu0
        %v1735 = vpop.f32.mrf.mxu0
        %v1736 = vadd.f32 0.0, %v1735
        %v1737 = vpop.f32.mrf.mxu0
        %1738 = vmatprep.mubr.bf16.mxu0 0
        %1739 = vmatmul.mubr.bf16.gmra.mxu0 %v1600
        %v1740 = vpop.f32.mrf.mxu0
        %v1741 = vadd.f32 0.0, %v1740
        %v1742 = vpop.f32.mrf.mxu0
        %v1743 = vpop.f32.mrf.mxu0
        %v1744 = vadd.f32 0.0, %v1743
        %v1745 = vpop.f32.mrf.mxu0
        %1746 = vmatprep.mubr.bf16.mxu0 0
        %1747 = vmatmul.mubr.bf16.gmra.mxu0 %v1601
        %v1748 = vpop.f32.mrf.mxu0
        %v1749 = vadd.f32 0.0, %v1748
        %v1750 = vpop.f32.mrf.mxu0
        %v1751 = vpop.f32.mrf.mxu0
        %v1752 = vadd.f32 0.0, %v1751
        %v1753 = vpop.f32.mrf.mxu0
        %1754 = vdwg.mxu0
        %v1755 = vadd.f32 %v1329, %v1693
        %v1756 = vadd.f32 %v1330, %v1696
        %v1757 = vadd.f32 %v1331, %v1701
        %v1758 = vadd.f32 %v1332, %v1704
        %v1759 = vadd.f32 %v1333, %v1709
        %v1760 = vadd.f32 %v1334, %v1712
        %v1761 = vadd.f32 %v1335, %v1717
        %v1762 = vadd.f32 %v1336, %v1720
        %v1763 = vadd.f32 %v1337, %v1725
        %v1764 = vadd.f32 %v1338, %v1728
        %v1765 = vadd.f32 %v1339, %v1733
        %v1766 = vadd.f32 %v1340, %v1736
        %v1767 = vadd.f32 %v1341, %v1741
        %v1768 = vadd.f32 %v1342, %v1744
        %v1769 = vadd.f32 %v1343, %v1749
        %v1770 = vadd.f32 %v1344, %v1752
        %v1771 = vld [vmem:[%s1102] sm:$0xe]
        %v1772 = vld [vmem:[%s1102 + $0xc] sm:$0xe]
        %v1773 = vld [vmem:[%s1102 + $0x18] sm:$0xe]
        %v1774 = vld [vmem:[%s1102 + $0x24] sm:$0xe]
        %v1775 = vld [vmem:[%s1102 + $0x30] sm:$0xe]
        %v1776 = vld [vmem:[%s1102 + $0x3c] sm:$0xe]
        %v1777 = vld [vmem:[%s1102 + $0x48] sm:$0xe]
        %v1778 = vld [vmem:[%s1102 + $0x54] sm:$0xe]
        %v1803 = vrot.slane %v1771, 5
        %v1804 = vrot.slane %v1803, 4
        %v1805 = vrot.slane %v1346, 5
        %v1806 = vsel %vm832, %v1804, %v1805
        %v1807 = vrot.slane %v1805, 4
        %v1808 = vrot.slane %v1347, 5
        %v1809 = vsel %vm832, %v1807, %v1808
        %v1810 = vrot.slane %v1772, 5
        %v1811 = vrot.slane %v1810, 4
        %v1812 = vrot.slane %v1349, 5
        %v1813 = vsel %vm832, %v1811, %v1812
        %v1814 = vrot.slane %v1812, 4
        %v1815 = vrot.slane %v1350, 5
        %v1816 = vsel %vm832, %v1814, %v1815
        %v1817 = vrot.slane %v1773, 5
        %v1818 = vrot.slane %v1817, 4
        %v1819 = vrot.slane %v1352, 5
        %v1820 = vsel %vm832, %v1818, %v1819
        %v1821 = vrot.slane %v1819, 4
        %v1822 = vrot.slane %v1353, 5
        %v1823 = vsel %vm832, %v1821, %v1822
        %v1824 = vrot.slane %v1774, 5
        %v1825 = vrot.slane %v1824, 4
        %v1826 = vrot.slane %v1355, 5
        %v1827 = vsel %vm832, %v1825, %v1826
        %v1828 = vrot.slane %v1826, 4
        %v1829 = vrot.slane %v1356, 5
        %v1830 = vsel %vm832, %v1828, %v1829
        %v1831 = vrot.slane %v1775, 5
        %v1832 = vrot.slane %v1831, 4
        %v1833 = vrot.slane %v1358, 5
        %v1834 = vsel %vm832, %v1832, %v1833
        %v1835 = vrot.slane %v1833, 4
        %v1836 = vrot.slane %v1359, 5
        %v1837 = vsel %vm832, %v1835, %v1836
        %v1838 = vrot.slane %v1776, 5
        %v1839 = vrot.slane %v1838, 4
        %v1840 = vrot.slane %v1361, 5
        %v1841 = vsel %vm832, %v1839, %v1840
        %v1842 = vrot.slane %v1840, 4
        %v1843 = vrot.slane %v1362, 5
        %v1844 = vsel %vm832, %v1842, %v1843
        %v1845 = vrot.slane %v1777, 5
        %v1846 = vrot.slane %v1845, 4
        %v1847 = vrot.slane %v1364, 5
        %v1848 = vsel %vm832, %v1846, %v1847
        %v1849 = vrot.slane %v1847, 4
        %v1850 = vrot.slane %v1365, 5
        %v1851 = vsel %vm832, %v1849, %v1850
        %v1852 = vrot.slane %v1778, 5
        %v1853 = vrot.slane %v1852, 4
        %v1854 = vrot.slane %v1367, 5
        %v1855 = vsel %vm832, %v1853, %v1854
        %v1856 = vrot.slane %v1854, 4
        %v1857 = vrot.slane %v1368, 5
        %v1858 = vsel %vm832, %v1856, %v1857
        %s1859 = scalar_lea.vmem %s1, 320
        %v1860 = vld [vmem:[%s1859] sm:$0xf]
        %v1861 = vld [vmem:[%s1859 + $0x4] sm:$0xf]
        %v1862 = vld [vmem:[%s1859 + $0x8] sm:$0xf]
        %v1863 = vld [vmem:[%s1859 + $0xc] sm:$0xf]
        %v1864 = vld [vmem:[%s1859 + $0x10] sm:$0xf]
        %v1865 = vld [vmem:[%s1859 + $0x14] sm:$0xf]
        %v1866 = vld [vmem:[%s1859 + $0x18] sm:$0xf]
        %v1867 = vld [vmem:[%s1859 + $0x1c] sm:$0xf]
        %v1868 = vld [vmem:[%s1859 + $0x20] sm:$0xf]
        %v1869 = vld [vmem:[%s1859 + $0x24] sm:$0xf]
        %v1870 = vld [vmem:[%s1859 + $0x28] sm:$0xf]
        %v1871 = vld [vmem:[%s1859 + $0x2c] sm:$0xf]
        %v1872 = vld [vmem:[%s1859 + $0x30] sm:$0xf]
        %v1873 = vld [vmem:[%s1859 + $0x34] sm:$0xf]
        %v1874 = vld [vmem:[%s1859 + $0x38] sm:$0xf]
        %v1875 = vld [vmem:[%s1859 + $0x3c] sm:$0xf]
        %v1876 = vunpack.c.l.b16 %v1806
        %v1877 = vunpack.c.l.b16 %v1809
        %v1878 = vunpack.c.l.b16 %v1813
        %v1879 = vunpack.c.l.b16 %v1816
        %v1880 = vunpack.c.l.b16 %v1820
        %v1881 = vunpack.c.l.b16 %v1823
        %v1882 = vunpack.c.l.b16 %v1827
        %v1883 = vunpack.c.l.b16 %v1830
        %v1884 = vunpack.c.l.b16 %v1834
        %v1885 = vunpack.c.l.b16 %v1837
        %v1886 = vunpack.c.l.b16 %v1841
        %v1887 = vunpack.c.l.b16 %v1844
        %v1888 = vunpack.c.l.b16 %v1848
        %v1889 = vunpack.c.l.b16 %v1851
        %v1890 = vunpack.c.l.b16 %v1855
        %v1891 = vunpack.c.l.b16 %v1858
        %v1892 = vpack.c.b16 %v1877, %v1876
        %v1893 = vpack.c.b16 %v1879, %v1878
        %v1894 = vpack.c.b16 %v1881, %v1880
        %v1895 = vpack.c.b16 %v1883, %v1882
        %v1896 = vpack.c.b16 %v1885, %v1884
        %v1897 = vpack.c.b16 %v1887, %v1886
        %v1898 = vpack.c.b16 %v1889, %v1888
        %v1899 = vpack.c.b16 %v1891, %v1890
        %v1924 = vunpack.c.l.b16 %v1860
        %v1925 = vunpack.c.l.b16 %v1861
        %v1926 = vunpack.c.l.b16 %v1862
        %v1927 = vunpack.c.l.b16 %v1863
        %v1928 = vunpack.c.l.b16 %v1864
        %v1929 = vunpack.c.l.b16 %v1865
        %v1930 = vunpack.c.l.b16 %v1866
        %v1931 = vunpack.c.l.b16 %v1867
        %v1932 = vunpack.c.l.b16 %v1868
        %v1933 = vunpack.c.l.b16 %v1869
        %v1934 = vunpack.c.l.b16 %v1870
        %v1935 = vunpack.c.l.b16 %v1871
        %v1936 = vunpack.c.l.b16 %v1872
        %v1937 = vunpack.c.l.b16 %v1873
        %v1938 = vunpack.c.l.b16 %v1874
        %v1939 = vunpack.c.l.b16 %v1875
        %v1940 = vpack.c.b16 %v1925, %v1924
        %v1941 = vpack.c.b16 %v1927, %v1926
        %v1942 = vpack.c.b16 %v1929, %v1928
        %v1943 = vpack.c.b16 %v1931, %v1930
        %v1944 = vpack.c.b16 %v1933, %v1932
        %v1945 = vpack.c.b16 %v1935, %v1934
        %v1946 = vpack.c.b16 %v1937, %v1936
        %v1947 = vpack.c.b16 %v1939, %v1938
        %1956 = vmatprep.subr.bf16.mxu0 0
        %1957 = vmatpush1.bf16.msra.mxu0 %v1947
        %1958 = vmatprep.subr.bf16.mxu0 0
        %1959 = vmatpush1.bf16.msra.mxu0 %v1946
        %1960 = vmatprep.subr.bf16.mxu0 0
        %1961 = vmatpush1.bf16.msra.mxu0 %v1945
        %1962 = vmatprep.subr.bf16.mxu0 0
        %1963 = vmatpush1.bf16.msra.mxu0 %v1944
        %1964 = vmatprep.subr.bf16.mxu0 0
        %1965 = vmatpush1.bf16.msra.mxu0 %v1943
        %1966 = vmatprep.subr.bf16.mxu0 0
        %1967 = vmatpush1.bf16.msra.mxu0 %v1942
        %1968 = vmatprep.subr.bf16.mxu0 0
        %1969 = vmatpush1.bf16.msra.mxu0 %v1941
        %1970 = vmatprep.subr.bf16.mxu0 0
        %1971 = vmatpush1.bf16.msra.mxu0 %v1940
        %1972 = vmatprep.subr.bf16.mxu0 0
        %1973 = vmatpush2.bf16.msra.mxu0 0
        %1974 = vmatprep.subr.bf16.mxu0 0
        %1975 = vmatpush2.bf16.msra.mxu0 0
        %1976 = vmatprep.subr.bf16.mxu0 0
        %1977 = vmatpush2.bf16.msra.mxu0 0
        %1978 = vmatprep.subr.bf16.mxu0 0
        %1979 = vmatpush2.bf16.msra.mxu0 0
        %1980 = vmatprep.subr.bf16.mxu0 0
        %1981 = vmatpush2.bf16.msra.mxu0 0
        %1982 = vmatprep.subr.bf16.mxu0 0
        %1983 = vmatpush2.bf16.msra.mxu0 0
        %1984 = vmatprep.subr.bf16.mxu0 0
        %1985 = vmatpush2.bf16.msra.mxu0 0
        %1986 = vmatprep.subr.bf16.mxu0 0
        %1987 = vmatpush2.bf16.msra.mxu0 0
        %1988 = vmatprep.mubr.bf16.mxu0 0
        %1989 = vmatmul.mubr.bf16.gmra.mxu0 %v1892
        %v1990 = vpop.f32.mrf.mxu0
        %v1991 = vadd.f32 0.0, %v1990
        %v1992 = vpop.f32.mrf.mxu0
        %v1993 = vpop.f32.mrf.mxu0
        %v1994 = vadd.f32 0.0, %v1993
        %v1995 = vpop.f32.mrf.mxu0
        %1996 = vmatprep.mubr.bf16.mxu0 0
        %1997 = vmatmul.mubr.bf16.gmra.mxu0 %v1893
        %v1998 = vpop.f32.mrf.mxu0
        %v1999 = vadd.f32 0.0, %v1998
        %v2000 = vpop.f32.mrf.mxu0
        %v2001 = vpop.f32.mrf.mxu0
        %v2002 = vadd.f32 0.0, %v2001
        %v2003 = vpop.f32.mrf.mxu0
        %2004 = vmatprep.mubr.bf16.mxu0 0
        %2005 = vmatmul.mubr.bf16.gmra.mxu0 %v1894
        %v2006 = vpop.f32.mrf.mxu0
        %v2007 = vadd.f32 0.0, %v2006
        %v2008 = vpop.f32.mrf.mxu0
        %v2009 = vpop.f32.mrf.mxu0
        %v2010 = vadd.f32 0.0, %v2009
        %v2011 = vpop.f32.mrf.mxu0
        %2012 = vmatprep.mubr.bf16.mxu0 0
        %2013 = vmatmul.mubr.bf16.gmra.mxu0 %v1895
        %v2014 = vpop.f32.mrf.mxu0
        %v2015 = vadd.f32 0.0, %v2014
        %v2016 = vpop.f32.mrf.mxu0
        %v2017 = vpop.f32.mrf.mxu0
        %v2018 = vadd.f32 0.0, %v2017
        %v2019 = vpop.f32.mrf.mxu0
        %2020 = vmatprep.mubr.bf16.mxu0 0
        %2021 = vmatmul.mubr.bf16.gmra.mxu0 %v1896
        %v2022 = vpop.f32.mrf.mxu0
        %v2023 = vadd.f32 0.0, %v2022
        %v2024 = vpop.f32.mrf.mxu0
        %v2025 = vpop.f32.mrf.mxu0
        %v2026 = vadd.f32 0.0, %v2025
        %v2027 = vpop.f32.mrf.mxu0
        %2028 = vmatprep.mubr.bf16.mxu0 0
        %2029 = vmatmul.mubr.bf16.gmra.mxu0 %v1897
        %v2030 = vpop.f32.mrf.mxu0
        %v2031 = vadd.f32 0.0, %v2030
        %v2032 = vpop.f32.mrf.mxu0
        %v2033 = vpop.f32.mrf.mxu0
        %v2034 = vadd.f32 0.0, %v2033
        %v2035 = vpop.f32.mrf.mxu0
        %2036 = vmatprep.mubr.bf16.mxu0 0
        %2037 = vmatmul.mubr.bf16.gmra.mxu0 %v1898
        %v2038 = vpop.f32.mrf.mxu0
        %v2039 = vadd.f32 0.0, %v2038
        %v2040 = vpop.f32.mrf.mxu0
        %v2041 = vpop.f32.mrf.mxu0
        %v2042 = vadd.f32 0.0, %v2041
        %v2043 = vpop.f32.mrf.mxu0
        %2044 = vmatprep.mubr.bf16.mxu0 0
        %2045 = vmatmul.mubr.bf16.gmra.mxu0 %v1899
        %v2046 = vpop.f32.mrf.mxu0
        %v2047 = vadd.f32 0.0, %v2046
        %v2048 = vpop.f32.mrf.mxu0
        %v2049 = vpop.f32.mrf.mxu0
        %v2050 = vadd.f32 0.0, %v2049
        %v2051 = vpop.f32.mrf.mxu0
        %2052 = vdwg.mxu0
        %v2053 = vadd.f32 %v1755, %v1991
        %v2054 = vadd.f32 %v1756, %v1994
        %v2055 = vadd.f32 %v1757, %v1999
        %v2056 = vadd.f32 %v1758, %v2002
        %v2057 = vadd.f32 %v1759, %v2007
        %v2058 = vadd.f32 %v1760, %v2010
        %v2059 = vadd.f32 %v1761, %v2015
        %v2060 = vadd.f32 %v1762, %v2018
        %v2061 = vadd.f32 %v1763, %v2023
        %v2062 = vadd.f32 %v1764, %v2026
        %v2063 = vadd.f32 %v1765, %v2031
        %v2064 = vadd.f32 %v1766, %v2034
        %v2065 = vadd.f32 %v1767, %v2039
        %v2066 = vadd.f32 %v1768, %v2042
        %v2067 = vadd.f32 %v1769, %v2047
        %v2068 = vadd.f32 %v1770, %v2050
        %s2069 = sadd.s32 0, 2
        %s2070 = smul.u32 %s2069, 3
        %s2071 = smul.addr %s2070, 4
        %s2072 = scalar_lea.vmem %s179, %s2071
        %v2073 = vld [vmem:[%s2072] sm:$0xf]
        %v2074 = vld [vmem:[%s2072 + $0x4] sm:$0xf]
        %v2075 = vld [vmem:[%s2072 + $0xc] sm:$0xf]
        %v2076 = vld [vmem:[%s2072 + $0x10] sm:$0xf]
        %v2077 = vld [vmem:[%s2072 + $0x18] sm:$0xf]
        %v2078 = vld [vmem:[%s2072 + $0x1c] sm:$0xf]
        %v2079 = vld [vmem:[%s2072 + $0x24] sm:$0xf]
        %v2080 = vld [vmem:[%s2072 + $0x28] sm:$0xf]
        %v2081 = vld [vmem:[%s2072 + $0x30] sm:$0xf]
        %v2082 = vld [vmem:[%s2072 + $0x34] sm:$0xf]
        %v2083 = vld [vmem:[%s2072 + $0x3c] sm:$0xf]
        %v2084 = vld [vmem:[%s2072 + $0x40] sm:$0xf]
        %v2085 = vld [vmem:[%s2072 + $0x48] sm:$0xf]
        %v2086 = vld [vmem:[%s2072 + $0x4c] sm:$0xf]
        %v2087 = vld [vmem:[%s2072 + $0x54] sm:$0xf]
        %v2088 = vld [vmem:[%s2072 + $0x58] sm:$0xf]
        %s2089 = scalar_lea.vmem %s1, 384
        %v2090 = vld [vmem:[%s2089] sm:$0xf]
        %v2091 = vld [vmem:[%s2089 + $0x4] sm:$0xf]
        %v2092 = vld [vmem:[%s2089 + $0x8] sm:$0xf]
        %v2093 = vld [vmem:[%s2089 + $0xc] sm:$0xf]
        %v2094 = vld [vmem:[%s2089 + $0x10] sm:$0xf]
        %v2095 = vld [vmem:[%s2089 + $0x14] sm:$0xf]
        %v2096 = vld [vmem:[%s2089 + $0x18] sm:$0xf]
        %v2097 = vld [vmem:[%s2089 + $0x1c] sm:$0xf]
        %v2098 = vld [vmem:[%s2089 + $0x20] sm:$0xf]
        %v2099 = vld [vmem:[%s2089 + $0x24] sm:$0xf]
        %v2100 = vld [vmem:[%s2089 + $0x28] sm:$0xf]
        %v2101 = vld [vmem:[%s2089 + $0x2c] sm:$0xf]
        %v2102 = vld [vmem:[%s2089 + $0x30] sm:$0xf]
        %v2103 = vld [vmem:[%s2089 + $0x34] sm:$0xf]
        %v2104 = vld [vmem:[%s2089 + $0x38] sm:$0xf]
        %v2105 = vld [vmem:[%s2089 + $0x3c] sm:$0xf]
        %v2122 = vunpack.c.l.b16 %v2073
        %v2123 = vunpack.c.l.b16 %v2074
        %v2124 = vunpack.c.l.b16 %v2075
        %v2125 = vunpack.c.l.b16 %v2076
        %v2126 = vunpack.c.l.b16 %v2077
        %v2127 = vunpack.c.l.b16 %v2078
        %v2128 = vunpack.c.l.b16 %v2079
        %v2129 = vunpack.c.l.b16 %v2080
        %v2130 = vunpack.c.l.b16 %v2081
        %v2131 = vunpack.c.l.b16 %v2082
        %v2132 = vunpack.c.l.b16 %v2083
        %v2133 = vunpack.c.l.b16 %v2084
        %v2134 = vunpack.c.l.b16 %v2085
        %v2135 = vunpack.c.l.b16 %v2086
        %v2136 = vunpack.c.l.b16 %v2087
        %v2137 = vunpack.c.l.b16 %v2088
        %v2138 = vpack.c.b16 %v2123, %v2122
        %v2139 = vpack.c.b16 %v2125, %v2124
        %v2140 = vpack.c.b16 %v2127, %v2126
        %v2141 = vpack.c.b16 %v2129, %v2128
        %v2142 = vpack.c.b16 %v2131, %v2130
        %v2143 = vpack.c.b16 %v2133, %v2132
        %v2144 = vpack.c.b16 %v2135, %v2134
        %v2145 = vpack.c.b16 %v2137, %v2136
        %v2170 = vunpack.c.l.b16 %v2090
        %v2171 = vunpack.c.l.b16 %v2091
        %v2172 = vunpack.c.l.b16 %v2092
        %v2173 = vunpack.c.l.b16 %v2093
        %v2174 = vunpack.c.l.b16 %v2094
        %v2175 = vunpack.c.l.b16 %v2095
        %v2176 = vunpack.c.l.b16 %v2096
        %v2177 = vunpack.c.l.b16 %v2097
        %v2178 = vunpack.c.l.b16 %v2098
        %v2179 = vunpack.c.l.b16 %v2099
        %v2180 = vunpack.c.l.b16 %v2100
        %v2181 = vunpack.c.l.b16 %v2101
        %v2182 = vunpack.c.l.b16 %v2102
        %v2183 = vunpack.c.l.b16 %v2103
        %v2184 = vunpack.c.l.b16 %v2104
        %v2185 = vunpack.c.l.b16 %v2105
        %v2186 = vpack.c.b16 %v2171, %v2170
        %v2187 = vpack.c.b16 %v2173, %v2172
        %v2188 = vpack.c.b16 %v2175, %v2174
        %v2189 = vpack.c.b16 %v2177, %v2176
        %v2190 = vpack.c.b16 %v2179, %v2178
        %v2191 = vpack.c.b16 %v2181, %v2180
        %v2192 = vpack.c.b16 %v2183, %v2182
        %v2193 = vpack.c.b16 %v2185, %v2184
        %2202 = vmatprep.subr.bf16.mxu0 0
        %2203 = vmatpush1.bf16.msra.mxu0 %v2193
        %2204 = vmatprep.subr.bf16.mxu0 0
        %2205 = vmatpush1.bf16.msra.mxu0 %v2192
        %2206 = vmatprep.subr.bf16.mxu0 0
        %2207 = vmatpush1.bf16.msra.mxu0 %v2191
        %2208 = vmatprep.subr.bf16.mxu0 0
        %2209 = vmatpush1.bf16.msra.mxu0 %v2190
        %2210 = vmatprep.subr.bf16.mxu0 0
        %2211 = vmatpush1.bf16.msra.mxu0 %v2189
        %2212 = vmatprep.subr.bf16.mxu0 0
        %2213 = vmatpush1.bf16.msra.mxu0 %v2188
        %2214 = vmatprep.subr.bf16.mxu0 0
        %2215 = vmatpush1.bf16.msra.mxu0 %v2187
        %2216 = vmatprep.subr.bf16.mxu0 0
        %2217 = vmatpush1.bf16.msra.mxu0 %v2186
        %2218 = vmatprep.subr.bf16.mxu0 0
        %2219 = vmatpush2.bf16.msra.mxu0 0
        %2220 = vmatprep.subr.bf16.mxu0 0
        %2221 = vmatpush2.bf16.msra.mxu0 0
        %2222 = vmatprep.subr.bf16.mxu0 0
        %2223 = vmatpush2.bf16.msra.mxu0 0
        %2224 = vmatprep.subr.bf16.mxu0 0
        %2225 = vmatpush2.bf16.msra.mxu0 0
        %2226 = vmatprep.subr.bf16.mxu0 0
        %2227 = vmatpush2.bf16.msra.mxu0 0
        %2228 = vmatprep.subr.bf16.mxu0 0
        %2229 = vmatpush2.bf16.msra.mxu0 0
        %2230 = vmatprep.subr.bf16.mxu0 0
        %2231 = vmatpush2.bf16.msra.mxu0 0
        %2232 = vmatprep.subr.bf16.mxu0 0
        %2233 = vmatpush2.bf16.msra.mxu0 0
        %2234 = vmatprep.mubr.bf16.mxu0 0
        %2235 = vmatmul.mubr.bf16.gmra.mxu0 %v2138
        %v2236 = vpop.f32.mrf.mxu0
        %v2237 = vadd.f32 0.0, %v2236
        %v2238 = vpop.f32.mrf.mxu0
        %v2239 = vpop.f32.mrf.mxu0
        %v2240 = vadd.f32 0.0, %v2239
        %v2241 = vpop.f32.mrf.mxu0
        %2242 = vmatprep.mubr.bf16.mxu0 0
        %2243 = vmatmul.mubr.bf16.gmra.mxu0 %v2139
        %v2244 = vpop.f32.mrf.mxu0
        %v2245 = vadd.f32 0.0, %v2244
        %v2246 = vpop.f32.mrf.mxu0
        %v2247 = vpop.f32.mrf.mxu0
        %v2248 = vadd.f32 0.0, %v2247
        %v2249 = vpop.f32.mrf.mxu0
        %2250 = vmatprep.mubr.bf16.mxu0 0
        %2251 = vmatmul.mubr.bf16.gmra.mxu0 %v2140
        %v2252 = vpop.f32.mrf.mxu0
        %v2253 = vadd.f32 0.0, %v2252
        %v2254 = vpop.f32.mrf.mxu0
        %v2255 = vpop.f32.mrf.mxu0
        %v2256 = vadd.f32 0.0, %v2255
        %v2257 = vpop.f32.mrf.mxu0
        %2258 = vmatprep.mubr.bf16.mxu0 0
        %2259 = vmatmul.mubr.bf16.gmra.mxu0 %v2141
        %v2260 = vpop.f32.mrf.mxu0
        %v2261 = vadd.f32 0.0, %v2260
        %v2262 = vpop.f32.mrf.mxu0
        %v2263 = vpop.f32.mrf.mxu0
        %v2264 = vadd.f32 0.0, %v2263
        %v2265 = vpop.f32.mrf.mxu0
        %2266 = vmatprep.mubr.bf16.mxu0 0
        %2267 = vmatmul.mubr.bf16.gmra.mxu0 %v2142
        %v2268 = vpop.f32.mrf.mxu0
        %v2269 = vadd.f32 0.0, %v2268
        %v2270 = vpop.f32.mrf.mxu0
        %v2271 = vpop.f32.mrf.mxu0
        %v2272 = vadd.f32 0.0, %v2271
        %v2273 = vpop.f32.mrf.mxu0
        %2274 = vmatprep.mubr.bf16.mxu0 0
        %2275 = vmatmul.mubr.bf16.gmra.mxu0 %v2143
        %v2276 = vpop.f32.mrf.mxu0
        %v2277 = vadd.f32 0.0, %v2276
        %v2278 = vpop.f32.mrf.mxu0
        %v2279 = vpop.f32.mrf.mxu0
        %v2280 = vadd.f32 0.0, %v2279
        %v2281 = vpop.f32.mrf.mxu0
        %2282 = vmatprep.mubr.bf16.mxu0 0
        %2283 = vmatmul.mubr.bf16.gmra.mxu0 %v2144
        %v2284 = vpop.f32.mrf.mxu0
        %v2285 = vadd.f32 0.0, %v2284
        %v2286 = vpop.f32.mrf.mxu0
        %v2287 = vpop.f32.mrf.mxu0
        %v2288 = vadd.f32 0.0, %v2287
        %v2289 = vpop.f32.mrf.mxu0
        %2290 = vmatprep.mubr.bf16.mxu0 0
        %2291 = vmatmul.mubr.bf16.gmra.mxu0 %v2145
        %v2292 = vpop.f32.mrf.mxu0
        %v2293 = vadd.f32 0.0, %v2292
        %v2294 = vpop.f32.mrf.mxu0
        %v2295 = vpop.f32.mrf.mxu0
        %v2296 = vadd.f32 0.0, %v2295
        %v2297 = vpop.f32.mrf.mxu0
        %2298 = vdwg.mxu0
        %v2299 = vadd.f32 %v2053, %v2237
        %v2300 = vadd.f32 %v2054, %v2240
        %v2301 = vadd.f32 %v2055, %v2245
        %v2302 = vadd.f32 %v2056, %v2248
        %v2303 = vadd.f32 %v2057, %v2253
        %v2304 = vadd.f32 %v2058, %v2256
        %v2305 = vadd.f32 %v2059, %v2261
        %v2306 = vadd.f32 %v2060, %v2264
        %v2307 = vadd.f32 %v2061, %v2269
        %v2308 = vadd.f32 %v2062, %v2272
        %v2309 = vadd.f32 %v2063, %v2277
        %v2310 = vadd.f32 %v2064, %v2280
        %v2311 = vadd.f32 %v2065, %v2285
        %v2312 = vadd.f32 %v2066, %v2288
        %v2313 = vadd.f32 %v2067, %v2293
        %v2314 = vadd.f32 %v2068, %v2296
        %v2315 = vld [vmem:[%s2072] sm:$0xf]
        %v2316 = vld [vmem:[%s2072 + $0x4] sm:$0xf]
        %v2317 = vld [vmem:[%s2072 + $0x8] sm:$0x1]
        %v2318 = vld [vmem:[%s2072 + $0xc] sm:$0xf]
        %v2319 = vld [vmem:[%s2072 + $0x10] sm:$0xf]
        %v2320 = vld [vmem:[%s2072 + $0x14] sm:$0x1]
        %v2321 = vld [vmem:[%s2072 + $0x18] sm:$0xf]
        %v2322 = vld [vmem:[%s2072 + $0x1c] sm:$0xf]
        %v2323 = vld [vmem:[%s2072 + $0x20] sm:$0x1]
        %v2324 = vld [vmem:[%s2072 + $0x24] sm:$0xf]
        %v2325 = vld [vmem:[%s2072 + $0x28] sm:$0xf]
        %v2326 = vld [vmem:[%s2072 + $0x2c] sm:$0x1]
        %v2327 = vld [vmem:[%s2072 + $0x30] sm:$0xf]
        %v2328 = vld [vmem:[%s2072 + $0x34] sm:$0xf]
        %v2329 = vld [vmem:[%s2072 + $0x38] sm:$0x1]
        %v2330 = vld [vmem:[%s2072 + $0x3c] sm:$0xf]
        %v2331 = vld [vmem:[%s2072 + $0x40] sm:$0xf]
        %v2332 = vld [vmem:[%s2072 + $0x44] sm:$0x1]
        %v2333 = vld [vmem:[%s2072 + $0x48] sm:$0xf]
        %v2334 = vld [vmem:[%s2072 + $0x4c] sm:$0xf]
        %v2335 = vld [vmem:[%s2072 + $0x50] sm:$0x1]
        %v2336 = vld [vmem:[%s2072 + $0x54] sm:$0xf]
        %v2337 = vld [vmem:[%s2072 + $0x58] sm:$0xf]
        %v2338 = vld [vmem:[%s2072 + $0x5c] sm:$0x1]
        %v2340 = vshrl.u32 %v2315, 16
        %v2342 = vrot.slane %v2340, 4
        %v2343 = vshll.u32 %v2315, 16
        %v2345 = vrot.slane %v2343, 5
        %v2346 = vor.u32 %v2342, %v2345
        %v2347 = vrot.slane %v2346, 4
        %v2349 = vshll.u32 %v2316, 16
        %v2351 = vrot.slane %v2349, 5
        %v2352 = vsel %vm226, %v2347, %v2351
        %v2353 = vshrl.u32 %v2316, 16
        %v2355 = vrot.slane %v2353, 4
        %v2356 = vor.u32 %v2355, %v2351
        %v2357 = vrot.slane %v2356, 4
        %v2359 = vshll.u32 %v2317, 16
        %v2361 = vrot.slane %v2359, 5
        %v2362 = vsel %vm226, %v2357, %v2361
        %v2364 = vshrl.u32 %v2318, 16
        %v2366 = vrot.slane %v2364, 4
        %v2367 = vshll.u32 %v2318, 16
        %v2369 = vrot.slane %v2367, 5
        %v2370 = vor.u32 %v2366, %v2369
        %v2371 = vrot.slane %v2370, 4
        %v2373 = vshll.u32 %v2319, 16
        %v2375 = vrot.slane %v2373, 5
        %v2376 = vsel %vm226, %v2371, %v2375
        %v2377 = vshrl.u32 %v2319, 16
        %v2379 = vrot.slane %v2377, 4
        %v2380 = vor.u32 %v2379, %v2375
        %v2381 = vrot.slane %v2380, 4
        %v2383 = vshll.u32 %v2320, 16
        %v2385 = vrot.slane %v2383, 5
        %v2386 = vsel %vm226, %v2381, %v2385
        %v2388 = vshrl.u32 %v2321, 16
        %v2390 = vrot.slane %v2388, 4
        %v2391 = vshll.u32 %v2321, 16
        %v2393 = vrot.slane %v2391, 5
        %v2394 = vor.u32 %v2390, %v2393
        %v2395 = vrot.slane %v2394, 4
        %v2397 = vshll.u32 %v2322, 16
        %v2399 = vrot.slane %v2397, 5
        %v2400 = vsel %vm226, %v2395, %v2399
        %v2401 = vshrl.u32 %v2322, 16
        %v2403 = vrot.slane %v2401, 4
        %v2404 = vor.u32 %v2403, %v2399
        %v2405 = vrot.slane %v2404, 4
        %v2407 = vshll.u32 %v2323, 16
        %v2409 = vrot.slane %v2407, 5
        %v2410 = vsel %vm226, %v2405, %v2409
        %v2412 = vshrl.u32 %v2324, 16
        %v2414 = vrot.slane %v2412, 4
        %v2415 = vshll.u32 %v2324, 16
        %v2417 = vrot.slane %v2415, 5
        %v2418 = vor.u32 %v2414, %v2417
        %v2419 = vrot.slane %v2418, 4
        %v2421 = vshll.u32 %v2325, 16
        %v2423 = vrot.slane %v2421, 5
        %v2424 = vsel %vm226, %v2419, %v2423
        %v2425 = vshrl.u32 %v2325, 16
        %v2427 = vrot.slane %v2425, 4
        %v2428 = vor.u32 %v2427, %v2423
        %v2429 = vrot.slane %v2428, 4
        %v2431 = vshll.u32 %v2326, 16
        %v2433 = vrot.slane %v2431, 5
        %v2434 = vsel %vm226, %v2429, %v2433
        %v2436 = vshrl.u32 %v2327, 16
        %v2438 = vrot.slane %v2436, 4
        %v2439 = vshll.u32 %v2327, 16
        %v2441 = vrot.slane %v2439, 5
        %v2442 = vor.u32 %v2438, %v2441
        %v2443 = vrot.slane %v2442, 4
        %v2445 = vshll.u32 %v2328, 16
        %v2447 = vrot.slane %v2445, 5
        %v2448 = vsel %vm226, %v2443, %v2447
        %v2449 = vshrl.u32 %v2328, 16
        %v2451 = vrot.slane %v2449, 4
        %v2452 = vor.u32 %v2451, %v2447
        %v2453 = vrot.slane %v2452, 4
        %v2455 = vshll.u32 %v2329, 16
        %v2457 = vrot.slane %v2455, 5
        %v2458 = vsel %vm226, %v2453, %v2457
        %v2460 = vshrl.u32 %v2330, 16
        %v2462 = vrot.slane %v2460, 4
        %v2463 = vshll.u32 %v2330, 16
        %v2465 = vrot.slane %v2463, 5
        %v2466 = vor.u32 %v2462, %v2465
        %v2467 = vrot.slane %v2466, 4
        %v2469 = vshll.u32 %v2331, 16
        %v2471 = vrot.slane %v2469, 5
        %v2472 = vsel %vm226, %v2467, %v2471
        %v2473 = vshrl.u32 %v2331, 16
        %v2475 = vrot.slane %v2473, 4
        %v2476 = vor.u32 %v2475, %v2471
        %v2477 = vrot.slane %v2476, 4
        %v2479 = vshll.u32 %v2332, 16
        %v2481 = vrot.slane %v2479, 5
        %v2482 = vsel %vm226, %v2477, %v2481
        %v2484 = vshrl.u32 %v2333, 16
        %v2486 = vrot.slane %v2484, 4
        %v2487 = vshll.u32 %v2333, 16
        %v2489 = vrot.slane %v2487, 5
        %v2490 = vor.u32 %v2486, %v2489
        %v2491 = vrot.slane %v2490, 4
        %v2493 = vshll.u32 %v2334, 16
        %v2495 = vrot.slane %v2493, 5
        %v2496 = vsel %vm226, %v2491, %v2495
        %v2497 = vshrl.u32 %v2334, 16
        %v2499 = vrot.slane %v2497, 4
        %v2500 = vor.u32 %v2499, %v2495
        %v2501 = vrot.slane %v2500, 4
        %v2503 = vshll.u32 %v2335, 16
        %v2505 = vrot.slane %v2503, 5
        %v2506 = vsel %vm226, %v2501, %v2505
        %v2508 = vshrl.u32 %v2336, 16
        %v2510 = vrot.slane %v2508, 4
        %v2511 = vshll.u32 %v2336, 16
        %v2513 = vrot.slane %v2511, 5
        %v2514 = vor.u32 %v2510, %v2513
        %v2515 = vrot.slane %v2514, 4
        %v2517 = vshll.u32 %v2337, 16
        %v2519 = vrot.slane %v2517, 5
        %v2520 = vsel %vm226, %v2515, %v2519
        %v2521 = vshrl.u32 %v2337, 16
        %v2523 = vrot.slane %v2521, 4
        %v2524 = vor.u32 %v2523, %v2519
        %v2525 = vrot.slane %v2524, 4
        %v2527 = vshll.u32 %v2338, 16
        %v2529 = vrot.slane %v2527, 5
        %v2530 = vsel %vm226, %v2525, %v2529
        %s2531 = scalar_lea.vmem %s1, 448
        %v2532 = vld [vmem:[%s2531] sm:$0xf]
        %v2533 = vld [vmem:[%s2531 + $0x4] sm:$0xf]
        %v2534 = vld [vmem:[%s2531 + $0x8] sm:$0xf]
        %v2535 = vld [vmem:[%s2531 + $0xc] sm:$0xf]
        %v2536 = vld [vmem:[%s2531 + $0x10] sm:$0xf]
        %v2537 = vld [vmem:[%s2531 + $0x14] sm:$0xf]
        %v2538 = vld [vmem:[%s2531 + $0x18] sm:$0xf]
        %v2539 = vld [vmem:[%s2531 + $0x1c] sm:$0xf]
        %v2540 = vld [vmem:[%s2531 + $0x20] sm:$0xf]
        %v2541 = vld [vmem:[%s2531 + $0x24] sm:$0xf]
        %v2542 = vld [vmem:[%s2531 + $0x28] sm:$0xf]
        %v2543 = vld [vmem:[%s2531 + $0x2c] sm:$0xf]
        %v2544 = vld [vmem:[%s2531 + $0x30] sm:$0xf]
        %v2545 = vld [vmem:[%s2531 + $0x34] sm:$0xf]
        %v2546 = vld [vmem:[%s2531 + $0x38] sm:$0xf]
        %v2547 = vld [vmem:[%s2531 + $0x3c] sm:$0xf]
        %v2548 = vunpack.c.l.b16 %v2352
        %v2549 = vunpack.c.l.b16 %v2362
        %v2550 = vunpack.c.l.b16 %v2376
        %v2551 = vunpack.c.l.b16 %v2386
        %v2552 = vunpack.c.l.b16 %v2400
        %v2553 = vunpack.c.l.b16 %v2410
        %v2554 = vunpack.c.l.b16 %v2424
        %v2555 = vunpack.c.l.b16 %v2434
        %v2556 = vunpack.c.l.b16 %v2448
        %v2557 = vunpack.c.l.b16 %v2458
        %v2558 = vunpack.c.l.b16 %v2472
        %v2559 = vunpack.c.l.b16 %v2482
        %v2560 = vunpack.c.l.b16 %v2496
        %v2561 = vunpack.c.l.b16 %v2506
        %v2562 = vunpack.c.l.b16 %v2520
        %v2563 = vunpack.c.l.b16 %v2530
        %v2564 = vpack.c.b16 %v2549, %v2548
        %v2565 = vpack.c.b16 %v2551, %v2550
        %v2566 = vpack.c.b16 %v2553, %v2552
        %v2567 = vpack.c.b16 %v2555, %v2554
        %v2568 = vpack.c.b16 %v2557, %v2556
        %v2569 = vpack.c.b16 %v2559, %v2558
        %v2570 = vpack.c.b16 %v2561, %v2560
        %v2571 = vpack.c.b16 %v2563, %v2562
        %v2596 = vunpack.c.l.b16 %v2532
        %v2597 = vunpack.c.l.b16 %v2533
        %v2598 = vunpack.c.l.b16 %v2534
        %v2599 = vunpack.c.l.b16 %v2535
        %v2600 = vunpack.c.l.b16 %v2536
        %v2601 = vunpack.c.l.b16 %v2537
        %v2602 = vunpack.c.l.b16 %v2538
        %v2603 = vunpack.c.l.b16 %v2539
        %v2604 = vunpack.c.l.b16 %v2540
        %v2605 = vunpack.c.l.b16 %v2541
        %v2606 = vunpack.c.l.b16 %v2542
        %v2607 = vunpack.c.l.b16 %v2543
        %v2608 = vunpack.c.l.b16 %v2544
        %v2609 = vunpack.c.l.b16 %v2545
        %v2610 = vunpack.c.l.b16 %v2546
        %v2611 = vunpack.c.l.b16 %v2547
        %v2612 = vpack.c.b16 %v2597, %v2596
        %v2613 = vpack.c.b16 %v2599, %v2598
        %v2614 = vpack.c.b16 %v2601, %v2600
        %v2615 = vpack.c.b16 %v2603, %v2602
        %v2616 = vpack.c.b16 %v2605, %v2604
        %v2617 = vpack.c.b16 %v2607, %v2606
        %v2618 = vpack.c.b16 %v2609, %v2608
        %v2619 = vpack.c.b16 %v2611, %v2610
        %2628 = vmatprep.subr.bf16.mxu0 0
        %2629 = vmatpush1.bf16.msra.mxu0 %v2619
        %2630 = vmatprep.subr.bf16.mxu0 0
        %2631 = vmatpush1.bf16.msra.mxu0 %v2618
        %2632 = vmatprep.subr.bf16.mxu0 0
        %2633 = vmatpush1.bf16.msra.mxu0 %v2617
        %2634 = vmatprep.subr.bf16.mxu0 0
        %2635 = vmatpush1.bf16.msra.mxu0 %v2616
        %2636 = vmatprep.subr.bf16.mxu0 0
        %2637 = vmatpush1.bf16.msra.mxu0 %v2615
        %2638 = vmatprep.subr.bf16.mxu0 0
        %2639 = vmatpush1.bf16.msra.mxu0 %v2614
        %2640 = vmatprep.subr.bf16.mxu0 0
        %2641 = vmatpush1.bf16.msra.mxu0 %v2613
        %2642 = vmatprep.subr.bf16.mxu0 0
        %2643 = vmatpush1.bf16.msra.mxu0 %v2612
        %2644 = vmatprep.subr.bf16.mxu0 0
        %2645 = vmatpush2.bf16.msra.mxu0 0
        %2646 = vmatprep.subr.bf16.mxu0 0
        %2647 = vmatpush2.bf16.msra.mxu0 0
        %2648 = vmatprep.subr.bf16.mxu0 0
        %2649 = vmatpush2.bf16.msra.mxu0 0
        %2650 = vmatprep.subr.bf16.mxu0 0
        %2651 = vmatpush2.bf16.msra.mxu0 0
        %2652 = vmatprep.subr.bf16.mxu0 0
        %2653 = vmatpush2.bf16.msra.mxu0 0
        %2654 = vmatprep.subr.bf16.mxu0 0
        %2655 = vmatpush2.bf16.msra.mxu0 0
        %2656 = vmatprep.subr.bf16.mxu0 0
        %2657 = vmatpush2.bf16.msra.mxu0 0
        %2658 = vmatprep.subr.bf16.mxu0 0
        %2659 = vmatpush2.bf16.msra.mxu0 0
        %2660 = vmatprep.mubr.bf16.mxu0 0
        %2661 = vmatmul.mubr.bf16.gmra.mxu0 %v2564
        %v2662 = vpop.f32.mrf.mxu0
        %v2663 = vadd.f32 0.0, %v2662
        %v2664 = vpop.f32.mrf.mxu0
        %v2665 = vpop.f32.mrf.mxu0
        %v2666 = vadd.f32 0.0, %v2665
        %v2667 = vpop.f32.mrf.mxu0
        %2668 = vmatprep.mubr.bf16.mxu0 0
        %2669 = vmatmul.mubr.bf16.gmra.mxu0 %v2565
        %v2670 = vpop.f32.mrf.mxu0
        %v2671 = vadd.f32 0.0, %v2670
        %v2672 = vpop.f32.mrf.mxu0
        %v2673 = vpop.f32.mrf.mxu0
        %v2674 = vadd.f32 0.0, %v2673
        %v2675 = vpop.f32.mrf.mxu0
        %2676 = vmatprep.mubr.bf16.mxu0 0
        %2677 = vmatmul.mubr.bf16.gmra.mxu0 %v2566
        %v2678 = vpop.f32.mrf.mxu0
        %v2679 = vadd.f32 0.0, %v2678
        %v2680 = vpop.f32.mrf.mxu0
        %v2681 = vpop.f32.mrf.mxu0
        %v2682 = vadd.f32 0.0, %v2681
        %v2683 = vpop.f32.mrf.mxu0
        %2684 = vmatprep.mubr.bf16.mxu0 0
        %2685 = vmatmul.mubr.bf16.gmra.mxu0 %v2567
        %v2686 = vpop.f32.mrf.mxu0
        %v2687 = vadd.f32 0.0, %v2686
        %v2688 = vpop.f32.mrf.mxu0
        %v2689 = vpop.f32.mrf.mxu0
        %v2690 = vadd.f32 0.0, %v2689
        %v2691 = vpop.f32.mrf.mxu0
        %2692 = vmatprep.mubr.bf16.mxu0 0
        %2693 = vmatmul.mubr.bf16.gmra.mxu0 %v2568
        %v2694 = vpop.f32.mrf.mxu0
        %v2695 = vadd.f32 0.0, %v2694
        %v2696 = vpop.f32.mrf.mxu0
        %v2697 = vpop.f32.mrf.mxu0
        %v2698 = vadd.f32 0.0, %v2697
        %v2699 = vpop.f32.mrf.mxu0
        %2700 = vmatprep.mubr.bf16.mxu0 0
        %2701 = vmatmul.mubr.bf16.gmra.mxu0 %v2569
        %v2702 = vpop.f32.mrf.mxu0
        %v2703 = vadd.f32 0.0, %v2702
        %v2704 = vpop.f32.mrf.mxu0
        %v2705 = vpop.f32.mrf.mxu0
        %v2706 = vadd.f32 0.0, %v2705
        %v2707 = vpop.f32.mrf.mxu0
        %2708 = vmatprep.mubr.bf16.mxu0 0
        %2709 = vmatmul.mubr.bf16.gmra.mxu0 %v2570
        %v2710 = vpop.f32.mrf.mxu0
        %v2711 = vadd.f32 0.0, %v2710
        %v2712 = vpop.f32.mrf.mxu0
        %v2713 = vpop.f32.mrf.mxu0
        %v2714 = vadd.f32 0.0, %v2713
        %v2715 = vpop.f32.mrf.mxu0
        %2716 = vmatprep.mubr.bf16.mxu0 0
        %2717 = vmatmul.mubr.bf16.gmra.mxu0 %v2571
        %v2718 = vpop.f32.mrf.mxu0
        %v2719 = vadd.f32 0.0, %v2718
        %v2720 = vpop.f32.mrf.mxu0
        %v2721 = vpop.f32.mrf.mxu0
        %v2722 = vadd.f32 0.0, %v2721
        %v2723 = vpop.f32.mrf.mxu0
        %2724 = vdwg.mxu0
        %v2725 = vadd.f32 %v2299, %v2663
        %v2726 = vadd.f32 %v2300, %v2666
        %v2727 = vadd.f32 %v2301, %v2671
        %v2728 = vadd.f32 %v2302, %v2674
        %v2729 = vadd.f32 %v2303, %v2679
        %v2730 = vadd.f32 %v2304, %v2682
        %v2731 = vadd.f32 %v2305, %v2687
        %v2732 = vadd.f32 %v2306, %v2690
        %v2733 = vadd.f32 %v2307, %v2695
        %v2734 = vadd.f32 %v2308, %v2698
        %v2735 = vadd.f32 %v2309, %v2703
        %v2736 = vadd.f32 %v2310, %v2706
        %v2737 = vadd.f32 %v2311, %v2711
        %v2738 = vadd.f32 %v2312, %v2714
        %v2739 = vadd.f32 %v2313, %v2719
        %v2740 = vadd.f32 %v2314, %v2722
        %v2741 = vld [vmem:[%s2072] sm:$0xe]
        %v2742 = vld [vmem:[%s2072 + $0xc] sm:$0xe]
        %v2743 = vld [vmem:[%s2072 + $0x18] sm:$0xe]
        %v2744 = vld [vmem:[%s2072 + $0x24] sm:$0xe]
        %v2745 = vld [vmem:[%s2072 + $0x30] sm:$0xe]
        %v2746 = vld [vmem:[%s2072 + $0x3c] sm:$0xe]
        %v2747 = vld [vmem:[%s2072 + $0x48] sm:$0xe]
        %v2748 = vld [vmem:[%s2072 + $0x54] sm:$0xe]
        %v2773 = vrot.slane %v2741, 5
        %v2774 = vrot.slane %v2773, 4
        %v2775 = vrot.slane %v2316, 5
        %v2776 = vsel %vm832, %v2774, %v2775
        %v2777 = vrot.slane %v2775, 4
        %v2778 = vrot.slane %v2317, 5
        %v2779 = vsel %vm832, %v2777, %v2778
        %v2780 = vrot.slane %v2742, 5
        %v2781 = vrot.slane %v2780, 4
        %v2782 = vrot.slane %v2319, 5
        %v2783 = vsel %vm832, %v2781, %v2782
        %v2784 = vrot.slane %v2782, 4
        %v2785 = vrot.slane %v2320, 5
        %v2786 = vsel %vm832, %v2784, %v2785
        %v2787 = vrot.slane %v2743, 5
        %v2788 = vrot.slane %v2787, 4
        %v2789 = vrot.slane %v2322, 5
        %v2790 = vsel %vm832, %v2788, %v2789
        %v2791 = vrot.slane %v2789, 4
        %v2792 = vrot.slane %v2323, 5
        %v2793 = vsel %vm832, %v2791, %v2792
        %v2794 = vrot.slane %v2744, 5
        %v2795 = vrot.slane %v2794, 4
        %v2796 = vrot.slane %v2325, 5
        %v2797 = vsel %vm832, %v2795, %v2796
        %v2798 = vrot.slane %v2796, 4
        %v2799 = vrot.slane %v2326, 5
        %v2800 = vsel %vm832, %v2798, %v2799
        %v2801 = vrot.slane %v2745, 5
        %v2802 = vrot.slane %v2801, 4
        %v2803 = vrot.slane %v2328, 5
        %v2804 = vsel %vm832, %v2802, %v2803
        %v2805 = vrot.slane %v2803, 4
        %v2806 = vrot.slane %v2329, 5
        %v2807 = vsel %vm832, %v2805, %v2806
        %v2808 = vrot.slane %v2746, 5
        %v2809 = vrot.slane %v2808, 4
        %v2810 = vrot.slane %v2331, 5
        %v2811 = vsel %vm832, %v2809, %v2810
        %v2812 = vrot.slane %v2810, 4
        %v2813 = vrot.slane %v2332, 5
        %v2814 = vsel %vm832, %v2812, %v2813
        %v2815 = vrot.slane %v2747, 5
        %v2816 = vrot.slane %v2815, 4
        %v2817 = vrot.slane %v2334, 5
        %v2818 = vsel %vm832, %v2816, %v2817
        %v2819 = vrot.slane %v2817, 4
        %v2820 = vrot.slane %v2335, 5
        %v2821 = vsel %vm832, %v2819, %v2820
        %v2822 = vrot.slane %v2748, 5
        %v2823 = vrot.slane %v2822, 4
        %v2824 = vrot.slane %v2337, 5
        %v2825 = vsel %vm832, %v2823, %v2824
        %v2826 = vrot.slane %v2824, 4
        %v2827 = vrot.slane %v2338, 5
        %v2828 = vsel %vm832, %v2826, %v2827
        %s2829 = scalar_lea.vmem %s1, 512
        %v2830 = vld [vmem:[%s2829] sm:$0xf]
        %v2831 = vld [vmem:[%s2829 + $0x4] sm:$0xf]
        %v2832 = vld [vmem:[%s2829 + $0x8] sm:$0xf]
        %v2833 = vld [vmem:[%s2829 + $0xc] sm:$0xf]
        %v2834 = vld [vmem:[%s2829 + $0x10] sm:$0xf]
        %v2835 = vld [vmem:[%s2829 + $0x14] sm:$0xf]
        %v2836 = vld [vmem:[%s2829 + $0x18] sm:$0xf]
        %v2837 = vld [vmem:[%s2829 + $0x1c] sm:$0xf]
        %v2838 = vld [vmem:[%s2829 + $0x20] sm:$0xf]
        %v2839 = vld [vmem:[%s2829 + $0x24] sm:$0xf]
        %v2840 = vld [vmem:[%s2829 + $0x28] sm:$0xf]
        %v2841 = vld [vmem:[%s2829 + $0x2c] sm:$0xf]
        %v2842 = vld [vmem:[%s2829 + $0x30] sm:$0xf]
        %v2843 = vld [vmem:[%s2829 + $0x34] sm:$0xf]
        %v2844 = vld [vmem:[%s2829 + $0x38] sm:$0xf]
        %v2845 = vld [vmem:[%s2829 + $0x3c] sm:$0xf]
        %v2846 = vunpack.c.l.b16 %v2776
        %v2847 = vunpack.c.l.b16 %v2779
        %v2848 = vunpack.c.l.b16 %v2783
        %v2849 = vunpack.c.l.b16 %v2786
        %v2850 = vunpack.c.l.b16 %v2790
        %v2851 = vunpack.c.l.b16 %v2793
        %v2852 = vunpack.c.l.b16 %v2797
        %v2853 = vunpack.c.l.b16 %v2800
        %v2854 = vunpack.c.l.b16 %v2804
        %v2855 = vunpack.c.l.b16 %v2807
        %v2856 = vunpack.c.l.b16 %v2811
        %v2857 = vunpack.c.l.b16 %v2814
        %v2858 = vunpack.c.l.b16 %v2818
        %v2859 = vunpack.c.l.b16 %v2821
        %v2860 = vunpack.c.l.b16 %v2825
        %v2861 = vunpack.c.l.b16 %v2828
        %v2862 = vpack.c.b16 %v2847, %v2846
        %v2863 = vpack.c.b16 %v2849, %v2848
        %v2864 = vpack.c.b16 %v2851, %v2850
        %v2865 = vpack.c.b16 %v2853, %v2852
        %v2866 = vpack.c.b16 %v2855, %v2854
        %v2867 = vpack.c.b16 %v2857, %v2856
        %v2868 = vpack.c.b16 %v2859, %v2858
        %v2869 = vpack.c.b16 %v2861, %v2860
        %v2894 = vunpack.c.l.b16 %v2830
        %v2895 = vunpack.c.l.b16 %v2831
        %v2896 = vunpack.c.l.b16 %v2832
        %v2897 = vunpack.c.l.b16 %v2833
        %v2898 = vunpack.c.l.b16 %v2834
        %v2899 = vunpack.c.l.b16 %v2835
        %v2900 = vunpack.c.l.b16 %v2836
        %v2901 = vunpack.c.l.b16 %v2837
        %v2902 = vunpack.c.l.b16 %v2838
        %v2903 = vunpack.c.l.b16 %v2839
        %v2904 = vunpack.c.l.b16 %v2840
        %v2905 = vunpack.c.l.b16 %v2841
        %v2906 = vunpack.c.l.b16 %v2842
        %v2907 = vunpack.c.l.b16 %v2843
        %v2908 = vunpack.c.l.b16 %v2844
        %v2909 = vunpack.c.l.b16 %v2845
        %v2910 = vpack.c.b16 %v2895, %v2894
        %v2911 = vpack.c.b16 %v2897, %v2896
        %v2912 = vpack.c.b16 %v2899, %v2898
        %v2913 = vpack.c.b16 %v2901, %v2900
        %v2914 = vpack.c.b16 %v2903, %v2902
        %v2915 = vpack.c.b16 %v2905, %v2904
        %v2916 = vpack.c.b16 %v2907, %v2906
        %v2917 = vpack.c.b16 %v2909, %v2908
        %2926 = vmatprep.subr.bf16.mxu0 0
        %2927 = vmatpush1.bf16.msra.mxu0 %v2917
        %2928 = vmatprep.subr.bf16.mxu0 0
        %2929 = vmatpush1.bf16.msra.mxu0 %v2916
        %2930 = vmatprep.subr.bf16.mxu0 0
        %2931 = vmatpush1.bf16.msra.mxu0 %v2915
        %2932 = vmatprep.subr.bf16.mxu0 0
        %2933 = vmatpush1.bf16.msra.mxu0 %v2914
        %2934 = vmatprep.subr.bf16.mxu0 0
        %2935 = vmatpush1.bf16.msra.mxu0 %v2913
        %2936 = vmatprep.subr.bf16.mxu0 0
        %2937 = vmatpush1.bf16.msra.mxu0 %v2912
        %2938 = vmatprep.subr.bf16.mxu0 0
        %2939 = vmatpush1.bf16.msra.mxu0 %v2911
        %2940 = vmatprep.subr.bf16.mxu0 0
        %2941 = vmatpush1.bf16.msra.mxu0 %v2910
        %2942 = vmatprep.subr.bf16.mxu0 0
        %2943 = vmatpush2.bf16.msra.mxu0 0
        %2944 = vmatprep.subr.bf16.mxu0 0
        %2945 = vmatpush2.bf16.msra.mxu0 0
        %2946 = vmatprep.subr.bf16.mxu0 0
        %2947 = vmatpush2.bf16.msra.mxu0 0
        %2948 = vmatprep.subr.bf16.mxu0 0
        %2949 = vmatpush2.bf16.msra.mxu0 0
        %2950 = vmatprep.subr.bf16.mxu0 0
        %2951 = vmatpush2.bf16.msra.mxu0 0
        %2952 = vmatprep.subr.bf16.mxu0 0
        %2953 = vmatpush2.bf16.msra.mxu0 0
        %2954 = vmatprep.subr.bf16.mxu0 0
        %2955 = vmatpush2.bf16.msra.mxu0 0
        %2956 = vmatprep.subr.bf16.mxu0 0
        %2957 = vmatpush2.bf16.msra.mxu0 0
        %2958 = vmatprep.mubr.bf16.mxu0 0
        %2959 = vmatmul.mubr.bf16.gmra.mxu0 %v2862
        %v2960 = vpop.f32.mrf.mxu0
        %v2961 = vadd.f32 0.0, %v2960
        %v2962 = vpop.f32.mrf.mxu0
        %v2963 = vpop.f32.mrf.mxu0
        %v2964 = vadd.f32 0.0, %v2963
        %v2965 = vpop.f32.mrf.mxu0
        %2966 = vmatprep.mubr.bf16.mxu0 0
        %2967 = vmatmul.mubr.bf16.gmra.mxu0 %v2863
        %v2968 = vpop.f32.mrf.mxu0
        %v2969 = vadd.f32 0.0, %v2968
        %v2970 = vpop.f32.mrf.mxu0
        %v2971 = vpop.f32.mrf.mxu0
        %v2972 = vadd.f32 0.0, %v2971
        %v2973 = vpop.f32.mrf.mxu0
        %2974 = vmatprep.mubr.bf16.mxu0 0
        %2975 = vmatmul.mubr.bf16.gmra.mxu0 %v2864
        %v2976 = vpop.f32.mrf.mxu0
        %v2977 = vadd.f32 0.0, %v2976
        %v2978 = vpop.f32.mrf.mxu0
        %v2979 = vpop.f32.mrf.mxu0
        %v2980 = vadd.f32 0.0, %v2979
        %v2981 = vpop.f32.mrf.mxu0
        %2982 = vmatprep.mubr.bf16.mxu0 0
        %2983 = vmatmul.mubr.bf16.gmra.mxu0 %v2865
        %v2984 = vpop.f32.mrf.mxu0
        %v2985 = vadd.f32 0.0, %v2984
        %v2986 = vpop.f32.mrf.mxu0
        %v2987 = vpop.f32.mrf.mxu0
        %v2988 = vadd.f32 0.0, %v2987
        %v2989 = vpop.f32.mrf.mxu0
        %2990 = vmatprep.mubr.bf16.mxu0 0
        %2991 = vmatmul.mubr.bf16.gmra.mxu0 %v2866
        %v2992 = vpop.f32.mrf.mxu0
        %v2993 = vadd.f32 0.0, %v2992
        %v2994 = vpop.f32.mrf.mxu0
        %v2995 = vpop.f32.mrf.mxu0
        %v2996 = vadd.f32 0.0, %v2995
        %v2997 = vpop.f32.mrf.mxu0
        %2998 = vmatprep.mubr.bf16.mxu0 0
        %2999 = vmatmul.mubr.bf16.gmra.mxu0 %v2867
        %v3000 = vpop.f32.mrf.mxu0
        %v3001 = vadd.f32 0.0, %v3000
        %v3002 = vpop.f32.mrf.mxu0
        %v3003 = vpop.f32.mrf.mxu0
        %v3004 = vadd.f32 0.0, %v3003
        %v3005 = vpop.f32.mrf.mxu0
        %3006 = vmatprep.mubr.bf16.mxu0 0
        %3007 = vmatmul.mubr.bf16.gmra.mxu0 %v2868
        %v3008 = vpop.f32.mrf.mxu0
        %v3009 = vadd.f32 0.0, %v3008
        %v3010 = vpop.f32.mrf.mxu0
        %v3011 = vpop.f32.mrf.mxu0
        %v3012 = vadd.f32 0.0, %v3011
        %v3013 = vpop.f32.mrf.mxu0
        %3014 = vmatprep.mubr.bf16.mxu0 0
        %3015 = vmatmul.mubr.bf16.gmra.mxu0 %v2869
        %v3016 = vpop.f32.mrf.mxu0
        %v3017 = vadd.f32 0.0, %v3016
        %v3018 = vpop.f32.mrf.mxu0
        %v3019 = vpop.f32.mrf.mxu0
        %v3020 = vadd.f32 0.0, %v3019
        %v3021 = vpop.f32.mrf.mxu0
        %3022 = vdwg.mxu0
        %v3023 = vadd.f32 %v2725, %v2961
        %v3024 = vadd.f32 %v2726, %v2964
        %v3025 = vadd.f32 %v2727, %v2969
        %v3026 = vadd.f32 %v2728, %v2972
        %v3027 = vadd.f32 %v2729, %v2977
        %v3028 = vadd.f32 %v2730, %v2980
        %v3029 = vadd.f32 %v2731, %v2985
        %v3030 = vadd.f32 %v2732, %v2988
        %v3031 = vadd.f32 %v2733, %v2993
        %v3032 = vadd.f32 %v2734, %v2996
        %v3033 = vadd.f32 %v2735, %v3001
        %v3034 = vadd.f32 %v2736, %v3004
        %v3035 = vadd.f32 %v2737, %v3009
        %v3036 = vadd.f32 %v2738, %v3012
        %v3037 = vadd.f32 %v2739, %v3017
        %v3038 = vadd.f32 %v2740, %v3020
        %s3039 = smul.u32 0, 16
        %s3040 = scalar_lea.vmem %s167, %s3039 [#allocation2]
        %3041 = vst [vmem:[%s3040] sm:$0xff] %v3023
        %3042 = vst [vmem:[%s3040 + $0x8] sm:$0xff] %v3024
        %3043 = vst [vmem:[%s3040 + $0x10] sm:$0xff] %v3025
        %3044 = vst [vmem:[%s3040 + $0x18] sm:$0xff] %v3026
        %3045 = vst [vmem:[%s3040 + $0x20] sm:$0xff] %v3027
        %3046 = vst [vmem:[%s3040 + $0x28] sm:$0xff] %v3028
        %3047 = vst [vmem:[%s3040 + $0x30] sm:$0xff] %v3029
        %3048 = vst [vmem:[%s3040 + $0x38] sm:$0xff] %v3030
        %3049 = vst [vmem:[%s3040 + $0x40] sm:$0xff] %v3031
        %3050 = vst [vmem:[%s3040 + $0x48] sm:$0xff] %v3032
        %3051 = vst [vmem:[%s3040 + $0x50] sm:$0xff] %v3033
        %3052 = vst [vmem:[%s3040 + $0x58] sm:$0xff] %v3034
        %3053 = vst [vmem:[%s3040 + $0x60] sm:$0xff] %v3035
        %3054 = vst [vmem:[%s3040 + $0x68] sm:$0xff] %v3036
        %3055 = vst [vmem:[%s3040 + $0x70] sm:$0xff] %v3037
        %3056 = vst [vmem:[%s3040 + $0x78] sm:$0xff] %v3038
        %v3057 = vadd.f32 %v3023, %v3024
        %v3058 = vadd.f32 %v3057, %v3025
        %v3059 = vadd.f32 %v3058, %v3026
        %v3060 = vadd.f32 %v3059, %v3027
        %v3061 = vadd.f32 %v3060, %v3028
        %v3062 = vadd.f32 %v3061, %v3029
        %v3063 = vadd.f32 %v3062, %v3030
        %v3064 = vadd.f32 %v3063, %v3031
        %v3065 = vadd.f32 %v3064, %v3032
        %v3066 = vadd.f32 %v3065, %v3033
        %v3067 = vadd.f32 %v3066, %v3034
        %v3068 = vadd.f32 %v3067, %v3035
        %v3069 = vadd.f32 %v3068, %v3036
        %v3070 = vadd.f32 %v3069, %v3037
        %v3071 = vadd.f32 %v3070, %v3038
        %v3072 = vrot.slane %v3071, 4
        %v3073 = vadd.f32 %v3071, %v3072
        %v3074 = vrot.slane %v3073, 2
        %v3075 = vadd.f32 %v3073, %v3074
        %v3076 = vrot.slane %v3075, 1
        %v3077 = vadd.f32 %v3075, %v3076
        %v3078 = vadd.f32 %v3077, 0.0
        %v3079 = vmul.f32 %v3023, %v3023
        %v3080 = vmul.f32 %v3024, %v3024
        %v3081 = vmul.f32 %v3025, %v3025
        %v3082 = vmul.f32 %v3026, %v3026
        %v3083 = vmul.f32 %v3027, %v3027
        %v3084 = vmul.f32 %v3028, %v3028
        %v3085 = vmul.f32 %v3029, %v3029
        %v3086 = vmul.f32 %v3030, %v3030
        %v3087 = vmul.f32 %v3031, %v3031
        %v3088 = vmul.f32 %v3032, %v3032
        %v3089 = vmul.f32 %v3033, %v3033
        %v3090 = vmul.f32 %v3034, %v3034
        %v3091 = vmul.f32 %v3035, %v3035
        %v3092 = vmul.f32 %v3036, %v3036
        %v3093 = vmul.f32 %v3037, %v3037
        %v3094 = vmul.f32 %v3038, %v3038
        %v3095 = vadd.f32 %v3079, %v3080
        %v3096 = vadd.f32 %v3095, %v3081
        %v3097 = vadd.f32 %v3096, %v3082
        %v3098 = vadd.f32 %v3097, %v3083
        %v3099 = vadd.f32 %v3098, %v3084
        %v3100 = vadd.f32 %v3099, %v3085
        %v3101 = vadd.f32 %v3100, %v3086
        %v3102 = vadd.f32 %v3101, %v3087
        %v3103 = vadd.f32 %v3102, %v3088
        %v3104 = vadd.f32 %v3103, %v3089
        %v3105 = vadd.f32 %v3104, %v3090
        %v3106 = vadd.f32 %v3105, %v3091
        %v3107 = vadd.f32 %v3106, %v3092
        %v3108 = vadd.f32 %v3107, %v3093
        %v3109 = vadd.f32 %v3108, %v3094
        %v3110 = vrot.slane %v3109, 4
        %v3111 = vadd.f32 %v3109, %v3110
        %v3112 = vrot.slane %v3111, 2
        %v3113 = vadd.f32 %v3111, %v3112
        %v3114 = vrot.slane %v3113, 1
        %v3115 = vadd.f32 %v3113, %v3114
        %v3116 = vadd.f32 %v3115, 0.0
        %s3117 = smul.u32 8, 3
        %s3118 = smul.addr %s3117, 4
        %s3119 = scalar_lea.vmem %s179, %s3118
        %v3120 = vld [vmem:[%s3119] sm:$0xf]
        %v3121 = vld [vmem:[%s3119 + $0x4] sm:$0xf]
        %v3122 = vld [vmem:[%s3119 + $0xc] sm:$0xf]
        %v3123 = vld [vmem:[%s3119 + $0x10] sm:$0xf]
        %v3124 = vld [vmem:[%s3119 + $0x18] sm:$0xf]
        %v3125 = vld [vmem:[%s3119 + $0x1c] sm:$0xf]
        %v3126 = vld [vmem:[%s3119 + $0x24] sm:$0xf]
        %v3127 = vld [vmem:[%s3119 + $0x28] sm:$0xf]
        %v3128 = vld [vmem:[%s3119 + $0x30] sm:$0xf]
        %v3129 = vld [vmem:[%s3119 + $0x34] sm:$0xf]
        %v3130 = vld [vmem:[%s3119 + $0x3c] sm:$0xf]
        %v3131 = vld [vmem:[%s3119 + $0x40] sm:$0xf]
        %v3132 = vld [vmem:[%s3119 + $0x48] sm:$0xf]
        %v3133 = vld [vmem:[%s3119 + $0x4c] sm:$0xf]
        %v3134 = vld [vmem:[%s3119 + $0x54] sm:$0xf]
        %v3135 = vld [vmem:[%s3119 + $0x58] sm:$0xf]
        %v3136 = vld [vmem:[%s1] sm:$0xf]
        %v3137 = vld [vmem:[%s1 + $0x4] sm:$0xf]
        %v3138 = vld [vmem:[%s1 + $0x8] sm:$0xf]
        %v3139 = vld [vmem:[%s1 + $0xc] sm:$0xf]
        %v3140 = vld [vmem:[%s1 + $0x10] sm:$0xf]
        %v3141 = vld [vmem:[%s1 + $0x14] sm:$0xf]
        %v3142 = vld [vmem:[%s1 + $0x18] sm:$0xf]
        %v3143 = vld [vmem:[%s1 + $0x1c] sm:$0xf]
        %v3144 = vld [vmem:[%s1 + $0x20] sm:$0xf]
        %v3145 = vld [vmem:[%s1 + $0x24] sm:$0xf]
        %v3146 = vld [vmem:[%s1 + $0x28] sm:$0xf]
        %v3147 = vld [vmem:[%s1 + $0x2c] sm:$0xf]
        %v3148 = vld [vmem:[%s1 + $0x30] sm:$0xf]
        %v3149 = vld [vmem:[%s1 + $0x34] sm:$0xf]
        %v3150 = vld [vmem:[%s1 + $0x38] sm:$0xf]
        %v3151 = vld [vmem:[%s1 + $0x3c] sm:$0xf]
        %v3152 = vld [vmem:[%s3119 + $0x8] sm:$0x1]
        %v3153 = vld [vmem:[%s3119 + $0x14] sm:$0x1]
        %v3154 = vld [vmem:[%s3119 + $0x20] sm:$0x1]
        %v3155 = vld [vmem:[%s3119 + $0x2c] sm:$0x1]
        %v3156 = vld [vmem:[%s3119 + $0x38] sm:$0x1]
        %v3157 = vld [vmem:[%s3119 + $0x44] sm:$0x1]
        %v3158 = vld [vmem:[%s3119 + $0x50] sm:$0x1]
        %v3159 = vld [vmem:[%s3119 + $0x5c] sm:$0x1]
        %v3161 = vshrl.u32 %v3120, 16
        %v3163 = vrot.slane %v3161, 4
        %v3164 = vshll.u32 %v3120, 16
        %v3166 = vrot.slane %v3164, 5
        %v3167 = vor.u32 %v3163, %v3166
        %v3168 = vrot.slane %v3167, 4
        %v3170 = vshll.u32 %v3121, 16
        %v3172 = vrot.slane %v3170, 5
        %v3173 = vsel %vm226, %v3168, %v3172
        %v3174 = vshrl.u32 %v3121, 16
        %v3176 = vrot.slane %v3174, 4
        %v3177 = vor.u32 %v3176, %v3172
        %v3178 = vrot.slane %v3177, 4
        %v3180 = vshll.u32 %v3152, 16
        %v3182 = vrot.slane %v3180, 5
        %v3183 = vsel %vm226, %v3178, %v3182
        %v3185 = vshrl.u32 %v3122, 16
        %v3187 = vrot.slane %v3185, 4
        %v3188 = vshll.u32 %v3122, 16
        %v3190 = vrot.slane %v3188, 5
        %v3191 = vor.u32 %v3187, %v3190
        %v3192 = vrot.slane %v3191, 4
        %v3194 = vshll.u32 %v3123, 16
        %v3196 = vrot.slane %v3194, 5
        %v3197 = vsel %vm226, %v3192, %v3196
        %v3198 = vshrl.u32 %v3123, 16
        %v3200 = vrot.slane %v3198, 4
        %v3201 = vor.u32 %v3200, %v3196
        %v3202 = vrot.slane %v3201, 4
        %v3204 = vshll.u32 %v3153, 16
        %v3206 = vrot.slane %v3204, 5
        %v3207 = vsel %vm226, %v3202, %v3206
        %v3209 = vshrl.u32 %v3124, 16
        %v3211 = vrot.slane %v3209, 4
        %v3212 = vshll.u32 %v3124, 16
        %v3214 = vrot.slane %v3212, 5
        %v3215 = vor.u32 %v3211, %v3214
        %v3216 = vrot.slane %v3215, 4
        %v3218 = vshll.u32 %v3125, 16
        %v3220 = vrot.slane %v3218, 5
        %v3221 = vsel %vm226, %v3216, %v3220
        %v3222 = vshrl.u32 %v3125, 16
        %v3224 = vrot.slane %v3222, 4
        %v3225 = vor.u32 %v3224, %v3220
        %v3226 = vrot.slane %v3225, 4
        %v3228 = vshll.u32 %v3154, 16
        %v3230 = vrot.slane %v3228, 5
        %v3231 = vsel %vm226, %v3226, %v3230
        %v3233 = vshrl.u32 %v3126, 16
        %v3235 = vrot.slane %v3233, 4
        %v3236 = vshll.u32 %v3126, 16
        %v3238 = vrot.slane %v3236, 5
        %v3239 = vor.u32 %v3235, %v3238
        %v3240 = vrot.slane %v3239, 4
        %v3242 = vshll.u32 %v3127, 16
        %v3244 = vrot.slane %v3242, 5
        %v3245 = vsel %vm226, %v3240, %v3244
        %v3246 = vshrl.u32 %v3127, 16
        %v3248 = vrot.slane %v3246, 4
        %v3249 = vor.u32 %v3248, %v3244
        %v3250 = vrot.slane %v3249, 4
        %v3252 = vshll.u32 %v3155, 16
        %v3254 = vrot.slane %v3252, 5
        %v3255 = vsel %vm226, %v3250, %v3254
        %v3257 = vshrl.u32 %v3128, 16
        %v3259 = vrot.slane %v3257, 4
        %v3260 = vshll.u32 %v3128, 16
        %v3262 = vrot.slane %v3260, 5
        %v3263 = vor.u32 %v3259, %v3262
        %v3264 = vrot.slane %v3263, 4
        %v3266 = vshll.u32 %v3129, 16
        %v3268 = vrot.slane %v3266, 5
        %v3269 = vsel %vm226, %v3264, %v3268
        %v3270 = vshrl.u32 %v3129, 16
        %v3272 = vrot.slane %v3270, 4
        %v3273 = vor.u32 %v3272, %v3268
        %v3274 = vrot.slane %v3273, 4
        %v3276 = vshll.u32 %v3156, 16
        %v3278 = vrot.slane %v3276, 5
        %v3279 = vsel %vm226, %v3274, %v3278
        %v3281 = vshrl.u32 %v3130, 16
        %v3283 = vrot.slane %v3281, 4
        %v3284 = vshll.u32 %v3130, 16
        %v3286 = vrot.slane %v3284, 5
        %v3287 = vor.u32 %v3283, %v3286
        %v3288 = vrot.slane %v3287, 4
        %v3290 = vshll.u32 %v3131, 16
        %v3292 = vrot.slane %v3290, 5
        %v3293 = vsel %vm226, %v3288, %v3292
        %v3294 = vshrl.u32 %v3131, 16
        %v3296 = vrot.slane %v3294, 4
        %v3297 = vor.u32 %v3296, %v3292
        %v3298 = vrot.slane %v3297, 4
        %v3300 = vshll.u32 %v3157, 16
        %v3302 = vrot.slane %v3300, 5
        %v3303 = vsel %vm226, %v3298, %v3302
        %v3305 = vshrl.u32 %v3132, 16
        %v3307 = vrot.slane %v3305, 4
        %v3308 = vshll.u32 %v3132, 16
        %v3310 = vrot.slane %v3308, 5
        %v3311 = vor.u32 %v3307, %v3310
        %v3312 = vrot.slane %v3311, 4
        %v3314 = vshll.u32 %v3133, 16
        %v3316 = vrot.slane %v3314, 5
        %v3317 = vsel %vm226, %v3312, %v3316
        %v3318 = vshrl.u32 %v3133, 16
        %v3320 = vrot.slane %v3318, 4
        %v3321 = vor.u32 %v3320, %v3316
        %v3322 = vrot.slane %v3321, 4
        %v3324 = vshll.u32 %v3158, 16
        %v3326 = vrot.slane %v3324, 5
        %v3327 = vsel %vm226, %v3322, %v3326
        %v3329 = vshrl.u32 %v3134, 16
        %v3331 = vrot.slane %v3329, 4
        %v3332 = vshll.u32 %v3134, 16
        %v3334 = vrot.slane %v3332, 5
        %v3335 = vor.u32 %v3331, %v3334
        %v3336 = vrot.slane %v3335, 4
        %v3338 = vshll.u32 %v3135, 16
        %v3340 = vrot.slane %v3338, 5
        %v3341 = vsel %vm226, %v3336, %v3340
        %v3342 = vshrl.u32 %v3135, 16
        %v3344 = vrot.slane %v3342, 4
        %v3345 = vor.u32 %v3344, %v3340
        %v3346 = vrot.slane %v3345, 4
        %v3348 = vshll.u32 %v3159, 16
        %v3350 = vrot.slane %v3348, 5
        %v3351 = vsel %vm226, %v3346, %v3350
        %v3352 = vld [vmem:[%s419] sm:$0xf]
        %v3353 = vld [vmem:[%s419 + $0x4] sm:$0xf]
        %v3354 = vld [vmem:[%s419 + $0x8] sm:$0xf]
        %v3355 = vld [vmem:[%s419 + $0xc] sm:$0xf]
        %v3356 = vld [vmem:[%s419 + $0x10] sm:$0xf]
        %v3357 = vld [vmem:[%s419 + $0x14] sm:$0xf]
        %v3358 = vld [vmem:[%s419 + $0x18] sm:$0xf]
        %v3359 = vld [vmem:[%s419 + $0x1c] sm:$0xf]
        %v3360 = vld [vmem:[%s419 + $0x20] sm:$0xf]
        %v3361 = vld [vmem:[%s419 + $0x24] sm:$0xf]
        %v3362 = vld [vmem:[%s419 + $0x28] sm:$0xf]
        %v3363 = vld [vmem:[%s419 + $0x2c] sm:$0xf]
        %v3364 = vld [vmem:[%s419 + $0x30] sm:$0xf]
        %v3365 = vld [vmem:[%s419 + $0x34] sm:$0xf]
        %v3366 = vld [vmem:[%s419 + $0x38] sm:$0xf]
        %v3367 = vld [vmem:[%s419 + $0x3c] sm:$0xf]
        %v3368 = vunpack.c.l.b16 %v3173
        %v3369 = vunpack.c.l.b16 %v3183
        %v3370 = vunpack.c.l.b16 %v3197
        %v3371 = vunpack.c.l.b16 %v3207
        %v3372 = vunpack.c.l.b16 %v3221
        %v3373 = vunpack.c.l.b16 %v3231
        %v3374 = vunpack.c.l.b16 %v3245
        %v3375 = vunpack.c.l.b16 %v3255
        %v3376 = vunpack.c.l.b16 %v3269
        %v3377 = vunpack.c.l.b16 %v3279
        %v3378 = vunpack.c.l.b16 %v3293
        %v3379 = vunpack.c.l.b16 %v3303
        %v3380 = vunpack.c.l.b16 %v3317
        %v3381 = vunpack.c.l.b16 %v3327
        %v3382 = vunpack.c.l.b16 %v3341
        %v3383 = vunpack.c.l.b16 %v3351
        %v3384 = vpack.c.b16 %v3369, %v3368
        %v3385 = vpack.c.b16 %v3371, %v3370
        %v3386 = vpack.c.b16 %v3373, %v3372
        %v3387 = vpack.c.b16 %v3375, %v3374
        %v3388 = vpack.c.b16 %v3377, %v3376
        %v3389 = vpack.c.b16 %v3379, %v3378
        %v3390 = vpack.c.b16 %v3381, %v3380
        %v3391 = vpack.c.b16 %v3383, %v3382
        %v3416 = vunpack.c.l.b16 %v3352
        %v3417 = vunpack.c.l.b16 %v3353
        %v3418 = vunpack.c.l.b16 %v3354
        %v3419 = vunpack.c.l.b16 %v3355
        %v3420 = vunpack.c.l.b16 %v3356
        %v3421 = vunpack.c.l.b16 %v3357
        %v3422 = vunpack.c.l.b16 %v3358
        %v3423 = vunpack.c.l.b16 %v3359
        %v3424 = vunpack.c.l.b16 %v3360
        %v3425 = vunpack.c.l.b16 %v3361
        %v3426 = vunpack.c.l.b16 %v3362
        %v3427 = vunpack.c.l.b16 %v3363
        %v3428 = vunpack.c.l.b16 %v3364
        %v3429 = vunpack.c.l.b16 %v3365
        %v3430 = vunpack.c.l.b16 %v3366
        %v3431 = vunpack.c.l.b16 %v3367
        %v3432 = vpack.c.b16 %v3417, %v3416
        %v3433 = vpack.c.b16 %v3419, %v3418
        %v3434 = vpack.c.b16 %v3421, %v3420
        %v3435 = vpack.c.b16 %v3423, %v3422
        %v3436 = vpack.c.b16 %v3425, %v3424
        %v3437 = vpack.c.b16 %v3427, %v3426
        %v3438 = vpack.c.b16 %v3429, %v3428
        %v3439 = vpack.c.b16 %v3431, %v3430
        %3448 = vmatprep.subr.bf16.mxu0 0
        %3449 = vmatpush1.bf16.msra.mxu0 %v3439
        %3450 = vmatprep.subr.bf16.mxu0 0
        %3451 = vmatpush1.bf16.msra.mxu0 %v3438
        %3452 = vmatprep.subr.bf16.mxu0 0
        %3453 = vmatpush1.bf16.msra.mxu0 %v3437
        %3454 = vmatprep.subr.bf16.mxu0 0
        %3455 = vmatpush1.bf16.msra.mxu0 %v3436
        %3456 = vmatprep.subr.bf16.mxu0 0
        %3457 = vmatpush1.bf16.msra.mxu0 %v3435
        %3458 = vmatprep.subr.bf16.mxu0 0
        %3459 = vmatpush1.bf16.msra.mxu0 %v3434
        %3460 = vmatprep.subr.bf16.mxu0 0
        %3461 = vmatpush1.bf16.msra.mxu0 %v3433
        %3462 = vmatprep.subr.bf16.mxu0 0
        %3463 = vmatpush1.bf16.msra.mxu0 %v3432
        %3464 = vmatprep.subr.bf16.mxu0 0
        %3465 = vmatpush2.bf16.msra.mxu0 0
        %3466 = vmatprep.subr.bf16.mxu0 0
        %3467 = vmatpush2.bf16.msra.mxu0 0
        %3468 = vmatprep.subr.bf16.mxu0 0
        %3469 = vmatpush2.bf16.msra.mxu0 0
        %3470 = vmatprep.subr.bf16.mxu0 0
        %3471 = vmatpush2.bf16.msra.mxu0 0
        %3472 = vmatprep.subr.bf16.mxu0 0
        %3473 = vmatpush2.bf16.msra.mxu0 0
        %3474 = vmatprep.subr.bf16.mxu0 0
        %3475 = vmatpush2.bf16.msra.mxu0 0
        %3476 = vmatprep.subr.bf16.mxu0 0
        %3477 = vmatpush2.bf16.msra.mxu0 0
        %3478 = vmatprep.subr.bf16.mxu0 0
        %3479 = vmatpush2.bf16.msra.mxu0 0
        %3480 = vmatprep.mubr.bf16.mxu0 0
        %3481 = vmatmul.mubr.bf16.gmra.mxu0 %v3384
        %v3482 = vpop.f32.mrf.mxu0
        %v3483 = vadd.f32 0.0, %v3482
        %v3484 = vpop.f32.mrf.mxu0
        %v3485 = vpop.f32.mrf.mxu0
        %v3486 = vadd.f32 0.0, %v3485
        %v3487 = vpop.f32.mrf.mxu0
        %3488 = vmatprep.mubr.bf16.mxu0 0
        %3489 = vmatmul.mubr.bf16.gmra.mxu0 %v3385
        %v3490 = vpop.f32.mrf.mxu0
        %v3491 = vadd.f32 0.0, %v3490
        %v3492 = vpop.f32.mrf.mxu0
        %v3493 = vpop.f32.mrf.mxu0
        %v3494 = vadd.f32 0.0, %v3493
        %v3495 = vpop.f32.mrf.mxu0
        %3496 = vmatprep.mubr.bf16.mxu0 0
        %3497 = vmatmul.mubr.bf16.gmra.mxu0 %v3386
        %v3498 = vpop.f32.mrf.mxu0
        %v3499 = vadd.f32 0.0, %v3498
        %v3500 = vpop.f32.mrf.mxu0
        %v3501 = vpop.f32.mrf.mxu0
        %v3502 = vadd.f32 0.0, %v3501
        %v3503 = vpop.f32.mrf.mxu0
        %3504 = vmatprep.mubr.bf16.mxu0 0
        %3505 = vmatmul.mubr.bf16.gmra.mxu0 %v3387
        %v3506 = vpop.f32.mrf.mxu0
        %v3507 = vadd.f32 0.0, %v3506
        %v3508 = vpop.f32.mrf.mxu0
        %v3509 = vpop.f32.mrf.mxu0
        %v3510 = vadd.f32 0.0, %v3509
        %v3511 = vpop.f32.mrf.mxu0
        %3512 = vmatprep.mubr.bf16.mxu0 0
        %3513 = vmatmul.mubr.bf16.gmra.mxu0 %v3388
        %v3514 = vpop.f32.mrf.mxu0
        %v3515 = vadd.f32 0.0, %v3514
        %v3516 = vpop.f32.mrf.mxu0
        %v3517 = vpop.f32.mrf.mxu0
        %v3518 = vadd.f32 0.0, %v3517
        %v3519 = vpop.f32.mrf.mxu0
        %3520 = vmatprep.mubr.bf16.mxu0 0
        %3521 = vmatmul.mubr.bf16.gmra.mxu0 %v3389
        %v3522 = vpop.f32.mrf.mxu0
        %v3523 = vadd.f32 0.0, %v3522
        %v3524 = vpop.f32.mrf.mxu0
        %v3525 = vpop.f32.mrf.mxu0
        %v3526 = vadd.f32 0.0, %v3525
        %v3527 = vpop.f32.mrf.mxu0
        %3528 = vmatprep.mubr.bf16.mxu0 0
        %3529 = vmatmul.mubr.bf16.gmra.mxu0 %v3390
        %v3530 = vpop.f32.mrf.mxu0
        %v3531 = vadd.f32 0.0, %v3530
        %v3532 = vpop.f32.mrf.mxu0
        %v3533 = vpop.f32.mrf.mxu0
        %v3534 = vadd.f32 0.0, %v3533
        %v3535 = vpop.f32.mrf.mxu0
        %3536 = vmatprep.mubr.bf16.mxu0 0
        %3537 = vmatmul.mubr.bf16.gmra.mxu0 %v3391
        %v3538 = vpop.f32.mrf.mxu0
        %v3539 = vadd.f32 0.0, %v3538
        %v3540 = vpop.f32.mrf.mxu0
        %v3541 = vpop.f32.mrf.mxu0
        %v3542 = vadd.f32 0.0, %v3541
        %v3543 = vpop.f32.mrf.mxu0
        %3544 = vdwg.mxu0
        %v3561 = vunpack.c.l.b16 %v3120
        %v3562 = vunpack.c.l.b16 %v3121
        %v3563 = vunpack.c.l.b16 %v3122
        %v3564 = vunpack.c.l.b16 %v3123
        %v3565 = vunpack.c.l.b16 %v3124
        %v3566 = vunpack.c.l.b16 %v3125
        %v3567 = vunpack.c.l.b16 %v3126
        %v3568 = vunpack.c.l.b16 %v3127
        %v3569 = vunpack.c.l.b16 %v3128
        %v3570 = vunpack.c.l.b16 %v3129
        %v3571 = vunpack.c.l.b16 %v3130
        %v3572 = vunpack.c.l.b16 %v3131
        %v3573 = vunpack.c.l.b16 %v3132
        %v3574 = vunpack.c.l.b16 %v3133
        %v3575 = vunpack.c.l.b16 %v3134
        %v3576 = vunpack.c.l.b16 %v3135
        %v3577 = vpack.c.b16 %v3562, %v3561
        %v3578 = vpack.c.b16 %v3564, %v3563
        %v3579 = vpack.c.b16 %v3566, %v3565
        %v3580 = vpack.c.b16 %v3568, %v3567
        %v3581 = vpack.c.b16 %v3570, %v3569
        %v3582 = vpack.c.b16 %v3572, %v3571
        %v3583 = vpack.c.b16 %v3574, %v3573
        %v3584 = vpack.c.b16 %v3576, %v3575
        %v3609 = vunpack.c.l.b16 %v3136
        %v3610 = vunpack.c.l.b16 %v3137
        %v3611 = vunpack.c.l.b16 %v3138
        %v3612 = vunpack.c.l.b16 %v3139
        %v3613 = vunpack.c.l.b16 %v3140
        %v3614 = vunpack.c.l.b16 %v3141
        %v3615 = vunpack.c.l.b16 %v3142
        %v3616 = vunpack.c.l.b16 %v3143
        %v3617 = vunpack.c.l.b16 %v3144
        %v3618 = vunpack.c.l.b16 %v3145
        %v3619 = vunpack.c.l.b16 %v3146
        %v3620 = vunpack.c.l.b16 %v3147
        %v3621 = vunpack.c.l.b16 %v3148
        %v3622 = vunpack.c.l.b16 %v3149
        %v3623 = vunpack.c.l.b16 %v3150
        %v3624 = vunpack.c.l.b16 %v3151
        %v3625 = vpack.c.b16 %v3610, %v3609
        %v3626 = vpack.c.b16 %v3612, %v3611
        %v3627 = vpack.c.b16 %v3614, %v3613
        %v3628 = vpack.c.b16 %v3616, %v3615
        %v3629 = vpack.c.b16 %v3618, %v3617
        %v3630 = vpack.c.b16 %v3620, %v3619
        %v3631 = vpack.c.b16 %v3622, %v3621
        %v3632 = vpack.c.b16 %v3624, %v3623
        %3641 = vmatprep.subr.bf16.mxu0 0
        %3642 = vmatpush1.bf16.msra.mxu0 %v3632
        %3643 = vmatprep.subr.bf16.mxu0 0
        %3644 = vmatpush1.bf16.msra.mxu0 %v3631
        %3645 = vmatprep.subr.bf16.mxu0 0
        %3646 = vmatpush1.bf16.msra.mxu0 %v3630
        %3647 = vmatprep.subr.bf16.mxu0 0
        %3648 = vmatpush1.bf16.msra.mxu0 %v3629
        %3649 = vmatprep.subr.bf16.mxu0 0
        %3650 = vmatpush1.bf16.msra.mxu0 %v3628
        %3651 = vmatprep.subr.bf16.mxu0 0
        %3652 = vmatpush1.bf16.msra.mxu0 %v3627
        %3653 = vmatprep.subr.bf16.mxu0 0
        %3654 = vmatpush1.bf16.msra.mxu0 %v3626
        %3655 = vmatprep.subr.bf16.mxu0 0
        %3656 = vmatpush1.bf16.msra.mxu0 %v3625
        %3657 = vmatprep.subr.bf16.mxu0 0
        %3658 = vmatpush2.bf16.msra.mxu0 0
        %3659 = vmatprep.subr.bf16.mxu0 0
        %3660 = vmatpush2.bf16.msra.mxu0 0
        %3661 = vmatprep.subr.bf16.mxu0 0
        %3662 = vmatpush2.bf16.msra.mxu0 0
        %3663 = vmatprep.subr.bf16.mxu0 0
        %3664 = vmatpush2.bf16.msra.mxu0 0
        %3665 = vmatprep.subr.bf16.mxu0 0
        %3666 = vmatpush2.bf16.msra.mxu0 0
        %3667 = vmatprep.subr.bf16.mxu0 0
        %3668 = vmatpush2.bf16.msra.mxu0 0
        %3669 = vmatprep.subr.bf16.mxu0 0
        %3670 = vmatpush2.bf16.msra.mxu0 0
        %3671 = vmatprep.subr.bf16.mxu0 0
        %3672 = vmatpush2.bf16.msra.mxu0 0
        %3673 = vmatprep.mubr.bf16.mxu0 0
        %3674 = vmatmul.mubr.bf16.gmra.mxu0 %v3577
        %v3675 = vpop.f32.mrf.mxu0
        %v3676 = vadd.f32 %v3483, %v3675
        %v3677 = vpop.f32.mrf.mxu0
        %v3678 = vpop.f32.mrf.mxu0
        %v3679 = vadd.f32 %v3486, %v3678
        %v3680 = vpop.f32.mrf.mxu0
        %3681 = vmatprep.mubr.bf16.mxu0 0
        %3682 = vmatmul.mubr.bf16.gmra.mxu0 %v3578
        %v3683 = vpop.f32.mrf.mxu0
        %v3684 = vadd.f32 %v3491, %v3683
        %v3685 = vpop.f32.mrf.mxu0
        %v3686 = vpop.f32.mrf.mxu0
        %v3687 = vadd.f32 %v3494, %v3686
        %v3688 = vpop.f32.mrf.mxu0
        %3689 = vmatprep.mubr.bf16.mxu0 0
        %3690 = vmatmul.mubr.bf16.gmra.mxu0 %v3579
        %v3691 = vpop.f32.mrf.mxu0
        %v3692 = vadd.f32 %v3499, %v3691
        %v3693 = vpop.f32.mrf.mxu0
        %v3694 = vpop.f32.mrf.mxu0
        %v3695 = vadd.f32 %v3502, %v3694
        %v3696 = vpop.f32.mrf.mxu0
        %3697 = vmatprep.mubr.bf16.mxu0 0
        %3698 = vmatmul.mubr.bf16.gmra.mxu0 %v3580
        %v3699 = vpop.f32.mrf.mxu0
        %v3700 = vadd.f32 %v3507, %v3699
        %v3701 = vpop.f32.mrf.mxu0
        %v3702 = vpop.f32.mrf.mxu0
        %v3703 = vadd.f32 %v3510, %v3702
        %v3704 = vpop.f32.mrf.mxu0
        %3705 = vmatprep.mubr.bf16.mxu0 0
        %3706 = vmatmul.mubr.bf16.gmra.mxu0 %v3581
        %v3707 = vpop.f32.mrf.mxu0
        %v3708 = vadd.f32 %v3515, %v3707
        %v3709 = vpop.f32.mrf.mxu0
        %v3710 = vpop.f32.mrf.mxu0
        %v3711 = vadd.f32 %v3518, %v3710
        %v3712 = vpop.f32.mrf.mxu0
        %3713 = vmatprep.mubr.bf16.mxu0 0
        %3714 = vmatmul.mubr.bf16.gmra.mxu0 %v3582
        %v3715 = vpop.f32.mrf.mxu0
        %v3716 = vadd.f32 %v3523, %v3715
        %v3717 = vpop.f32.mrf.mxu0
        %v3718 = vpop.f32.mrf.mxu0
        %v3719 = vadd.f32 %v3526, %v3718
        %v3720 = vpop.f32.mrf.mxu0
        %3721 = vmatprep.mubr.bf16.mxu0 0
        %3722 = vmatmul.mubr.bf16.gmra.mxu0 %v3583
        %v3723 = vpop.f32.mrf.mxu0
        %v3724 = vadd.f32 %v3531, %v3723
        %v3725 = vpop.f32.mrf.mxu0
        %v3726 = vpop.f32.mrf.mxu0
        %v3727 = vadd.f32 %v3534, %v3726
        %v3728 = vpop.f32.mrf.mxu0
        %3729 = vmatprep.mubr.bf16.mxu0 0
        %3730 = vmatmul.mubr.bf16.gmra.mxu0 %v3584
        %v3731 = vpop.f32.mrf.mxu0
        %v3732 = vadd.f32 %v3539, %v3731
        %v3733 = vpop.f32.mrf.mxu0
        %v3734 = vpop.f32.mrf.mxu0
        %v3735 = vadd.f32 %v3542, %v3734
        %v3736 = vpop.f32.mrf.mxu0
        %3737 = vdwg.mxu0
        %v3738 = vld [vmem:[%s3119] sm:$0xe]
        %v3739 = vld [vmem:[%s3119 + $0xc] sm:$0xe]
        %v3740 = vld [vmem:[%s3119 + $0x18] sm:$0xe]
        %v3741 = vld [vmem:[%s3119 + $0x24] sm:$0xe]
        %v3742 = vld [vmem:[%s3119 + $0x30] sm:$0xe]
        %v3743 = vld [vmem:[%s3119 + $0x3c] sm:$0xe]
        %v3744 = vld [vmem:[%s3119 + $0x48] sm:$0xe]
        %v3745 = vld [vmem:[%s3119 + $0x54] sm:$0xe]
        %v3762 = vrot.slane %v3738, 5
        %v3763 = vrot.slane %v3762, 4
        %v3764 = vrot.slane %v3121, 5
        %v3765 = vsel %vm832, %v3763, %v3764
        %v3766 = vrot.slane %v3764, 4
        %v3767 = vrot.slane %v3152, 5
        %v3768 = vsel %vm832, %v3766, %v3767
        %v3769 = vrot.slane %v3739, 5
        %v3770 = vrot.slane %v3769, 4
        %v3771 = vrot.slane %v3123, 5
        %v3772 = vsel %vm832, %v3770, %v3771
        %v3773 = vrot.slane %v3771, 4
        %v3774 = vrot.slane %v3153, 5
        %v3775 = vsel %vm832, %v3773, %v3774
        %v3776 = vrot.slane %v3740, 5
        %v3777 = vrot.slane %v3776, 4
        %v3778 = vrot.slane %v3125, 5
        %v3779 = vsel %vm832, %v3777, %v3778
        %v3780 = vrot.slane %v3778, 4
        %v3781 = vrot.slane %v3154, 5
        %v3782 = vsel %vm832, %v3780, %v3781
        %v3783 = vrot.slane %v3741, 5
        %v3784 = vrot.slane %v3783, 4
        %v3785 = vrot.slane %v3127, 5
        %v3786 = vsel %vm832, %v3784, %v3785
        %v3787 = vrot.slane %v3785, 4
        %v3788 = vrot.slane %v3155, 5
        %v3789 = vsel %vm832, %v3787, %v3788
        %v3790 = vrot.slane %v3742, 5
        %v3791 = vrot.slane %v3790, 4
        %v3792 = vrot.slane %v3129, 5
        %v3793 = vsel %vm832, %v3791, %v3792
        %v3794 = vrot.slane %v3792, 4
        %v3795 = vrot.slane %v3156, 5
        %v3796 = vsel %vm832, %v3794, %v3795
        %v3797 = vrot.slane %v3743, 5
        %v3798 = vrot.slane %v3797, 4
        %v3799 = vrot.slane %v3131, 5
        %v3800 = vsel %vm832, %v3798, %v3799
        %v3801 = vrot.slane %v3799, 4
        %v3802 = vrot.slane %v3157, 5
        %v3803 = vsel %vm832, %v3801, %v3802
        %v3804 = vrot.slane %v3744, 5
        %v3805 = vrot.slane %v3804, 4
        %v3806 = vrot.slane %v3133, 5
        %v3807 = vsel %vm832, %v3805, %v3806
        %v3808 = vrot.slane %v3806, 4
        %v3809 = vrot.slane %v3158, 5
        %v3810 = vsel %vm832, %v3808, %v3809
        %v3811 = vrot.slane %v3745, 5
        %v3812 = vrot.slane %v3811, 4
        %v3813 = vrot.slane %v3135, 5
        %v3814 = vsel %vm832, %v3812, %v3813
        %v3815 = vrot.slane %v3813, 4
        %v3816 = vrot.slane %v3159, 5
        %v3817 = vsel %vm832, %v3815, %v3816
        %v3818 = vld [vmem:[%s889] sm:$0xf]
        %v3819 = vld [vmem:[%s889 + $0x4] sm:$0xf]
        %v3820 = vld [vmem:[%s889 + $0x8] sm:$0xf]
        %v3821 = vld [vmem:[%s889 + $0xc] sm:$0xf]
        %v3822 = vld [vmem:[%s889 + $0x10] sm:$0xf]
        %v3823 = vld [vmem:[%s889 + $0x14] sm:$0xf]
        %v3824 = vld [vmem:[%s889 + $0x18] sm:$0xf]
        %v3825 = vld [vmem:[%s889 + $0x1c] sm:$0xf]
        %v3826 = vld [vmem:[%s889 + $0x20] sm:$0xf]
        %v3827 = vld [vmem:[%s889 + $0x24] sm:$0xf]
        %v3828 = vld [vmem:[%s889 + $0x28] sm:$0xf]
        %v3829 = vld [vmem:[%s889 + $0x2c] sm:$0xf]
        %v3830 = vld [vmem:[%s889 + $0x30] sm:$0xf]
        %v3831 = vld [vmem:[%s889 + $0x34] sm:$0xf]
        %v3832 = vld [vmem:[%s889 + $0x38] sm:$0xf]
        %v3833 = vld [vmem:[%s889 + $0x3c] sm:$0xf]
        %v3834 = vunpack.c.l.b16 %v3765
        %v3835 = vunpack.c.l.b16 %v3768
        %v3836 = vunpack.c.l.b16 %v3772
        %v3837 = vunpack.c.l.b16 %v3775
        %v3838 = vunpack.c.l.b16 %v3779
        %v3839 = vunpack.c.l.b16 %v3782
        %v3840 = vunpack.c.l.b16 %v3786
        %v3841 = vunpack.c.l.b16 %v3789
        %v3842 = vunpack.c.l.b16 %v3793
        %v3843 = vunpack.c.l.b16 %v3796
        %v3844 = vunpack.c.l.b16 %v3800
        %v3845 = vunpack.c.l.b16 %v3803
        %v3846 = vunpack.c.l.b16 %v3807
        %v3847 = vunpack.c.l.b16 %v3810
        %v3848 = vunpack.c.l.b16 %v3814
        %v3849 = vunpack.c.l.b16 %v3817
        %v3850 = vpack.c.b16 %v3835, %v3834
        %v3851 = vpack.c.b16 %v3837, %v3836
        %v3852 = vpack.c.b16 %v3839, %v3838
        %v3853 = vpack.c.b16 %v3841, %v3840
        %v3854 = vpack.c.b16 %v3843, %v3842
        %v3855 = vpack.c.b16 %v3845, %v3844
        %v3856 = vpack.c.b16 %v3847, %v3846
        %v3857 = vpack.c.b16 %v3849, %v3848
        %v3882 = vunpack.c.l.b16 %v3818
        %v3883 = vunpack.c.l.b16 %v3819
        %v3884 = vunpack.c.l.b16 %v3820
        %v3885 = vunpack.c.l.b16 %v3821
        %v3886 = vunpack.c.l.b16 %v3822
        %v3887 = vunpack.c.l.b16 %v3823
        %v3888 = vunpack.c.l.b16 %v3824
        %v3889 = vunpack.c.l.b16 %v3825
        %v3890 = vunpack.c.l.b16 %v3826
        %v3891 = vunpack.c.l.b16 %v3827
        %v3892 = vunpack.c.l.b16 %v3828
        %v3893 = vunpack.c.l.b16 %v3829
        %v3894 = vunpack.c.l.b16 %v3830
        %v3895 = vunpack.c.l.b16 %v3831
        %v3896 = vunpack.c.l.b16 %v3832
        %v3897 = vunpack.c.l.b16 %v3833
        %v3898 = vpack.c.b16 %v3883, %v3882
        %v3899 = vpack.c.b16 %v3885, %v3884
        %v3900 = vpack.c.b16 %v3887, %v3886
        %v3901 = vpack.c.b16 %v3889, %v3888
        %v3902 = vpack.c.b16 %v3891, %v3890
        %v3903 = vpack.c.b16 %v3893, %v3892
        %v3904 = vpack.c.b16 %v3895, %v3894
        %v3905 = vpack.c.b16 %v3897, %v3896
        %3914 = vmatprep.subr.bf16.mxu0 0
        %3915 = vmatpush1.bf16.msra.mxu0 %v3905
        %3916 = vmatprep.subr.bf16.mxu0 0
        %3917 = vmatpush1.bf16.msra.mxu0 %v3904
        %3918 = vmatprep.subr.bf16.mxu0 0
        %3919 = vmatpush1.bf16.msra.mxu0 %v3903
        %3920 = vmatprep.subr.bf16.mxu0 0
        %3921 = vmatpush1.bf16.msra.mxu0 %v3902
        %3922 = vmatprep.subr.bf16.mxu0 0
        %3923 = vmatpush1.bf16.msra.mxu0 %v3901
        %3924 = vmatprep.subr.bf16.mxu0 0
        %3925 = vmatpush1.bf16.msra.mxu0 %v3900
        %3926 = vmatprep.subr.bf16.mxu0 0
        %3927 = vmatpush1.bf16.msra.mxu0 %v3899
        %3928 = vmatprep.subr.bf16.mxu0 0
        %3929 = vmatpush1.bf16.msra.mxu0 %v3898
        %3930 = vmatprep.subr.bf16.mxu0 0
        %3931 = vmatpush2.bf16.msra.mxu0 0
        %3932 = vmatprep.subr.bf16.mxu0 0
        %3933 = vmatpush2.bf16.msra.mxu0 0
        %3934 = vmatprep.subr.bf16.mxu0 0
        %3935 = vmatpush2.bf16.msra.mxu0 0
        %3936 = vmatprep.subr.bf16.mxu0 0
        %3937 = vmatpush2.bf16.msra.mxu0 0
        %3938 = vmatprep.subr.bf16.mxu0 0
        %3939 = vmatpush2.bf16.msra.mxu0 0
        %3940 = vmatprep.subr.bf16.mxu0 0
        %3941 = vmatpush2.bf16.msra.mxu0 0
        %3942 = vmatprep.subr.bf16.mxu0 0
        %3943 = vmatpush2.bf16.msra.mxu0 0
        %3944 = vmatprep.subr.bf16.mxu0 0
        %3945 = vmatpush2.bf16.msra.mxu0 0
        %3946 = vmatprep.mubr.bf16.mxu0 0
        %3947 = vmatmul.mubr.bf16.gmra.mxu0 %v3850
        %v3948 = vpop.f32.mrf.mxu0
        %v3949 = vadd.f32 0.0, %v3948
        %v3950 = vpop.f32.mrf.mxu0
        %v3951 = vpop.f32.mrf.mxu0
        %v3952 = vadd.f32 0.0, %v3951
        %v3953 = vpop.f32.mrf.mxu0
        %3954 = vmatprep.mubr.bf16.mxu0 0
        %3955 = vmatmul.mubr.bf16.gmra.mxu0 %v3851
        %v3956 = vpop.f32.mrf.mxu0
        %v3957 = vadd.f32 0.0, %v3956
        %v3958 = vpop.f32.mrf.mxu0
        %v3959 = vpop.f32.mrf.mxu0
        %v3960 = vadd.f32 0.0, %v3959
        %v3961 = vpop.f32.mrf.mxu0
        %3962 = vmatprep.mubr.bf16.mxu0 0
        %3963 = vmatmul.mubr.bf16.gmra.mxu0 %v3852
        %v3964 = vpop.f32.mrf.mxu0
        %v3965 = vadd.f32 0.0, %v3964
        %v3966 = vpop.f32.mrf.mxu0
        %v3967 = vpop.f32.mrf.mxu0
        %v3968 = vadd.f32 0.0, %v3967
        %v3969 = vpop.f32.mrf.mxu0
        %3970 = vmatprep.mubr.bf16.mxu0 0
        %3971 = vmatmul.mubr.bf16.gmra.mxu0 %v3853
        %v3972 = vpop.f32.mrf.mxu0
        %v3973 = vadd.f32 0.0, %v3972
        %v3974 = vpop.f32.mrf.mxu0
        %v3975 = vpop.f32.mrf.mxu0
        %v3976 = vadd.f32 0.0, %v3975
        %v3977 = vpop.f32.mrf.mxu0
        %3978 = vmatprep.mubr.bf16.mxu0 0
        %3979 = vmatmul.mubr.bf16.gmra.mxu0 %v3854
        %v3980 = vpop.f32.mrf.mxu0
        %v3981 = vadd.f32 0.0, %v3980
        %v3982 = vpop.f32.mrf.mxu0
        %v3983 = vpop.f32.mrf.mxu0
        %v3984 = vadd.f32 0.0, %v3983
        %v3985 = vpop.f32.mrf.mxu0
        %3986 = vmatprep.mubr.bf16.mxu0 0
        %3987 = vmatmul.mubr.bf16.gmra.mxu0 %v3855
        %v3988 = vpop.f32.mrf.mxu0
        %v3989 = vadd.f32 0.0, %v3988
        %v3990 = vpop.f32.mrf.mxu0
        %v3991 = vpop.f32.mrf.mxu0
        %v3992 = vadd.f32 0.0, %v3991
        %v3993 = vpop.f32.mrf.mxu0
        %3994 = vmatprep.mubr.bf16.mxu0 0
        %3995 = vmatmul.mubr.bf16.gmra.mxu0 %v3856
        %v3996 = vpop.f32.mrf.mxu0
        %v3997 = vadd.f32 0.0, %v3996
        %v3998 = vpop.f32.mrf.mxu0
        %v3999 = vpop.f32.mrf.mxu0
        %v4000 = vadd.f32 0.0, %v3999
        %v4001 = vpop.f32.mrf.mxu0
        %4002 = vmatprep.mubr.bf16.mxu0 0
        %4003 = vmatmul.mubr.bf16.gmra.mxu0 %v3857
        %v4004 = vpop.f32.mrf.mxu0
        %v4005 = vadd.f32 0.0, %v4004
        %v4006 = vpop.f32.mrf.mxu0
        %v4007 = vpop.f32.mrf.mxu0
        %v4008 = vadd.f32 0.0, %v4007
        %v4009 = vpop.f32.mrf.mxu0
        %4010 = vdwg.mxu0
        %v4011 = vadd.f32 %v3676, %v3949
        %v4012 = vadd.f32 %v3679, %v3952
        %v4013 = vadd.f32 %v3684, %v3957
        %v4014 = vadd.f32 %v3687, %v3960
        %v4015 = vadd.f32 %v3692, %v3965
        %v4016 = vadd.f32 %v3695, %v3968
        %v4017 = vadd.f32 %v3700, %v3973
        %v4018 = vadd.f32 %v3703, %v3976
        %v4019 = vadd.f32 %v3708, %v3981
        %v4020 = vadd.f32 %v3711, %v3984
        %v4021 = vadd.f32 %v3716, %v3989
        %v4022 = vadd.f32 %v3719, %v3992
        %v4023 = vadd.f32 %v3724, %v3997
        %v4024 = vadd.f32 %v3727, %v4000
        %v4025 = vadd.f32 %v3732, %v4005
        %v4026 = vadd.f32 %v3735, %v4008
        %s4027 = sadd.s32 8, 1
        %s4028 = smul.u32 %s4027, 3
        %s4029 = smul.addr %s4028, 4
        %s4030 = scalar_lea.vmem %s179, %s4029
        %v4031 = vld [vmem:[%s4030] sm:$0xf]
        %v4032 = vld [vmem:[%s4030 + $0x4] sm:$0xf]
        %v4033 = vld [vmem:[%s4030 + $0xc] sm:$0xf]
        %v4034 = vld [vmem:[%s4030 + $0x10] sm:$0xf]
        %v4035 = vld [vmem:[%s4030 + $0x18] sm:$0xf]
        %v4036 = vld [vmem:[%s4030 + $0x1c] sm:$0xf]
        %v4037 = vld [vmem:[%s4030 + $0x24] sm:$0xf]
        %v4038 = vld [vmem:[%s4030 + $0x28] sm:$0xf]
        %v4039 = vld [vmem:[%s4030 + $0x30] sm:$0xf]
        %v4040 = vld [vmem:[%s4030 + $0x34] sm:$0xf]
        %v4041 = vld [vmem:[%s4030 + $0x3c] sm:$0xf]
        %v4042 = vld [vmem:[%s4030 + $0x40] sm:$0xf]
        %v4043 = vld [vmem:[%s4030 + $0x48] sm:$0xf]
        %v4044 = vld [vmem:[%s4030 + $0x4c] sm:$0xf]
        %v4045 = vld [vmem:[%s4030 + $0x54] sm:$0xf]
        %v4046 = vld [vmem:[%s4030 + $0x58] sm:$0xf]
        %v4047 = vld [vmem:[%s1119] sm:$0xf]
        %v4048 = vld [vmem:[%s1119 + $0x4] sm:$0xf]
        %v4049 = vld [vmem:[%s1119 + $0x8] sm:$0xf]
        %v4050 = vld [vmem:[%s1119 + $0xc] sm:$0xf]
        %v4051 = vld [vmem:[%s1119 + $0x10] sm:$0xf]
        %v4052 = vld [vmem:[%s1119 + $0x14] sm:$0xf]
        %v4053 = vld [vmem:[%s1119 + $0x18] sm:$0xf]
        %v4054 = vld [vmem:[%s1119 + $0x1c] sm:$0xf]
        %v4055 = vld [vmem:[%s1119 + $0x20] sm:$0xf]
        %v4056 = vld [vmem:[%s1119 + $0x24] sm:$0xf]
        %v4057 = vld [vmem:[%s1119 + $0x28] sm:$0xf]
        %v4058 = vld [vmem:[%s1119 + $0x2c] sm:$0xf]
        %v4059 = vld [vmem:[%s1119 + $0x30] sm:$0xf]
        %v4060 = vld [vmem:[%s1119 + $0x34] sm:$0xf]
        %v4061 = vld [vmem:[%s1119 + $0x38] sm:$0xf]
        %v4062 = vld [vmem:[%s1119 + $0x3c] sm:$0xf]
        %v4079 = vunpack.c.l.b16 %v4031
        %v4080 = vunpack.c.l.b16 %v4032
        %v4081 = vunpack.c.l.b16 %v4033
        %v4082 = vunpack.c.l.b16 %v4034
        %v4083 = vunpack.c.l.b16 %v4035
        %v4084 = vunpack.c.l.b16 %v4036
        %v4085 = vunpack.c.l.b16 %v4037
        %v4086 = vunpack.c.l.b16 %v4038
        %v4087 = vunpack.c.l.b16 %v4039
        %v4088 = vunpack.c.l.b16 %v4040
        %v4089 = vunpack.c.l.b16 %v4041
        %v4090 = vunpack.c.l.b16 %v4042
        %v4091 = vunpack.c.l.b16 %v4043
        %v4092 = vunpack.c.l.b16 %v4044
        %v4093 = vunpack.c.l.b16 %v4045
        %v4094 = vunpack.c.l.b16 %v4046
        %v4095 = vpack.c.b16 %v4080, %v4079
        %v4096 = vpack.c.b16 %v4082, %v4081
        %v4097 = vpack.c.b16 %v4084, %v4083
        %v4098 = vpack.c.b16 %v4086, %v4085
        %v4099 = vpack.c.b16 %v4088, %v4087
        %v4100 = vpack.c.b16 %v4090, %v4089
        %v4101 = vpack.c.b16 %v4092, %v4091
        %v4102 = vpack.c.b16 %v4094, %v4093
        %v4127 = vunpack.c.l.b16 %v4047
        %v4128 = vunpack.c.l.b16 %v4048
        %v4129 = vunpack.c.l.b16 %v4049
        %v4130 = vunpack.c.l.b16 %v4050
        %v4131 = vunpack.c.l.b16 %v4051
        %v4132 = vunpack.c.l.b16 %v4052
        %v4133 = vunpack.c.l.b16 %v4053
        %v4134 = vunpack.c.l.b16 %v4054
        %v4135 = vunpack.c.l.b16 %v4055
        %v4136 = vunpack.c.l.b16 %v4056
        %v4137 = vunpack.c.l.b16 %v4057
        %v4138 = vunpack.c.l.b16 %v4058
        %v4139 = vunpack.c.l.b16 %v4059
        %v4140 = vunpack.c.l.b16 %v4060
        %v4141 = vunpack.c.l.b16 %v4061
        %v4142 = vunpack.c.l.b16 %v4062
        %v4143 = vpack.c.b16 %v4128, %v4127
        %v4144 = vpack.c.b16 %v4130, %v4129
        %v4145 = vpack.c.b16 %v4132, %v4131
        %v4146 = vpack.c.b16 %v4134, %v4133
        %v4147 = vpack.c.b16 %v4136, %v4135
        %v4148 = vpack.c.b16 %v4138, %v4137
        %v4149 = vpack.c.b16 %v4140, %v4139
        %v4150 = vpack.c.b16 %v4142, %v4141
        %4159 = vmatprep.subr.bf16.mxu0 0
        %4160 = vmatpush1.bf16.msra.mxu0 %v4150
        %4161 = vmatprep.subr.bf16.mxu0 0
        %4162 = vmatpush1.bf16.msra.mxu0 %v4149
        %4163 = vmatprep.subr.bf16.mxu0 0
        %4164 = vmatpush1.bf16.msra.mxu0 %v4148
        %4165 = vmatprep.subr.bf16.mxu0 0
        %4166 = vmatpush1.bf16.msra.mxu0 %v4147
        %4167 = vmatprep.subr.bf16.mxu0 0
        %4168 = vmatpush1.bf16.msra.mxu0 %v4146
        %4169 = vmatprep.subr.bf16.mxu0 0
        %4170 = vmatpush1.bf16.msra.mxu0 %v4145
        %4171 = vmatprep.subr.bf16.mxu0 0
        %4172 = vmatpush1.bf16.msra.mxu0 %v4144
        %4173 = vmatprep.subr.bf16.mxu0 0
        %4174 = vmatpush1.bf16.msra.mxu0 %v4143
        %4175 = vmatprep.subr.bf16.mxu0 0
        %4176 = vmatpush2.bf16.msra.mxu0 0
        %4177 = vmatprep.subr.bf16.mxu0 0
        %4178 = vmatpush2.bf16.msra.mxu0 0
        %4179 = vmatprep.subr.bf16.mxu0 0
        %4180 = vmatpush2.bf16.msra.mxu0 0
        %4181 = vmatprep.subr.bf16.mxu0 0
        %4182 = vmatpush2.bf16.msra.mxu0 0
        %4183 = vmatprep.subr.bf16.mxu0 0
        %4184 = vmatpush2.bf16.msra.mxu0 0
        %4185 = vmatprep.subr.bf16.mxu0 0
        %4186 = vmatpush2.bf16.msra.mxu0 0
        %4187 = vmatprep.subr.bf16.mxu0 0
        %4188 = vmatpush2.bf16.msra.mxu0 0
        %4189 = vmatprep.subr.bf16.mxu0 0
        %4190 = vmatpush2.bf16.msra.mxu0 0
        %4191 = vmatprep.mubr.bf16.mxu0 0
        %4192 = vmatmul.mubr.bf16.gmra.mxu0 %v4095
        %v4193 = vpop.f32.mrf.mxu0
        %v4194 = vadd.f32 0.0, %v4193
        %v4195 = vpop.f32.mrf.mxu0
        %v4196 = vpop.f32.mrf.mxu0
        %v4197 = vadd.f32 0.0, %v4196
        %v4198 = vpop.f32.mrf.mxu0
        %4199 = vmatprep.mubr.bf16.mxu0 0
        %4200 = vmatmul.mubr.bf16.gmra.mxu0 %v4096
        %v4201 = vpop.f32.mrf.mxu0
        %v4202 = vadd.f32 0.0, %v4201
        %v4203 = vpop.f32.mrf.mxu0
        %v4204 = vpop.f32.mrf.mxu0
        %v4205 = vadd.f32 0.0, %v4204
        %v4206 = vpop.f32.mrf.mxu0
        %4207 = vmatprep.mubr.bf16.mxu0 0
        %4208 = vmatmul.mubr.bf16.gmra.mxu0 %v4097
        %v4209 = vpop.f32.mrf.mxu0
        %v4210 = vadd.f32 0.0, %v4209
        %v4211 = vpop.f32.mrf.mxu0
        %v4212 = vpop.f32.mrf.mxu0
        %v4213 = vadd.f32 0.0, %v4212
        %v4214 = vpop.f32.mrf.mxu0
        %4215 = vmatprep.mubr.bf16.mxu0 0
        %4216 = vmatmul.mubr.bf16.gmra.mxu0 %v4098
        %v4217 = vpop.f32.mrf.mxu0
        %v4218 = vadd.f32 0.0, %v4217
        %v4219 = vpop.f32.mrf.mxu0
        %v4220 = vpop.f32.mrf.mxu0
        %v4221 = vadd.f32 0.0, %v4220
        %v4222 = vpop.f32.mrf.mxu0
        %4223 = vmatprep.mubr.bf16.mxu0 0
        %4224 = vmatmul.mubr.bf16.gmra.mxu0 %v4099
        %v4225 = vpop.f32.mrf.mxu0
        %v4226 = vadd.f32 0.0, %v4225
        %v4227 = vpop.f32.mrf.mxu0
        %v4228 = vpop.f32.mrf.mxu0
        %v4229 = vadd.f32 0.0, %v4228
        %v4230 = vpop.f32.mrf.mxu0
        %4231 = vmatprep.mubr.bf16.mxu0 0
        %4232 = vmatmul.mubr.bf16.gmra.mxu0 %v4100
        %v4233 = vpop.f32.mrf.mxu0
        %v4234 = vadd.f32 0.0, %v4233
        %v4235 = vpop.f32.mrf.mxu0
        %v4236 = vpop.f32.mrf.mxu0
        %v4237 = vadd.f32 0.0, %v4236
        %v4238 = vpop.f32.mrf.mxu0
        %4239 = vmatprep.mubr.bf16.mxu0 0
        %4240 = vmatmul.mubr.bf16.gmra.mxu0 %v4101
        %v4241 = vpop.f32.mrf.mxu0
        %v4242 = vadd.f32 0.0, %v4241
        %v4243 = vpop.f32.mrf.mxu0
        %v4244 = vpop.f32.mrf.mxu0
        %v4245 = vadd.f32 0.0, %v4244
        %v4246 = vpop.f32.mrf.mxu0
        %4247 = vmatprep.mubr.bf16.mxu0 0
        %4248 = vmatmul.mubr.bf16.gmra.mxu0 %v4102
        %v4249 = vpop.f32.mrf.mxu0
        %v4250 = vadd.f32 0.0, %v4249
        %v4251 = vpop.f32.mrf.mxu0
        %v4252 = vpop.f32.mrf.mxu0
        %v4253 = vadd.f32 0.0, %v4252
        %v4254 = vpop.f32.mrf.mxu0
        %4255 = vdwg.mxu0
        %v4256 = vadd.f32 %v4011, %v4194
        %v4257 = vadd.f32 %v4012, %v4197
        %v4258 = vadd.f32 %v4013, %v4202
        %v4259 = vadd.f32 %v4014, %v4205
        %v4260 = vadd.f32 %v4015, %v4210
        %v4261 = vadd.f32 %v4016, %v4213
        %v4262 = vadd.f32 %v4017, %v4218
        %v4263 = vadd.f32 %v4018, %v4221
        %v4264 = vadd.f32 %v4019, %v4226
        %v4265 = vadd.f32 %v4020, %v4229
        %v4266 = vadd.f32 %v4021, %v4234
        %v4267 = vadd.f32 %v4022, %v4237
        %v4268 = vadd.f32 %v4023, %v4242
        %v4269 = vadd.f32 %v4024, %v4245
        %v4270 = vadd.f32 %v4025, %v4250
        %v4271 = vadd.f32 %v4026, %v4253
        %v4272 = vld [vmem:[%s4030] sm:$0xf]
        %v4273 = vld [vmem:[%s4030 + $0x4] sm:$0xf]
        %v4274 = vld [vmem:[%s4030 + $0x8] sm:$0x1]
        %v4275 = vld [vmem:[%s4030 + $0xc] sm:$0xf]
        %v4276 = vld [vmem:[%s4030 + $0x10] sm:$0xf]
        %v4277 = vld [vmem:[%s4030 + $0x14] sm:$0x1]
        %v4278 = vld [vmem:[%s4030 + $0x18] sm:$0xf]
        %v4279 = vld [vmem:[%s4030 + $0x1c] sm:$0xf]
        %v4280 = vld [vmem:[%s4030 + $0x20] sm:$0x1]
        %v4281 = vld [vmem:[%s4030 + $0x24] sm:$0xf]
        %v4282 = vld [vmem:[%s4030 + $0x28] sm:$0xf]
        %v4283 = vld [vmem:[%s4030 + $0x2c] sm:$0x1]
        %v4284 = vld [vmem:[%s4030 + $0x30] sm:$0xf]
        %v4285 = vld [vmem:[%s4030 + $0x34] sm:$0xf]
        %v4286 = vld [vmem:[%s4030 + $0x38] sm:$0x1]
        %v4287 = vld [vmem:[%s4030 + $0x3c] sm:$0xf]
        %v4288 = vld [vmem:[%s4030 + $0x40] sm:$0xf]
        %v4289 = vld [vmem:[%s4030 + $0x44] sm:$0x1]
        %v4290 = vld [vmem:[%s4030 + $0x48] sm:$0xf]
        %v4291 = vld [vmem:[%s4030 + $0x4c] sm:$0xf]
        %v4292 = vld [vmem:[%s4030 + $0x50] sm:$0x1]
        %v4293 = vld [vmem:[%s4030 + $0x54] sm:$0xf]
        %v4294 = vld [vmem:[%s4030 + $0x58] sm:$0xf]
        %v4295 = vld [vmem:[%s4030 + $0x5c] sm:$0x1]
        %v4297 = vshrl.u32 %v4272, 16
        %v4299 = vrot.slane %v4297, 4
        %v4300 = vshll.u32 %v4272, 16
        %v4302 = vrot.slane %v4300, 5
        %v4303 = vor.u32 %v4299, %v4302
        %v4304 = vrot.slane %v4303, 4
        %v4306 = vshll.u32 %v4273, 16
        %v4308 = vrot.slane %v4306, 5
        %v4309 = vsel %vm226, %v4304, %v4308
        %v4310 = vshrl.u32 %v4273, 16
        %v4312 = vrot.slane %v4310, 4
        %v4313 = vor.u32 %v4312, %v4308
        %v4314 = vrot.slane %v4313, 4
        %v4316 = vshll.u32 %v4274, 16
        %v4318 = vrot.slane %v4316, 5
        %v4319 = vsel %vm226, %v4314, %v4318
        %v4321 = vshrl.u32 %v4275, 16
        %v4323 = vrot.slane %v4321, 4
        %v4324 = vshll.u32 %v4275, 16
        %v4326 = vrot.slane %v4324, 5
        %v4327 = vor.u32 %v4323, %v4326
        %v4328 = vrot.slane %v4327, 4
        %v4330 = vshll.u32 %v4276, 16
        %v4332 = vrot.slane %v4330, 5
        %v4333 = vsel %vm226, %v4328, %v4332
        %v4334 = vshrl.u32 %v4276, 16
        %v4336 = vrot.slane %v4334, 4
        %v4337 = vor.u32 %v4336, %v4332
        %v4338 = vrot.slane %v4337, 4
        %v4340 = vshll.u32 %v4277, 16
        %v4342 = vrot.slane %v4340, 5
        %v4343 = vsel %vm226, %v4338, %v4342
        %v4345 = vshrl.u32 %v4278, 16
        %v4347 = vrot.slane %v4345, 4
        %v4348 = vshll.u32 %v4278, 16
        %v4350 = vrot.slane %v4348, 5
        %v4351 = vor.u32 %v4347, %v4350
        %v4352 = vrot.slane %v4351, 4
        %v4354 = vshll.u32 %v4279, 16
        %v4356 = vrot.slane %v4354, 5
        %v4357 = vsel %vm226, %v4352, %v4356
        %v4358 = vshrl.u32 %v4279, 16
        %v4360 = vrot.slane %v4358, 4
        %v4361 = vor.u32 %v4360, %v4356
        %v4362 = vrot.slane %v4361, 4
        %v4364 = vshll.u32 %v4280, 16
        %v4366 = vrot.slane %v4364, 5
        %v4367 = vsel %vm226, %v4362, %v4366
        %v4369 = vshrl.u32 %v4281, 16
        %v4371 = vrot.slane %v4369, 4
        %v4372 = vshll.u32 %v4281, 16
        %v4374 = vrot.slane %v4372, 5
        %v4375 = vor.u32 %v4371, %v4374
        %v4376 = vrot.slane %v4375, 4
        %v4378 = vshll.u32 %v4282, 16
        %v4380 = vrot.slane %v4378, 5
        %v4381 = vsel %vm226, %v4376, %v4380
        %v4382 = vshrl.u32 %v4282, 16
        %v4384 = vrot.slane %v4382, 4
        %v4385 = vor.u32 %v4384, %v4380
        %v4386 = vrot.slane %v4385, 4
        %v4388 = vshll.u32 %v4283, 16
        %v4390 = vrot.slane %v4388, 5
        %v4391 = vsel %vm226, %v4386, %v4390
        %v4393 = vshrl.u32 %v4284, 16
        %v4395 = vrot.slane %v4393, 4
        %v4396 = vshll.u32 %v4284, 16
        %v4398 = vrot.slane %v4396, 5
        %v4399 = vor.u32 %v4395, %v4398
        %v4400 = vrot.slane %v4399, 4
        %v4402 = vshll.u32 %v4285, 16
        %v4404 = vrot.slane %v4402, 5
        %v4405 = vsel %vm226, %v4400, %v4404
        %v4406 = vshrl.u32 %v4285, 16
        %v4408 = vrot.slane %v4406, 4
        %v4409 = vor.u32 %v4408, %v4404
        %v4410 = vrot.slane %v4409, 4
        %v4412 = vshll.u32 %v4286, 16
        %v4414 = vrot.slane %v4412, 5
        %v4415 = vsel %vm226, %v4410, %v4414
        %v4417 = vshrl.u32 %v4287, 16
        %v4419 = vrot.slane %v4417, 4
        %v4420 = vshll.u32 %v4287, 16
        %v4422 = vrot.slane %v4420, 5
        %v4423 = vor.u32 %v4419, %v4422
        %v4424 = vrot.slane %v4423, 4
        %v4426 = vshll.u32 %v4288, 16
        %v4428 = vrot.slane %v4426, 5
        %v4429 = vsel %vm226, %v4424, %v4428
        %v4430 = vshrl.u32 %v4288, 16
        %v4432 = vrot.slane %v4430, 4
        %v4433 = vor.u32 %v4432, %v4428
        %v4434 = vrot.slane %v4433, 4
        %v4436 = vshll.u32 %v4289, 16
        %v4438 = vrot.slane %v4436, 5
        %v4439 = vsel %vm226, %v4434, %v4438
        %v4441 = vshrl.u32 %v4290, 16
        %v4443 = vrot.slane %v4441, 4
        %v4444 = vshll.u32 %v4290, 16
        %v4446 = vrot.slane %v4444, 5
        %v4447 = vor.u32 %v4443, %v4446
        %v4448 = vrot.slane %v4447, 4
        %v4450 = vshll.u32 %v4291, 16
        %v4452 = vrot.slane %v4450, 5
        %v4453 = vsel %vm226, %v4448, %v4452
        %v4454 = vshrl.u32 %v4291, 16
        %v4456 = vrot.slane %v4454, 4
        %v4457 = vor.u32 %v4456, %v4452
        %v4458 = vrot.slane %v4457, 4
        %v4460 = vshll.u32 %v4292, 16
        %v4462 = vrot.slane %v4460, 5
        %v4463 = vsel %vm226, %v4458, %v4462
        %v4465 = vshrl.u32 %v4293, 16
        %v4467 = vrot.slane %v4465, 4
        %v4468 = vshll.u32 %v4293, 16
        %v4470 = vrot.slane %v4468, 5
        %v4471 = vor.u32 %v4467, %v4470
        %v4472 = vrot.slane %v4471, 4
        %v4474 = vshll.u32 %v4294, 16
        %v4476 = vrot.slane %v4474, 5
        %v4477 = vsel %vm226, %v4472, %v4476
        %v4478 = vshrl.u32 %v4294, 16
        %v4480 = vrot.slane %v4478, 4
        %v4481 = vor.u32 %v4480, %v4476
        %v4482 = vrot.slane %v4481, 4
        %v4484 = vshll.u32 %v4295, 16
        %v4486 = vrot.slane %v4484, 5
        %v4487 = vsel %vm226, %v4482, %v4486
        %v4488 = vld [vmem:[%s1561] sm:$0xf]
        %v4489 = vld [vmem:[%s1561 + $0x4] sm:$0xf]
        %v4490 = vld [vmem:[%s1561 + $0x8] sm:$0xf]
        %v4491 = vld [vmem:[%s1561 + $0xc] sm:$0xf]
        %v4492 = vld [vmem:[%s1561 + $0x10] sm:$0xf]
        %v4493 = vld [vmem:[%s1561 + $0x14] sm:$0xf]
        %v4494 = vld [vmem:[%s1561 + $0x18] sm:$0xf]
        %v4495 = vld [vmem:[%s1561 + $0x1c] sm:$0xf]
        %v4496 = vld [vmem:[%s1561 + $0x20] sm:$0xf]
        %v4497 = vld [vmem:[%s1561 + $0x24] sm:$0xf]
        %v4498 = vld [vmem:[%s1561 + $0x28] sm:$0xf]
        %v4499 = vld [vmem:[%s1561 + $0x2c] sm:$0xf]
        %v4500 = vld [vmem:[%s1561 + $0x30] sm:$0xf]
        %v4501 = vld [vmem:[%s1561 + $0x34] sm:$0xf]
        %v4502 = vld [vmem:[%s1561 + $0x38] sm:$0xf]
        %v4503 = vld [vmem:[%s1561 + $0x3c] sm:$0xf]
        %v4504 = vunpack.c.l.b16 %v4309
        %v4505 = vunpack.c.l.b16 %v4319
        %v4506 = vunpack.c.l.b16 %v4333
        %v4507 = vunpack.c.l.b16 %v4343
        %v4508 = vunpack.c.l.b16 %v4357
        %v4509 = vunpack.c.l.b16 %v4367
        %v4510 = vunpack.c.l.b16 %v4381
        %v4511 = vunpack.c.l.b16 %v4391
        %v4512 = vunpack.c.l.b16 %v4405
        %v4513 = vunpack.c.l.b16 %v4415
        %v4514 = vunpack.c.l.b16 %v4429
        %v4515 = vunpack.c.l.b16 %v4439
        %v4516 = vunpack.c.l.b16 %v4453
        %v4517 = vunpack.c.l.b16 %v4463
        %v4518 = vunpack.c.l.b16 %v4477
        %v4519 = vunpack.c.l.b16 %v4487
        %v4520 = vpack.c.b16 %v4505, %v4504
        %v4521 = vpack.c.b16 %v4507, %v4506
        %v4522 = vpack.c.b16 %v4509, %v4508
        %v4523 = vpack.c.b16 %v4511, %v4510
        %v4524 = vpack.c.b16 %v4513, %v4512
        %v4525 = vpack.c.b16 %v4515, %v4514
        %v4526 = vpack.c.b16 %v4517, %v4516
        %v4527 = vpack.c.b16 %v4519, %v4518
        %v4552 = vunpack.c.l.b16 %v4488
        %v4553 = vunpack.c.l.b16 %v4489
        %v4554 = vunpack.c.l.b16 %v4490
        %v4555 = vunpack.c.l.b16 %v4491
        %v4556 = vunpack.c.l.b16 %v4492
        %v4557 = vunpack.c.l.b16 %v4493
        %v4558 = vunpack.c.l.b16 %v4494
        %v4559 = vunpack.c.l.b16 %v4495
        %v4560 = vunpack.c.l.b16 %v4496
        %v4561 = vunpack.c.l.b16 %v4497
        %v4562 = vunpack.c.l.b16 %v4498
        %v4563 = vunpack.c.l.b16 %v4499
        %v4564 = vunpack.c.l.b16 %v4500
        %v4565 = vunpack.c.l.b16 %v4501
        %v4566 = vunpack.c.l.b16 %v4502
        %v4567 = vunpack.c.l.b16 %v4503
        %v4568 = vpack.c.b16 %v4553, %v4552
        %v4569 = vpack.c.b16 %v4555, %v4554
        %v4570 = vpack.c.b16 %v4557, %v4556
        %v4571 = vpack.c.b16 %v4559, %v4558
        %v4572 = vpack.c.b16 %v4561, %v4560
        %v4573 = vpack.c.b16 %v4563, %v4562
        %v4574 = vpack.c.b16 %v4565, %v4564
        %v4575 = vpack.c.b16 %v4567, %v4566
        %4584 = vmatprep.subr.bf16.mxu0 0
        %4585 = vmatpush1.bf16.msra.mxu0 %v4575
        %4586 = vmatprep.subr.bf16.mxu0 0
        %4587 = vmatpush1.bf16.msra.mxu0 %v4574
        %4588 = vmatprep.subr.bf16.mxu0 0
        %4589 = vmatpush1.bf16.msra.mxu0 %v4573
        %4590 = vmatprep.subr.bf16.mxu0 0
        %4591 = vmatpush1.bf16.msra.mxu0 %v4572
        %4592 = vmatprep.subr.bf16.mxu0 0
        %4593 = vmatpush1.bf16.msra.mxu0 %v4571
        %4594 = vmatprep.subr.bf16.mxu0 0
        %4595 = vmatpush1.bf16.msra.mxu0 %v4570
        %4596 = vmatprep.subr.bf16.mxu0 0
        %4597 = vmatpush1.bf16.msra.mxu0 %v4569
        %4598 = vmatprep.subr.bf16.mxu0 0
        %4599 = vmatpush1.bf16.msra.mxu0 %v4568
        %4600 = vmatprep.subr.bf16.mxu0 0
        %4601 = vmatpush2.bf16.msra.mxu0 0
        %4602 = vmatprep.subr.bf16.mxu0 0
        %4603 = vmatpush2.bf16.msra.mxu0 0
        %4604 = vmatprep.subr.bf16.mxu0 0
        %4605 = vmatpush2.bf16.msra.mxu0 0
        %4606 = vmatprep.subr.bf16.mxu0 0
        %4607 = vmatpush2.bf16.msra.mxu0 0
        %4608 = vmatprep.subr.bf16.mxu0 0
        %4609 = vmatpush2.bf16.msra.mxu0 0
        %4610 = vmatprep.subr.bf16.mxu0 0
        %4611 = vmatpush2.bf16.msra.mxu0 0
        %4612 = vmatprep.subr.bf16.mxu0 0
        %4613 = vmatpush2.bf16.msra.mxu0 0
        %4614 = vmatprep.subr.bf16.mxu0 0
        %4615 = vmatpush2.bf16.msra.mxu0 0
        %4616 = vmatprep.mubr.bf16.mxu0 0
        %4617 = vmatmul.mubr.bf16.gmra.mxu0 %v4520
        %v4618 = vpop.f32.mrf.mxu0
        %v4619 = vadd.f32 0.0, %v4618
        %v4620 = vpop.f32.mrf.mxu0
        %v4621 = vpop.f32.mrf.mxu0
        %v4622 = vadd.f32 0.0, %v4621
        %v4623 = vpop.f32.mrf.mxu0
        %4624 = vmatprep.mubr.bf16.mxu0 0
        %4625 = vmatmul.mubr.bf16.gmra.mxu0 %v4521
        %v4626 = vpop.f32.mrf.mxu0
        %v4627 = vadd.f32 0.0, %v4626
        %v4628 = vpop.f32.mrf.mxu0
        %v4629 = vpop.f32.mrf.mxu0
        %v4630 = vadd.f32 0.0, %v4629
        %v4631 = vpop.f32.mrf.mxu0
        %4632 = vmatprep.mubr.bf16.mxu0 0
        %4633 = vmatmul.mubr.bf16.gmra.mxu0 %v4522
        %v4634 = vpop.f32.mrf.mxu0
        %v4635 = vadd.f32 0.0, %v4634
        %v4636 = vpop.f32.mrf.mxu0
        %v4637 = vpop.f32.mrf.mxu0
        %v4638 = vadd.f32 0.0, %v4637
        %v4639 = vpop.f32.mrf.mxu0
        %4640 = vmatprep.mubr.bf16.mxu0 0
        %4641 = vmatmul.mubr.bf16.gmra.mxu0 %v4523
        %v4642 = vpop.f32.mrf.mxu0
        %v4643 = vadd.f32 0.0, %v4642
        %v4644 = vpop.f32.mrf.mxu0
        %v4645 = vpop.f32.mrf.mxu0
        %v4646 = vadd.f32 0.0, %v4645
        %v4647 = vpop.f32.mrf.mxu0
        %4648 = vmatprep.mubr.bf16.mxu0 0
        %4649 = vmatmul.mubr.bf16.gmra.mxu0 %v4524
        %v4650 = vpop.f32.mrf.mxu0
        %v4651 = vadd.f32 0.0, %v4650
        %v4652 = vpop.f32.mrf.mxu0
        %v4653 = vpop.f32.mrf.mxu0
        %v4654 = vadd.f32 0.0, %v4653
        %v4655 = vpop.f32.mrf.mxu0
        %4656 = vmatprep.mubr.bf16.mxu0 0
        %4657 = vmatmul.mubr.bf16.gmra.mxu0 %v4525
        %v4658 = vpop.f32.mrf.mxu0
        %v4659 = vadd.f32 0.0, %v4658
        %v4660 = vpop.f32.mrf.mxu0
        %v4661 = vpop.f32.mrf.mxu0
        %v4662 = vadd.f32 0.0, %v4661
        %v4663 = vpop.f32.mrf.mxu0
        %4664 = vmatprep.mubr.bf16.mxu0 0
        %4665 = vmatmul.mubr.bf16.gmra.mxu0 %v4526
        %v4666 = vpop.f32.mrf.mxu0
        %v4667 = vadd.f32 0.0, %v4666
        %v4668 = vpop.f32.mrf.mxu0
        %v4669 = vpop.f32.mrf.mxu0
        %v4670 = vadd.f32 0.0, %v4669
        %v4671 = vpop.f32.mrf.mxu0
        %4672 = vmatprep.mubr.bf16.mxu0 0
        %4673 = vmatmul.mubr.bf16.gmra.mxu0 %v4527
        %v4674 = vpop.f32.mrf.mxu0
        %v4675 = vadd.f32 0.0, %v4674
        %v4676 = vpop.f32.mrf.mxu0
        %v4677 = vpop.f32.mrf.mxu0
        %v4678 = vadd.f32 0.0, %v4677
        %v4679 = vpop.f32.mrf.mxu0
        %4680 = vdwg.mxu0
        %v4681 = vadd.f32 %v4256, %v4619
        %v4682 = vadd.f32 %v4257, %v4622
        %v4683 = vadd.f32 %v4258, %v4627
        %v4684 = vadd.f32 %v4259, %v4630
        %v4685 = vadd.f32 %v4260, %v4635
        %v4686 = vadd.f32 %v4261, %v4638
        %v4687 = vadd.f32 %v4262, %v4643
        %v4688 = vadd.f32 %v4263, %v4646
        %v4689 = vadd.f32 %v4264, %v4651
        %v4690 = vadd.f32 %v4265, %v4654
        %v4691 = vadd.f32 %v4266, %v4659
        %v4692 = vadd.f32 %v4267, %v4662
        %v4693 = vadd.f32 %v4268, %v4667
        %v4694 = vadd.f32 %v4269, %v4670
        %v4695 = vadd.f32 %v4270, %v4675
        %v4696 = vadd.f32 %v4271, %v4678
        %v4697 = vld [vmem:[%s4030] sm:$0xe]
        %v4698 = vld [vmem:[%s4030 + $0xc] sm:$0xe]
        %v4699 = vld [vmem:[%s4030 + $0x18] sm:$0xe]
        %v4700 = vld [vmem:[%s4030 + $0x24] sm:$0xe]
        %v4701 = vld [vmem:[%s4030 + $0x30] sm:$0xe]
        %v4702 = vld [vmem:[%s4030 + $0x3c] sm:$0xe]
        %v4703 = vld [vmem:[%s4030 + $0x48] sm:$0xe]
        %v4704 = vld [vmem:[%s4030 + $0x54] sm:$0xe]
        %v4729 = vrot.slane %v4697, 5
        %v4730 = vrot.slane %v4729, 4
        %v4731 = vrot.slane %v4273, 5
        %v4732 = vsel %vm832, %v4730, %v4731
        %v4733 = vrot.slane %v4731, 4
        %v4734 = vrot.slane %v4274, 5
        %v4735 = vsel %vm832, %v4733, %v4734
        %v4736 = vrot.slane %v4698, 5
        %v4737 = vrot.slane %v4736, 4
        %v4738 = vrot.slane %v4276, 5
        %v4739 = vsel %vm832, %v4737, %v4738
        %v4740 = vrot.slane %v4738, 4
        %v4741 = vrot.slane %v4277, 5
        %v4742 = vsel %vm832, %v4740, %v4741
        %v4743 = vrot.slane %v4699, 5
        %v4744 = vrot.slane %v4743, 4
        %v4745 = vrot.slane %v4279, 5
        %v4746 = vsel %vm832, %v4744, %v4745
        %v4747 = vrot.slane %v4745, 4
        %v4748 = vrot.slane %v4280, 5
        %v4749 = vsel %vm832, %v4747, %v4748
        %v4750 = vrot.slane %v4700, 5
        %v4751 = vrot.slane %v4750, 4
        %v4752 = vrot.slane %v4282, 5
        %v4753 = vsel %vm832, %v4751, %v4752
        %v4754 = vrot.slane %v4752, 4
        %v4755 = vrot.slane %v4283, 5
        %v4756 = vsel %vm832, %v4754, %v4755
        %v4757 = vrot.slane %v4701, 5
        %v4758 = vrot.slane %v4757, 4
        %v4759 = vrot.slane %v4285, 5
        %v4760 = vsel %vm832, %v4758, %v4759
        %v4761 = vrot.slane %v4759, 4
        %v4762 = vrot.slane %v4286, 5
        %v4763 = vsel %vm832, %v4761, %v4762
        %v4764 = vrot.slane %v4702, 5
        %v4765 = vrot.slane %v4764, 4
        %v4766 = vrot.slane %v4288, 5
        %v4767 = vsel %vm832, %v4765, %v4766
        %v4768 = vrot.slane %v4766, 4
        %v4769 = vrot.slane %v4289, 5
        %v4770 = vsel %vm832, %v4768, %v4769
        %v4771 = vrot.slane %v4703, 5
        %v4772 = vrot.slane %v4771, 4
        %v4773 = vrot.slane %v4291, 5
        %v4774 = vsel %vm832, %v4772, %v4773
        %v4775 = vrot.slane %v4773, 4
        %v4776 = vrot.slane %v4292, 5
        %v4777 = vsel %vm832, %v4775, %v4776
        %v4778 = vrot.slane %v4704, 5
        %v4779 = vrot.slane %v4778, 4
        %v4780 = vrot.slane %v4294, 5
        %v4781 = vsel %vm832, %v4779, %v4780
        %v4782 = vrot.slane %v4780, 4
        %v4783 = vrot.slane %v4295, 5
        %v4784 = vsel %vm832, %v4782, %v4783
        %v4785 = vld [vmem:[%s1859] sm:$0xf]
        %v4786 = vld [vmem:[%s1859 + $0x4] sm:$0xf]
        %v4787 = vld [vmem:[%s1859 + $0x8] sm:$0xf]
        %v4788 = vld [vmem:[%s1859 + $0xc] sm:$0xf]
        %v4789 = vld [vmem:[%s1859 + $0x10] sm:$0xf]
        %v4790 = vld [vmem:[%s1859 + $0x14] sm:$0xf]
        %v4791 = vld [vmem:[%s1859 + $0x18] sm:$0xf]
        %v4792 = vld [vmem:[%s1859 + $0x1c] sm:$0xf]
        %v4793 = vld [vmem:[%s1859 + $0x20] sm:$0xf]
        %v4794 = vld [vmem:[%s1859 + $0x24] sm:$0xf]
        %v4795 = vld [vmem:[%s1859 + $0x28] sm:$0xf]
        %v4796 = vld [vmem:[%s1859 + $0x2c] sm:$0xf]
        %v4797 = vld [vmem:[%s1859 + $0x30] sm:$0xf]
        %v4798 = vld [vmem:[%s1859 + $0x34] sm:$0xf]
        %v4799 = vld [vmem:[%s1859 + $0x38] sm:$0xf]
        %v4800 = vld [vmem:[%s1859 + $0x3c] sm:$0xf]
        %v4801 = vunpack.c.l.b16 %v4732
        %v4802 = vunpack.c.l.b16 %v4735
        %v4803 = vunpack.c.l.b16 %v4739
        %v4804 = vunpack.c.l.b16 %v4742
        %v4805 = vunpack.c.l.b16 %v4746
        %v4806 = vunpack.c.l.b16 %v4749
        %v4807 = vunpack.c.l.b16 %v4753
        %v4808 = vunpack.c.l.b16 %v4756
        %v4809 = vunpack.c.l.b16 %v4760
        %v4810 = vunpack.c.l.b16 %v4763
        %v4811 = vunpack.c.l.b16 %v4767
        %v4812 = vunpack.c.l.b16 %v4770
        %v4813 = vunpack.c.l.b16 %v4774
        %v4814 = vunpack.c.l.b16 %v4777
        %v4815 = vunpack.c.l.b16 %v4781
        %v4816 = vunpack.c.l.b16 %v4784
        %v4817 = vpack.c.b16 %v4802, %v4801
        %v4818 = vpack.c.b16 %v4804, %v4803
        %v4819 = vpack.c.b16 %v4806, %v4805
        %v4820 = vpack.c.b16 %v4808, %v4807
        %v4821 = vpack.c.b16 %v4810, %v4809
        %v4822 = vpack.c.b16 %v4812, %v4811
        %v4823 = vpack.c.b16 %v4814, %v4813
        %v4824 = vpack.c.b16 %v4816, %v4815
        %v4849 = vunpack.c.l.b16 %v4785
        %v4850 = vunpack.c.l.b16 %v4786
        %v4851 = vunpack.c.l.b16 %v4787
        %v4852 = vunpack.c.l.b16 %v4788
        %v4853 = vunpack.c.l.b16 %v4789
        %v4854 = vunpack.c.l.b16 %v4790
        %v4855 = vunpack.c.l.b16 %v4791
        %v4856 = vunpack.c.l.b16 %v4792
        %v4857 = vunpack.c.l.b16 %v4793
        %v4858 = vunpack.c.l.b16 %v4794
        %v4859 = vunpack.c.l.b16 %v4795
        %v4860 = vunpack.c.l.b16 %v4796
        %v4861 = vunpack.c.l.b16 %v4797
        %v4862 = vunpack.c.l.b16 %v4798
        %v4863 = vunpack.c.l.b16 %v4799
        %v4864 = vunpack.c.l.b16 %v4800
        %v4865 = vpack.c.b16 %v4850, %v4849
        %v4866 = vpack.c.b16 %v4852, %v4851
        %v4867 = vpack.c.b16 %v4854, %v4853
        %v4868 = vpack.c.b16 %v4856, %v4855
        %v4869 = vpack.c.b16 %v4858, %v4857
        %v4870 = vpack.c.b16 %v4860, %v4859
        %v4871 = vpack.c.b16 %v4862, %v4861
        %v4872 = vpack.c.b16 %v4864, %v4863
        %4881 = vmatprep.subr.bf16.mxu0 0
        %4882 = vmatpush1.bf16.msra.mxu0 %v4872
        %4883 = vmatprep.subr.bf16.mxu0 0
        %4884 = vmatpush1.bf16.msra.mxu0 %v4871
        %4885 = vmatprep.subr.bf16.mxu0 0
        %4886 = vmatpush1.bf16.msra.mxu0 %v4870
        %4887 = vmatprep.subr.bf16.mxu0 0
        %4888 = vmatpush1.bf16.msra.mxu0 %v4869
        %4889 = vmatprep.subr.bf16.mxu0 0
        %4890 = vmatpush1.bf16.msra.mxu0 %v4868
        %4891 = vmatprep.subr.bf16.mxu0 0
        %4892 = vmatpush1.bf16.msra.mxu0 %v4867
        %4893 = vmatprep.subr.bf16.mxu0 0
        %4894 = vmatpush1.bf16.msra.mxu0 %v4866
        %4895 = vmatprep.subr.bf16.mxu0 0
        %4896 = vmatpush1.bf16.msra.mxu0 %v4865
        %4897 = vmatprep.subr.bf16.mxu0 0
        %4898 = vmatpush2.bf16.msra.mxu0 0
        %4899 = vmatprep.subr.bf16.mxu0 0
        %4900 = vmatpush2.bf16.msra.mxu0 0
        %4901 = vmatprep.subr.bf16.mxu0 0
        %4902 = vmatpush2.bf16.msra.mxu0 0
        %4903 = vmatprep.subr.bf16.mxu0 0
        %4904 = vmatpush2.bf16.msra.mxu0 0
        %4905 = vmatprep.subr.bf16.mxu0 0
        %4906 = vmatpush2.bf16.msra.mxu0 0
        %4907 = vmatprep.subr.bf16.mxu0 0
        %4908 = vmatpush2.bf16.msra.mxu0 0
        %4909 = vmatprep.subr.bf16.mxu0 0
        %4910 = vmatpush2.bf16.msra.mxu0 0
        %4911 = vmatprep.subr.bf16.mxu0 0
        %4912 = vmatpush2.bf16.msra.mxu0 0
        %4913 = vmatprep.mubr.bf16.mxu0 0
        %4914 = vmatmul.mubr.bf16.gmra.mxu0 %v4817
        %v4915 = vpop.f32.mrf.mxu0
        %v4916 = vadd.f32 0.0, %v4915
        %v4917 = vpop.f32.mrf.mxu0
        %v4918 = vpop.f32.mrf.mxu0
        %v4919 = vadd.f32 0.0, %v4918
        %v4920 = vpop.f32.mrf.mxu0
        %4921 = vmatprep.mubr.bf16.mxu0 0
        %4922 = vmatmul.mubr.bf16.gmra.mxu0 %v4818
        %v4923 = vpop.f32.mrf.mxu0
        %v4924 = vadd.f32 0.0, %v4923
        %v4925 = vpop.f32.mrf.mxu0
        %v4926 = vpop.f32.mrf.mxu0
        %v4927 = vadd.f32 0.0, %v4926
        %v4928 = vpop.f32.mrf.mxu0
        %4929 = vmatprep.mubr.bf16.mxu0 0
        %4930 = vmatmul.mubr.bf16.gmra.mxu0 %v4819
        %v4931 = vpop.f32.mrf.mxu0
        %v4932 = vadd.f32 0.0, %v4931
        %v4933 = vpop.f32.mrf.mxu0
        %v4934 = vpop.f32.mrf.mxu0
        %v4935 = vadd.f32 0.0, %v4934
        %v4936 = vpop.f32.mrf.mxu0
        %4937 = vmatprep.mubr.bf16.mxu0 0
        %4938 = vmatmul.mubr.bf16.gmra.mxu0 %v4820
        %v4939 = vpop.f32.mrf.mxu0
        %v4940 = vadd.f32 0.0, %v4939
        %v4941 = vpop.f32.mrf.mxu0
        %v4942 = vpop.f32.mrf.mxu0
        %v4943 = vadd.f32 0.0, %v4942
        %v4944 = vpop.f32.mrf.mxu0
        %4945 = vmatprep.mubr.bf16.mxu0 0
        %4946 = vmatmul.mubr.bf16.gmra.mxu0 %v4821
        %v4947 = vpop.f32.mrf.mxu0
        %v4948 = vadd.f32 0.0, %v4947
        %v4949 = vpop.f32.mrf.mxu0
        %v4950 = vpop.f32.mrf.mxu0
        %v4951 = vadd.f32 0.0, %v4950
        %v4952 = vpop.f32.mrf.mxu0
        %4953 = vmatprep.mubr.bf16.mxu0 0
        %4954 = vmatmul.mubr.bf16.gmra.mxu0 %v4822
        %v4955 = vpop.f32.mrf.mxu0
        %v4956 = vadd.f32 0.0, %v4955
        %v4957 = vpop.f32.mrf.mxu0
        %v4958 = vpop.f32.mrf.mxu0
        %v4959 = vadd.f32 0.0, %v4958
        %v4960 = vpop.f32.mrf.mxu0
        %4961 = vmatprep.mubr.bf16.mxu0 0
        %4962 = vmatmul.mubr.bf16.gmra.mxu0 %v4823
        %v4963 = vpop.f32.mrf.mxu0
        %v4964 = vadd.f32 0.0, %v4963
        %v4965 = vpop.f32.mrf.mxu0
        %v4966 = vpop.f32.mrf.mxu0
        %v4967 = vadd.f32 0.0, %v4966
        %v4968 = vpop.f32.mrf.mxu0
        %4969 = vmatprep.mubr.bf16.mxu0 0
        %4970 = vmatmul.mubr.bf16.gmra.mxu0 %v4824
        %v4971 = vpop.f32.mrf.mxu0
        %v4972 = vadd.f32 0.0, %v4971
        %v4973 = vpop.f32.mrf.mxu0
        %v4974 = vpop.f32.mrf.mxu0
        %v4975 = vadd.f32 0.0, %v4974
        %v4976 = vpop.f32.mrf.mxu0
        %4977 = vdwg.mxu0
        %v4978 = vadd.f32 %v4681, %v4916
        %v4979 = vadd.f32 %v4682, %v4919
        %v4980 = vadd.f32 %v4683, %v4924
        %v4981 = vadd.f32 %v4684, %v4927
        %v4982 = vadd.f32 %v4685, %v4932
        %v4983 = vadd.f32 %v4686, %v4935
        %v4984 = vadd.f32 %v4687, %v4940
        %v4985 = vadd.f32 %v4688, %v4943
        %v4986 = vadd.f32 %v4689, %v4948
        %v4987 = vadd.f32 %v4690, %v4951
        %v4988 = vadd.f32 %v4691, %v4956
        %v4989 = vadd.f32 %v4692, %v4959
        %v4990 = vadd.f32 %v4693, %v4964
        %v4991 = vadd.f32 %v4694, %v4967
        %v4992 = vadd.f32 %v4695, %v4972
        %v4993 = vadd.f32 %v4696, %v4975
        %s4994 = sadd.s32 8, 2
        %s4995 = smul.u32 %s4994, 3
        %s4996 = smul.addr %s4995, 4
        %s4997 = scalar_lea.vmem %s179, %s4996
        %v4998 = vld [vmem:[%s4997] sm:$0xf]
        %v4999 = vld [vmem:[%s4997 + $0x4] sm:$0xf]
        %v5000 = vld [vmem:[%s4997 + $0xc] sm:$0xf]
        %v5001 = vld [vmem:[%s4997 + $0x10] sm:$0xf]
        %v5002 = vld [vmem:[%s4997 + $0x18] sm:$0xf]
        %v5003 = vld [vmem:[%s4997 + $0x1c] sm:$0xf]
        %v5004 = vld [vmem:[%s4997 + $0x24] sm:$0xf]
        %v5005 = vld [vmem:[%s4997 + $0x28] sm:$0xf]
        %v5006 = vld [vmem:[%s4997 + $0x30] sm:$0xf]
        %v5007 = vld [vmem:[%s4997 + $0x34] sm:$0xf]
        %v5008 = vld [vmem:[%s4997 + $0x3c] sm:$0xf]
        %v5009 = vld [vmem:[%s4997 + $0x40] sm:$0xf]
        %v5010 = vld [vmem:[%s4997 + $0x48] sm:$0xf]
        %v5011 = vld [vmem:[%s4997 + $0x4c] sm:$0xf]
        %v5012 = vld [vmem:[%s4997 + $0x54] sm:$0xf]
        %v5013 = vld [vmem:[%s4997 + $0x58] sm:$0xf]
        %v5014 = vld [vmem:[%s2089] sm:$0xf]
        %v5015 = vld [vmem:[%s2089 + $0x4] sm:$0xf]
        %v5016 = vld [vmem:[%s2089 + $0x8] sm:$0xf]
        %v5017 = vld [vmem:[%s2089 + $0xc] sm:$0xf]
        %v5018 = vld [vmem:[%s2089 + $0x10] sm:$0xf]
        %v5019 = vld [vmem:[%s2089 + $0x14] sm:$0xf]
        %v5020 = vld [vmem:[%s2089 + $0x18] sm:$0xf]
        %v5021 = vld [vmem:[%s2089 + $0x1c] sm:$0xf]
        %v5022 = vld [vmem:[%s2089 + $0x20] sm:$0xf]
        %v5023 = vld [vmem:[%s2089 + $0x24] sm:$0xf]
        %v5024 = vld [vmem:[%s2089 + $0x28] sm:$0xf]
        %v5025 = vld [vmem:[%s2089 + $0x2c] sm:$0xf]
        %v5026 = vld [vmem:[%s2089 + $0x30] sm:$0xf]
        %v5027 = vld [vmem:[%s2089 + $0x34] sm:$0xf]
        %v5028 = vld [vmem:[%s2089 + $0x38] sm:$0xf]
        %v5029 = vld [vmem:[%s2089 + $0x3c] sm:$0xf]
        %v5046 = vunpack.c.l.b16 %v4998
        %v5047 = vunpack.c.l.b16 %v4999
        %v5048 = vunpack.c.l.b16 %v5000
        %v5049 = vunpack.c.l.b16 %v5001
        %v5050 = vunpack.c.l.b16 %v5002
        %v5051 = vunpack.c.l.b16 %v5003
        %v5052 = vunpack.c.l.b16 %v5004
        %v5053 = vunpack.c.l.b16 %v5005
        %v5054 = vunpack.c.l.b16 %v5006
        %v5055 = vunpack.c.l.b16 %v5007
        %v5056 = vunpack.c.l.b16 %v5008
        %v5057 = vunpack.c.l.b16 %v5009
        %v5058 = vunpack.c.l.b16 %v5010
        %v5059 = vunpack.c.l.b16 %v5011
        %v5060 = vunpack.c.l.b16 %v5012
        %v5061 = vunpack.c.l.b16 %v5013
        %v5062 = vpack.c.b16 %v5047, %v5046
        %v5063 = vpack.c.b16 %v5049, %v5048
        %v5064 = vpack.c.b16 %v5051, %v5050
        %v5065 = vpack.c.b16 %v5053, %v5052
        %v5066 = vpack.c.b16 %v5055, %v5054
        %v5067 = vpack.c.b16 %v5057, %v5056
        %v5068 = vpack.c.b16 %v5059, %v5058
        %v5069 = vpack.c.b16 %v5061, %v5060
        %v5094 = vunpack.c.l.b16 %v5014
        %v5095 = vunpack.c.l.b16 %v5015
        %v5096 = vunpack.c.l.b16 %v5016
        %v5097 = vunpack.c.l.b16 %v5017
        %v5098 = vunpack.c.l.b16 %v5018
        %v5099 = vunpack.c.l.b16 %v5019
        %v5100 = vunpack.c.l.b16 %v5020
        %v5101 = vunpack.c.l.b16 %v5021
        %v5102 = vunpack.c.l.b16 %v5022
        %v5103 = vunpack.c.l.b16 %v5023
        %v5104 = vunpack.c.l.b16 %v5024
        %v5105 = vunpack.c.l.b16 %v5025
        %v5106 = vunpack.c.l.b16 %v5026
        %v5107 = vunpack.c.l.b16 %v5027
        %v5108 = vunpack.c.l.b16 %v5028
        %v5109 = vunpack.c.l.b16 %v5029
        %v5110 = vpack.c.b16 %v5095, %v5094
        %v5111 = vpack.c.b16 %v5097, %v5096
        %v5112 = vpack.c.b16 %v5099, %v5098
        %v5113 = vpack.c.b16 %v5101, %v5100
        %v5114 = vpack.c.b16 %v5103, %v5102
        %v5115 = vpack.c.b16 %v5105, %v5104
        %v5116 = vpack.c.b16 %v5107, %v5106
        %v5117 = vpack.c.b16 %v5109, %v5108
        %5126 = vmatprep.subr.bf16.mxu0 0
        %5127 = vmatpush1.bf16.msra.mxu0 %v5117
        %5128 = vmatprep.subr.bf16.mxu0 0
        %5129 = vmatpush1.bf16.msra.mxu0 %v5116
        %5130 = vmatprep.subr.bf16.mxu0 0
        %5131 = vmatpush1.bf16.msra.mxu0 %v5115
        %5132 = vmatprep.subr.bf16.mxu0 0
        %5133 = vmatpush1.bf16.msra.mxu0 %v5114
        %5134 = vmatprep.subr.bf16.mxu0 0
        %5135 = vmatpush1.bf16.msra.mxu0 %v5113
        %5136 = vmatprep.subr.bf16.mxu0 0
        %5137 = vmatpush1.bf16.msra.mxu0 %v5112
        %5138 = vmatprep.subr.bf16.mxu0 0
        %5139 = vmatpush1.bf16.msra.mxu0 %v5111
        %5140 = vmatprep.subr.bf16.mxu0 0
        %5141 = vmatpush1.bf16.msra.mxu0 %v5110
        %5142 = vmatprep.subr.bf16.mxu0 0
        %5143 = vmatpush2.bf16.msra.mxu0 0
        %5144 = vmatprep.subr.bf16.mxu0 0
        %5145 = vmatpush2.bf16.msra.mxu0 0
        %5146 = vmatprep.subr.bf16.mxu0 0
        %5147 = vmatpush2.bf16.msra.mxu0 0
        %5148 = vmatprep.subr.bf16.mxu0 0
        %5149 = vmatpush2.bf16.msra.mxu0 0
        %5150 = vmatprep.subr.bf16.mxu0 0
        %5151 = vmatpush2.bf16.msra.mxu0 0
        %5152 = vmatprep.subr.bf16.mxu0 0
        %5153 = vmatpush2.bf16.msra.mxu0 0
        %5154 = vmatprep.subr.bf16.mxu0 0
        %5155 = vmatpush2.bf16.msra.mxu0 0
        %5156 = vmatprep.subr.bf16.mxu0 0
        %5157 = vmatpush2.bf16.msra.mxu0 0
        %5158 = vmatprep.mubr.bf16.mxu0 0
        %5159 = vmatmul.mubr.bf16.gmra.mxu0 %v5062
        %v5160 = vpop.f32.mrf.mxu0
        %v5161 = vadd.f32 0.0, %v5160
        %v5162 = vpop.f32.mrf.mxu0
        %v5163 = vpop.f32.mrf.mxu0
        %v5164 = vadd.f32 0.0, %v5163
        %v5165 = vpop.f32.mrf.mxu0
        %5166 = vmatprep.mubr.bf16.mxu0 0
        %5167 = vmatmul.mubr.bf16.gmra.mxu0 %v5063
        %v5168 = vpop.f32.mrf.mxu0
        %v5169 = vadd.f32 0.0, %v5168
        %v5170 = vpop.f32.mrf.mxu0
        %v5171 = vpop.f32.mrf.mxu0
        %v5172 = vadd.f32 0.0, %v5171
        %v5173 = vpop.f32.mrf.mxu0
        %5174 = vmatprep.mubr.bf16.mxu0 0
        %5175 = vmatmul.mubr.bf16.gmra.mxu0 %v5064
        %v5176 = vpop.f32.mrf.mxu0
        %v5177 = vadd.f32 0.0, %v5176
        %v5178 = vpop.f32.mrf.mxu0
        %v5179 = vpop.f32.mrf.mxu0
        %v5180 = vadd.f32 0.0, %v5179
        %v5181 = vpop.f32.mrf.mxu0
        %5182 = vmatprep.mubr.bf16.mxu0 0
        %5183 = vmatmul.mubr.bf16.gmra.mxu0 %v5065
        %v5184 = vpop.f32.mrf.mxu0
        %v5185 = vadd.f32 0.0, %v5184
        %v5186 = vpop.f32.mrf.mxu0
        %v5187 = vpop.f32.mrf.mxu0
        %v5188 = vadd.f32 0.0, %v5187
        %v5189 = vpop.f32.mrf.mxu0
        %5190 = vmatprep.mubr.bf16.mxu0 0
        %5191 = vmatmul.mubr.bf16.gmra.mxu0 %v5066
        %v5192 = vpop.f32.mrf.mxu0
        %v5193 = vadd.f32 0.0, %v5192
        %v5194 = vpop.f32.mrf.mxu0
        %v5195 = vpop.f32.mrf.mxu0
        %v5196 = vadd.f32 0.0, %v5195
        %v5197 = vpop.f32.mrf.mxu0
        %5198 = vmatprep.mubr.bf16.mxu0 0
        %5199 = vmatmul.mubr.bf16.gmra.mxu0 %v5067
        %v5200 = vpop.f32.mrf.mxu0
        %v5201 = vadd.f32 0.0, %v5200
        %v5202 = vpop.f32.mrf.mxu0
        %v5203 = vpop.f32.mrf.mxu0
        %v5204 = vadd.f32 0.0, %v5203
        %v5205 = vpop.f32.mrf.mxu0
        %5206 = vmatprep.mubr.bf16.mxu0 0
        %5207 = vmatmul.mubr.bf16.gmra.mxu0 %v5068
        %v5208 = vpop.f32.mrf.mxu0
        %v5209 = vadd.f32 0.0, %v5208
        %v5210 = vpop.f32.mrf.mxu0
        %v5211 = vpop.f32.mrf.mxu0
        %v5212 = vadd.f32 0.0, %v5211
        %v5213 = vpop.f32.mrf.mxu0
        %5214 = vmatprep.mubr.bf16.mxu0 0
        %5215 = vmatmul.mubr.bf16.gmra.mxu0 %v5069
        %v5216 = vpop.f32.mrf.mxu0
        %v5217 = vadd.f32 0.0, %v5216
        %v5218 = vpop.f32.mrf.mxu0
        %v5219 = vpop.f32.mrf.mxu0
        %v5220 = vadd.f32 0.0, %v5219
        %v5221 = vpop.f32.mrf.mxu0
        %5222 = vdwg.mxu0
        %v5223 = vadd.f32 %v4978, %v5161
        %v5224 = vadd.f32 %v4979, %v5164
        %v5225 = vadd.f32 %v4980, %v5169
        %v5226 = vadd.f32 %v4981, %v5172
        %v5227 = vadd.f32 %v4982, %v5177
        %v5228 = vadd.f32 %v4983, %v5180
        %v5229 = vadd.f32 %v4984, %v5185
        %v5230 = vadd.f32 %v4985, %v5188
        %v5231 = vadd.f32 %v4986, %v5193
        %v5232 = vadd.f32 %v4987, %v5196
        %v5233 = vadd.f32 %v4988, %v5201
        %v5234 = vadd.f32 %v4989, %v5204
        %v5235 = vadd.f32 %v4990, %v5209
        %v5236 = vadd.f32 %v4991, %v5212
        %v5237 = vadd.f32 %v4992, %v5217
        %v5238 = vadd.f32 %v4993, %v5220
        %v5239 = vld [vmem:[%s4997] sm:$0xf]
        %v5240 = vld [vmem:[%s4997 + $0x4] sm:$0xf]
        %v5241 = vld [vmem:[%s4997 + $0x8] sm:$0x1]
        %v5242 = vld [vmem:[%s4997 + $0xc] sm:$0xf]
        %v5243 = vld [vmem:[%s4997 + $0x10] sm:$0xf]
        %v5244 = vld [vmem:[%s4997 + $0x14] sm:$0x1]
        %v5245 = vld [vmem:[%s4997 + $0x18] sm:$0xf]
        %v5246 = vld [vmem:[%s4997 + $0x1c] sm:$0xf]
        %v5247 = vld [vmem:[%s4997 + $0x20] sm:$0x1]
        %v5248 = vld [vmem:[%s4997 + $0x24] sm:$0xf]
        %v5249 = vld [vmem:[%s4997 + $0x28] sm:$0xf]
        %v5250 = vld [vmem:[%s4997 + $0x2c] sm:$0x1]
        %v5251 = vld [vmem:[%s4997 + $0x30] sm:$0xf]
        %v5252 = vld [vmem:[%s4997 + $0x34] sm:$0xf]
        %v5253 = vld [vmem:[%s4997 + $0x38] sm:$0x1]
        %v5254 = vld [vmem:[%s4997 + $0x3c] sm:$0xf]
        %v5255 = vld [vmem:[%s4997 + $0x40] sm:$0xf]
        %v5256 = vld [vmem:[%s4997 + $0x44] sm:$0x1]
        %v5257 = vld [vmem:[%s4997 + $0x48] sm:$0xf]
        %v5258 = vld [vmem:[%s4997 + $0x4c] sm:$0xf]
        %v5259 = vld [vmem:[%s4997 + $0x50] sm:$0x1]
        %v5260 = vld [vmem:[%s4997 + $0x54] sm:$0xf]
        %v5261 = vld [vmem:[%s4997 + $0x58] sm:$0xf]
        %v5262 = vld [vmem:[%s4997 + $0x5c] sm:$0x1]
        %v5264 = vshrl.u32 %v5239, 16
        %v5266 = vrot.slane %v5264, 4
        %v5267 = vshll.u32 %v5239, 16
        %v5269 = vrot.slane %v5267, 5
        %v5270 = vor.u32 %v5266, %v5269
        %v5271 = vrot.slane %v5270, 4
        %v5273 = vshll.u32 %v5240, 16
        %v5275 = vrot.slane %v5273, 5
        %v5276 = vsel %vm226, %v5271, %v5275
        %v5277 = vshrl.u32 %v5240, 16
        %v5279 = vrot.slane %v5277, 4
        %v5280 = vor.u32 %v5279, %v5275
        %v5281 = vrot.slane %v5280, 4
        %v5283 = vshll.u32 %v5241, 16
        %v5285 = vrot.slane %v5283, 5
        %v5286 = vsel %vm226, %v5281, %v5285
        %v5288 = vshrl.u32 %v5242, 16
        %v5290 = vrot.slane %v5288, 4
        %v5291 = vshll.u32 %v5242, 16
        %v5293 = vrot.slane %v5291, 5
        %v5294 = vor.u32 %v5290, %v5293
        %v5295 = vrot.slane %v5294, 4
        %v5297 = vshll.u32 %v5243, 16
        %v5299 = vrot.slane %v5297, 5
        %v5300 = vsel %vm226, %v5295, %v5299
        %v5301 = vshrl.u32 %v5243, 16
        %v5303 = vrot.slane %v5301, 4
        %v5304 = vor.u32 %v5303, %v5299
        %v5305 = vrot.slane %v5304, 4
        %v5307 = vshll.u32 %v5244, 16
        %v5309 = vrot.slane %v5307, 5
        %v5310 = vsel %vm226, %v5305, %v5309
        %v5312 = vshrl.u32 %v5245, 16
        %v5314 = vrot.slane %v5312, 4
        %v5315 = vshll.u32 %v5245, 16
        %v5317 = vrot.slane %v5315, 5
        %v5318 = vor.u32 %v5314, %v5317
        %v5319 = vrot.slane %v5318, 4
        %v5321 = vshll.u32 %v5246, 16
        %v5323 = vrot.slane %v5321, 5
        %v5324 = vsel %vm226, %v5319, %v5323
        %v5325 = vshrl.u32 %v5246, 16
        %v5327 = vrot.slane %v5325, 4
        %v5328 = vor.u32 %v5327, %v5323
        %v5329 = vrot.slane %v5328, 4
        %v5331 = vshll.u32 %v5247, 16
        %v5333 = vrot.slane %v5331, 5
        %v5334 = vsel %vm226, %v5329, %v5333
        %v5336 = vshrl.u32 %v5248, 16
        %v5338 = vrot.slane %v5336, 4
        %v5339 = vshll.u32 %v5248, 16
        %v5341 = vrot.slane %v5339, 5
        %v5342 = vor.u32 %v5338, %v5341
        %v5343 = vrot.slane %v5342, 4
        %v5345 = vshll.u32 %v5249, 16
        %v5347 = vrot.slane %v5345, 5
        %v5348 = vsel %vm226, %v5343, %v5347
        %v5349 = vshrl.u32 %v5249, 16
        %v5351 = vrot.slane %v5349, 4
        %v5352 = vor.u32 %v5351, %v5347
        %v5353 = vrot.slane %v5352, 4
        %v5355 = vshll.u32 %v5250, 16
        %v5357 = vrot.slane %v5355, 5
        %v5358 = vsel %vm226, %v5353, %v5357
        %v5360 = vshrl.u32 %v5251, 16
        %v5362 = vrot.slane %v5360, 4
        %v5363 = vshll.u32 %v5251, 16
        %v5365 = vrot.slane %v5363, 5
        %v5366 = vor.u32 %v5362, %v5365
        %v5367 = vrot.slane %v5366, 4
        %v5369 = vshll.u32 %v5252, 16
        %v5371 = vrot.slane %v5369, 5
        %v5372 = vsel %vm226, %v5367, %v5371
        %v5373 = vshrl.u32 %v5252, 16
        %v5375 = vrot.slane %v5373, 4
        %v5376 = vor.u32 %v5375, %v5371
        %v5377 = vrot.slane %v5376, 4
        %v5379 = vshll.u32 %v5253, 16
        %v5381 = vrot.slane %v5379, 5
        %v5382 = vsel %vm226, %v5377, %v5381
        %v5384 = vshrl.u32 %v5254, 16
        %v5386 = vrot.slane %v5384, 4
        %v5387 = vshll.u32 %v5254, 16
        %v5389 = vrot.slane %v5387, 5
        %v5390 = vor.u32 %v5386, %v5389
        %v5391 = vrot.slane %v5390, 4
        %v5393 = vshll.u32 %v5255, 16
        %v5395 = vrot.slane %v5393, 5
        %v5396 = vsel %vm226, %v5391, %v5395
        %v5397 = vshrl.u32 %v5255, 16
        %v5399 = vrot.slane %v5397, 4
        %v5400 = vor.u32 %v5399, %v5395
        %v5401 = vrot.slane %v5400, 4
        %v5403 = vshll.u32 %v5256, 16
        %v5405 = vrot.slane %v5403, 5
        %v5406 = vsel %vm226, %v5401, %v5405
        %v5408 = vshrl.u32 %v5257, 16
        %v5410 = vrot.slane %v5408, 4
        %v5411 = vshll.u32 %v5257, 16
        %v5413 = vrot.slane %v5411, 5
        %v5414 = vor.u32 %v5410, %v5413
        %v5415 = vrot.slane %v5414, 4
        %v5417 = vshll.u32 %v5258, 16
        %v5419 = vrot.slane %v5417, 5
        %v5420 = vsel %vm226, %v5415, %v5419
        %v5421 = vshrl.u32 %v5258, 16
        %v5423 = vrot.slane %v5421, 4
        %v5424 = vor.u32 %v5423, %v5419
        %v5425 = vrot.slane %v5424, 4
        %v5427 = vshll.u32 %v5259, 16
        %v5429 = vrot.slane %v5427, 5
        %v5430 = vsel %vm226, %v5425, %v5429
        %v5432 = vshrl.u32 %v5260, 16
        %v5434 = vrot.slane %v5432, 4
        %v5435 = vshll.u32 %v5260, 16
        %v5437 = vrot.slane %v5435, 5
        %v5438 = vor.u32 %v5434, %v5437
        %v5439 = vrot.slane %v5438, 4
        %v5441 = vshll.u32 %v5261, 16
        %v5443 = vrot.slane %v5441, 5
        %v5444 = vsel %vm226, %v5439, %v5443
        %v5445 = vshrl.u32 %v5261, 16
        %v5447 = vrot.slane %v5445, 4
        %v5448 = vor.u32 %v5447, %v5443
        %v5449 = vrot.slane %v5448, 4
        %v5451 = vshll.u32 %v5262, 16
        %v5453 = vrot.slane %v5451, 5
        %v5454 = vsel %vm226, %v5449, %v5453
        %v5455 = vld [vmem:[%s2531] sm:$0xf]
        %v5456 = vld [vmem:[%s2531 + $0x4] sm:$0xf]
        %v5457 = vld [vmem:[%s2531 + $0x8] sm:$0xf]
        %v5458 = vld [vmem:[%s2531 + $0xc] sm:$0xf]
        %v5459 = vld [vmem:[%s2531 + $0x10] sm:$0xf]
        %v5460 = vld [vmem:[%s2531 + $0x14] sm:$0xf]
        %v5461 = vld [vmem:[%s2531 + $0x18] sm:$0xf]
        %v5462 = vld [vmem:[%s2531 + $0x1c] sm:$0xf]
        %v5463 = vld [vmem:[%s2531 + $0x20] sm:$0xf]
        %v5464 = vld [vmem:[%s2531 + $0x24] sm:$0xf]
        %v5465 = vld [vmem:[%s2531 + $0x28] sm:$0xf]
        %v5466 = vld [vmem:[%s2531 + $0x2c] sm:$0xf]
        %v5467 = vld [vmem:[%s2531 + $0x30] sm:$0xf]
        %v5468 = vld [vmem:[%s2531 + $0x34] sm:$0xf]
        %v5469 = vld [vmem:[%s2531 + $0x38] sm:$0xf]
        %v5470 = vld [vmem:[%s2531 + $0x3c] sm:$0xf]
        %v5471 = vunpack.c.l.b16 %v5276
        %v5472 = vunpack.c.l.b16 %v5286
        %v5473 = vunpack.c.l.b16 %v5300
        %v5474 = vunpack.c.l.b16 %v5310
        %v5475 = vunpack.c.l.b16 %v5324
        %v5476 = vunpack.c.l.b16 %v5334
        %v5477 = vunpack.c.l.b16 %v5348
        %v5478 = vunpack.c.l.b16 %v5358
        %v5479 = vunpack.c.l.b16 %v5372
        %v5480 = vunpack.c.l.b16 %v5382
        %v5481 = vunpack.c.l.b16 %v5396
        %v5482 = vunpack.c.l.b16 %v5406
        %v5483 = vunpack.c.l.b16 %v5420
        %v5484 = vunpack.c.l.b16 %v5430
        %v5485 = vunpack.c.l.b16 %v5444
        %v5486 = vunpack.c.l.b16 %v5454
        %v5487 = vpack.c.b16 %v5472, %v5471
        %v5488 = vpack.c.b16 %v5474, %v5473
        %v5489 = vpack.c.b16 %v5476, %v5475
        %v5490 = vpack.c.b16 %v5478, %v5477
        %v5491 = vpack.c.b16 %v5480, %v5479
        %v5492 = vpack.c.b16 %v5482, %v5481
        %v5493 = vpack.c.b16 %v5484, %v5483
        %v5494 = vpack.c.b16 %v5486, %v5485
        %v5519 = vunpack.c.l.b16 %v5455
        %v5520 = vunpack.c.l.b16 %v5456
        %v5521 = vunpack.c.l.b16 %v5457
        %v5522 = vunpack.c.l.b16 %v5458
        %v5523 = vunpack.c.l.b16 %v5459
        %v5524 = vunpack.c.l.b16 %v5460
        %v5525 = vunpack.c.l.b16 %v5461
        %v5526 = vunpack.c.l.b16 %v5462
        %v5527 = vunpack.c.l.b16 %v5463
        %v5528 = vunpack.c.l.b16 %v5464
        %v5529 = vunpack.c.l.b16 %v5465
        %v5530 = vunpack.c.l.b16 %v5466
        %v5531 = vunpack.c.l.b16 %v5467
        %v5532 = vunpack.c.l.b16 %v5468
        %v5533 = vunpack.c.l.b16 %v5469
        %v5534 = vunpack.c.l.b16 %v5470
        %v5535 = vpack.c.b16 %v5520, %v5519
        %v5536 = vpack.c.b16 %v5522, %v5521
        %v5537 = vpack.c.b16 %v5524, %v5523
        %v5538 = vpack.c.b16 %v5526, %v5525
        %v5539 = vpack.c.b16 %v5528, %v5527
        %v5540 = vpack.c.b16 %v5530, %v5529
        %v5541 = vpack.c.b16 %v5532, %v5531
        %v5542 = vpack.c.b16 %v5534, %v5533
        %5551 = vmatprep.subr.bf16.mxu0 0
        %5552 = vmatpush1.bf16.msra.mxu0 %v5542
        %5553 = vmatprep.subr.bf16.mxu0 0
        %5554 = vmatpush1.bf16.msra.mxu0 %v5541
        %5555 = vmatprep.subr.bf16.mxu0 0
        %5556 = vmatpush1.bf16.msra.mxu0 %v5540
        %5557 = vmatprep.subr.bf16.mxu0 0
        %5558 = vmatpush1.bf16.msra.mxu0 %v5539
        %5559 = vmatprep.subr.bf16.mxu0 0
        %5560 = vmatpush1.bf16.msra.mxu0 %v5538
        %5561 = vmatprep.subr.bf16.mxu0 0
        %5562 = vmatpush1.bf16.msra.mxu0 %v5537
        %5563 = vmatprep.subr.bf16.mxu0 0
        %5564 = vmatpush1.bf16.msra.mxu0 %v5536
        %5565 = vmatprep.subr.bf16.mxu0 0
        %5566 = vmatpush1.bf16.msra.mxu0 %v5535
        %5567 = vmatprep.subr.bf16.mxu0 0
        %5568 = vmatpush2.bf16.msra.mxu0 0
        %5569 = vmatprep.subr.bf16.mxu0 0
        %5570 = vmatpush2.bf16.msra.mxu0 0
        %5571 = vmatprep.subr.bf16.mxu0 0
        %5572 = vmatpush2.bf16.msra.mxu0 0
        %5573 = vmatprep.subr.bf16.mxu0 0
        %5574 = vmatpush2.bf16.msra.mxu0 0
        %5575 = vmatprep.subr.bf16.mxu0 0
        %5576 = vmatpush2.bf16.msra.mxu0 0
        %5577 = vmatprep.subr.bf16.mxu0 0
        %5578 = vmatpush2.bf16.msra.mxu0 0
        %5579 = vmatprep.subr.bf16.mxu0 0
        %5580 = vmatpush2.bf16.msra.mxu0 0
        %5581 = vmatprep.subr.bf16.mxu0 0
        %5582 = vmatpush2.bf16.msra.mxu0 0
        %5583 = vmatprep.mubr.bf16.mxu0 0
        %5584 = vmatmul.mubr.bf16.gmra.mxu0 %v5487
        %v5585 = vpop.f32.mrf.mxu0
        %v5586 = vadd.f32 0.0, %v5585
        %v5587 = vpop.f32.mrf.mxu0
        %v5588 = vpop.f32.mrf.mxu0
        %v5589 = vadd.f32 0.0, %v5588
        %v5590 = vpop.f32.mrf.mxu0
        %5591 = vmatprep.mubr.bf16.mxu0 0
        %5592 = vmatmul.mubr.bf16.gmra.mxu0 %v5488
        %v5593 = vpop.f32.mrf.mxu0
        %v5594 = vadd.f32 0.0, %v5593
        %v5595 = vpop.f32.mrf.mxu0
        %v5596 = vpop.f32.mrf.mxu0
        %v5597 = vadd.f32 0.0, %v5596
        %v5598 = vpop.f32.mrf.mxu0
        %5599 = vmatprep.mubr.bf16.mxu0 0
        %5600 = vmatmul.mubr.bf16.gmra.mxu0 %v5489
        %v5601 = vpop.f32.mrf.mxu0
        %v5602 = vadd.f32 0.0, %v5601
        %v5603 = vpop.f32.mrf.mxu0
        %v5604 = vpop.f32.mrf.mxu0
        %v5605 = vadd.f32 0.0, %v5604
        %v5606 = vpop.f32.mrf.mxu0
        %5607 = vmatprep.mubr.bf16.mxu0 0
        %5608 = vmatmul.mubr.bf16.gmra.mxu0 %v5490
        %v5609 = vpop.f32.mrf.mxu0
        %v5610 = vadd.f32 0.0, %v5609
        %v5611 = vpop.f32.mrf.mxu0
        %v5612 = vpop.f32.mrf.mxu0
        %v5613 = vadd.f32 0.0, %v5612
        %v5614 = vpop.f32.mrf.mxu0
        %5615 = vmatprep.mubr.bf16.mxu0 0
        %5616 = vmatmul.mubr.bf16.gmra.mxu0 %v5491
        %v5617 = vpop.f32.mrf.mxu0
        %v5618 = vadd.f32 0.0, %v5617
        %v5619 = vpop.f32.mrf.mxu0
        %v5620 = vpop.f32.mrf.mxu0
        %v5621 = vadd.f32 0.0, %v5620
        %v5622 = vpop.f32.mrf.mxu0
        %5623 = vmatprep.mubr.bf16.mxu0 0
        %5624 = vmatmul.mubr.bf16.gmra.mxu0 %v5492
        %v5625 = vpop.f32.mrf.mxu0
        %v5626 = vadd.f32 0.0, %v5625
        %v5627 = vpop.f32.mrf.mxu0
        %v5628 = vpop.f32.mrf.mxu0
        %v5629 = vadd.f32 0.0, %v5628
        %v5630 = vpop.f32.mrf.mxu0
        %5631 = vmatprep.mubr.bf16.mxu0 0
        %5632 = vmatmul.mubr.bf16.gmra.mxu0 %v5493
        %v5633 = vpop.f32.mrf.mxu0
        %v5634 = vadd.f32 0.0, %v5633
        %v5635 = vpop.f32.mrf.mxu0
        %v5636 = vpop.f32.mrf.mxu0
        %v5637 = vadd.f32 0.0, %v5636
        %v5638 = vpop.f32.mrf.mxu0
        %5639 = vmatprep.mubr.bf16.mxu0 0
        %5640 = vmatmul.mubr.bf16.gmra.mxu0 %v5494
        %v5641 = vpop.f32.mrf.mxu0
        %v5642 = vadd.f32 0.0, %v5641
        %v5643 = vpop.f32.mrf.mxu0
        %v5644 = vpop.f32.mrf.mxu0
        %v5645 = vadd.f32 0.0, %v5644
        %v5646 = vpop.f32.mrf.mxu0
        %5647 = vdwg.mxu0
        %v5648 = vadd.f32 %v5223, %v5586
        %v5649 = vadd.f32 %v5224, %v5589
        %v5650 = vadd.f32 %v5225, %v5594
        %v5651 = vadd.f32 %v5226, %v5597
        %v5652 = vadd.f32 %v5227, %v5602
        %v5653 = vadd.f32 %v5228, %v5605
        %v5654 = vadd.f32 %v5229, %v5610
        %v5655 = vadd.f32 %v5230, %v5613
        %v5656 = vadd.f32 %v5231, %v5618
        %v5657 = vadd.f32 %v5232, %v5621
        %v5658 = vadd.f32 %v5233, %v5626
        %v5659 = vadd.f32 %v5234, %v5629
        %v5660 = vadd.f32 %v5235, %v5634
        %v5661 = vadd.f32 %v5236, %v5637
        %v5662 = vadd.f32 %v5237, %v5642
        %v5663 = vadd.f32 %v5238, %v5645
        %v5664 = vld [vmem:[%s4997] sm:$0xe]
        %v5665 = vld [vmem:[%s4997 + $0xc] sm:$0xe]
        %v5666 = vld [vmem:[%s4997 + $0x18] sm:$0xe]
        %v5667 = vld [vmem:[%s4997 + $0x24] sm:$0xe]
        %v5668 = vld [vmem:[%s4997 + $0x30] sm:$0xe]
        %v5669 = vld [vmem:[%s4997 + $0x3c] sm:$0xe]
        %v5670 = vld [vmem:[%s4997 + $0x48] sm:$0xe]
        %v5671 = vld [vmem:[%s4997 + $0x54] sm:$0xe]
        %v5696 = vrot.slane %v5664, 5
        %v5697 = vrot.slane %v5696, 4
        %v5698 = vrot.slane %v5240, 5
        %v5699 = vsel %vm832, %v5697, %v5698
        %v5700 = vrot.slane %v5698, 4
        %v5701 = vrot.slane %v5241, 5
        %v5702 = vsel %vm832, %v5700, %v5701
        %v5703 = vrot.slane %v5665, 5
        %v5704 = vrot.slane %v5703, 4
        %v5705 = vrot.slane %v5243, 5
        %v5706 = vsel %vm832, %v5704, %v5705
        %v5707 = vrot.slane %v5705, 4
        %v5708 = vrot.slane %v5244, 5
        %v5709 = vsel %vm832, %v5707, %v5708
        %v5710 = vrot.slane %v5666, 5
        %v5711 = vrot.slane %v5710, 4
        %v5712 = vrot.slane %v5246, 5
        %v5713 = vsel %vm832, %v5711, %v5712
        %v5714 = vrot.slane %v5712, 4
        %v5715 = vrot.slane %v5247, 5
        %v5716 = vsel %vm832, %v5714, %v5715
        %v5717 = vrot.slane %v5667, 5
        %v5718 = vrot.slane %v5717, 4
        %v5719 = vrot.slane %v5249, 5
        %v5720 = vsel %vm832, %v5718, %v5719
        %v5721 = vrot.slane %v5719, 4
        %v5722 = vrot.slane %v5250, 5
        %v5723 = vsel %vm832, %v5721, %v5722
        %v5724 = vrot.slane %v5668, 5
        %v5725 = vrot.slane %v5724, 4
        %v5726 = vrot.slane %v5252, 5
        %v5727 = vsel %vm832, %v5725, %v5726
        %v5728 = vrot.slane %v5726, 4
        %v5729 = vrot.slane %v5253, 5
        %v5730 = vsel %vm832, %v5728, %v5729
        %v5731 = vrot.slane %v5669, 5
        %v5732 = vrot.slane %v5731, 4
        %v5733 = vrot.slane %v5255, 5
        %v5734 = vsel %vm832, %v5732, %v5733
        %v5735 = vrot.slane %v5733, 4
        %v5736 = vrot.slane %v5256, 5
        %v5737 = vsel %vm832, %v5735, %v5736
        %v5738 = vrot.slane %v5670, 5
        %v5739 = vrot.slane %v5738, 4
        %v5740 = vrot.slane %v5258, 5
        %v5741 = vsel %vm832, %v5739, %v5740
        %v5742 = vrot.slane %v5740, 4
        %v5743 = vrot.slane %v5259, 5
        %v5744 = vsel %vm832, %v5742, %v5743
        %v5745 = vrot.slane %v5671, 5
        %v5746 = vrot.slane %v5745, 4
        %v5747 = vrot.slane %v5261, 5
        %v5748 = vsel %vm832, %v5746, %v5747
        %v5749 = vrot.slane %v5747, 4
        %v5750 = vrot.slane %v5262, 5
        %v5751 = vsel %vm832, %v5749, %v5750
        %v5752 = vld [vmem:[%s2829] sm:$0xf]
        %v5753 = vld [vmem:[%s2829 + $0x4] sm:$0xf]
        %v5754 = vld [vmem:[%s2829 + $0x8] sm:$0xf]
        %v5755 = vld [vmem:[%s2829 + $0xc] sm:$0xf]
        %v5756 = vld [vmem:[%s2829 + $0x10] sm:$0xf]
        %v5757 = vld [vmem:[%s2829 + $0x14] sm:$0xf]
        %v5758 = vld [vmem:[%s2829 + $0x18] sm:$0xf]
        %v5759 = vld [vmem:[%s2829 + $0x1c] sm:$0xf]
        %v5760 = vld [vmem:[%s2829 + $0x20] sm:$0xf]
        %v5761 = vld [vmem:[%s2829 + $0x24] sm:$0xf]
        %v5762 = vld [vmem:[%s2829 + $0x28] sm:$0xf]
        %v5763 = vld [vmem:[%s2829 + $0x2c] sm:$0xf]
        %v5764 = vld [vmem:[%s2829 + $0x30] sm:$0xf]
        %v5765 = vld [vmem:[%s2829 + $0x34] sm:$0xf]
        %v5766 = vld [vmem:[%s2829 + $0x38] sm:$0xf]
        %v5767 = vld [vmem:[%s2829 + $0x3c] sm:$0xf]
        %v5768 = vunpack.c.l.b16 %v5699
        %v5769 = vunpack.c.l.b16 %v5702
        %v5770 = vunpack.c.l.b16 %v5706
        %v5771 = vunpack.c.l.b16 %v5709
        %v5772 = vunpack.c.l.b16 %v5713
        %v5773 = vunpack.c.l.b16 %v5716
        %v5774 = vunpack.c.l.b16 %v5720
        %v5775 = vunpack.c.l.b16 %v5723
        %v5776 = vunpack.c.l.b16 %v5727
        %v5777 = vunpack.c.l.b16 %v5730
        %v5778 = vunpack.c.l.b16 %v5734
        %v5779 = vunpack.c.l.b16 %v5737
        %v5780 = vunpack.c.l.b16 %v5741
        %v5781 = vunpack.c.l.b16 %v5744
        %v5782 = vunpack.c.l.b16 %v5748
        %v5783 = vunpack.c.l.b16 %v5751
        %v5784 = vpack.c.b16 %v5769, %v5768
        %v5785 = vpack.c.b16 %v5771, %v5770
        %v5786 = vpack.c.b16 %v5773, %v5772
        %v5787 = vpack.c.b16 %v5775, %v5774
        %v5788 = vpack.c.b16 %v5777, %v5776
        %v5789 = vpack.c.b16 %v5779, %v5778
        %v5790 = vpack.c.b16 %v5781, %v5780
        %v5791 = vpack.c.b16 %v5783, %v5782
        %v5816 = vunpack.c.l.b16 %v5752
        %v5817 = vunpack.c.l.b16 %v5753
        %v5818 = vunpack.c.l.b16 %v5754
        %v5819 = vunpack.c.l.b16 %v5755
        %v5820 = vunpack.c.l.b16 %v5756
        %v5821 = vunpack.c.l.b16 %v5757
        %v5822 = vunpack.c.l.b16 %v5758
        %v5823 = vunpack.c.l.b16 %v5759
        %v5824 = vunpack.c.l.b16 %v5760
        %v5825 = vunpack.c.l.b16 %v5761
        %v5826 = vunpack.c.l.b16 %v5762
        %v5827 = vunpack.c.l.b16 %v5763
        %v5828 = vunpack.c.l.b16 %v5764
        %v5829 = vunpack.c.l.b16 %v5765
        %v5830 = vunpack.c.l.b16 %v5766
        %v5831 = vunpack.c.l.b16 %v5767
        %v5832 = vpack.c.b16 %v5817, %v5816
        %v5833 = vpack.c.b16 %v5819, %v5818
        %v5834 = vpack.c.b16 %v5821, %v5820
        %v5835 = vpack.c.b16 %v5823, %v5822
        %v5836 = vpack.c.b16 %v5825, %v5824
        %v5837 = vpack.c.b16 %v5827, %v5826
        %v5838 = vpack.c.b16 %v5829, %v5828
        %v5839 = vpack.c.b16 %v5831, %v5830
        %5848 = vmatprep.subr.bf16.mxu0 0
        %5849 = vmatpush1.bf16.msra.mxu0 %v5839
        %5850 = vmatprep.subr.bf16.mxu0 0
        %5851 = vmatpush1.bf16.msra.mxu0 %v5838
        %5852 = vmatprep.subr.bf16.mxu0 0
        %5853 = vmatpush1.bf16.msra.mxu0 %v5837
        %5854 = vmatprep.subr.bf16.mxu0 0
        %5855 = vmatpush1.bf16.msra.mxu0 %v5836
        %5856 = vmatprep.subr.bf16.mxu0 0
        %5857 = vmatpush1.bf16.msra.mxu0 %v5835
        %5858 = vmatprep.subr.bf16.mxu0 0
        %5859 = vmatpush1.bf16.msra.mxu0 %v5834
        %5860 = vmatprep.subr.bf16.mxu0 0
        %5861 = vmatpush1.bf16.msra.mxu0 %v5833
        %5862 = vmatprep.subr.bf16.mxu0 0
        %5863 = vmatpush1.bf16.msra.mxu0 %v5832
        %5864 = vmatprep.subr.bf16.mxu0 0
        %5865 = vmatpush2.bf16.msra.mxu0 0
        %5866 = vmatprep.subr.bf16.mxu0 0
        %5867 = vmatpush2.bf16.msra.mxu0 0
        %5868 = vmatprep.subr.bf16.mxu0 0
        %5869 = vmatpush2.bf16.msra.mxu0 0
        %5870 = vmatprep.subr.bf16.mxu0 0
        %5871 = vmatpush2.bf16.msra.mxu0 0
        %5872 = vmatprep.subr.bf16.mxu0 0
        %5873 = vmatpush2.bf16.msra.mxu0 0
        %5874 = vmatprep.subr.bf16.mxu0 0
        %5875 = vmatpush2.bf16.msra.mxu0 0
        %5876 = vmatprep.subr.bf16.mxu0 0
        %5877 = vmatpush2.bf16.msra.mxu0 0
        %5878 = vmatprep.subr.bf16.mxu0 0
        %5879 = vmatpush2.bf16.msra.mxu0 0
        %5880 = vmatprep.mubr.bf16.mxu0 0
        %5881 = vmatmul.mubr.bf16.gmra.mxu0 %v5784
        %v5882 = vpop.f32.mrf.mxu0
        %v5883 = vadd.f32 0.0, %v5882
        %v5884 = vpop.f32.mrf.mxu0
        %v5885 = vpop.f32.mrf.mxu0
        %v5886 = vadd.f32 0.0, %v5885
        %v5887 = vpop.f32.mrf.mxu0
        %5888 = vmatprep.mubr.bf16.mxu0 0
        %5889 = vmatmul.mubr.bf16.gmra.mxu0 %v5785
        %v5890 = vpop.f32.mrf.mxu0
        %v5891 = vadd.f32 0.0, %v5890
        %v5892 = vpop.f32.mrf.mxu0
        %v5893 = vpop.f32.mrf.mxu0
        %v5894 = vadd.f32 0.0, %v5893
        %v5895 = vpop.f32.mrf.mxu0
        %5896 = vmatprep.mubr.bf16.mxu0 0
        %5897 = vmatmul.mubr.bf16.gmra.mxu0 %v5786
        %v5898 = vpop.f32.mrf.mxu0
        %v5899 = vadd.f32 0.0, %v5898
        %v5900 = vpop.f32.mrf.mxu0
        %v5901 = vpop.f32.mrf.mxu0
        %v5902 = vadd.f32 0.0, %v5901
        %v5903 = vpop.f32.mrf.mxu0
        %5904 = vmatprep.mubr.bf16.mxu0 0
        %5905 = vmatmul.mubr.bf16.gmra.mxu0 %v5787
        %v5906 = vpop.f32.mrf.mxu0
        %v5907 = vadd.f32 0.0, %v5906
        %v5908 = vpop.f32.mrf.mxu0
        %v5909 = vpop.f32.mrf.mxu0
        %v5910 = vadd.f32 0.0, %v5909
        %v5911 = vpop.f32.mrf.mxu0
        %5912 = vmatprep.mubr.bf16.mxu0 0
        %5913 = vmatmul.mubr.bf16.gmra.mxu0 %v5788
        %v5914 = vpop.f32.mrf.mxu0
        %v5915 = vadd.f32 0.0, %v5914
        %v5916 = vpop.f32.mrf.mxu0
        %v5917 = vpop.f32.mrf.mxu0
        %v5918 = vadd.f32 0.0, %v5917
        %v5919 = vpop.f32.mrf.mxu0
        %5920 = vmatprep.mubr.bf16.mxu0 0
        %5921 = vmatmul.mubr.bf16.gmra.mxu0 %v5789
        %v5922 = vpop.f32.mrf.mxu0
        %v5923 = vadd.f32 0.0, %v5922
        %v5924 = vpop.f32.mrf.mxu0
        %v5925 = vpop.f32.mrf.mxu0
        %v5926 = vadd.f32 0.0, %v5925
        %v5927 = vpop.f32.mrf.mxu0
        %5928 = vmatprep.mubr.bf16.mxu0 0
        %5929 = vmatmul.mubr.bf16.gmra.mxu0 %v5790
        %v5930 = vpop.f32.mrf.mxu0
        %v5931 = vadd.f32 0.0, %v5930
        %v5932 = vpop.f32.mrf.mxu0
        %v5933 = vpop.f32.mrf.mxu0
        %v5934 = vadd.f32 0.0, %v5933
        %v5935 = vpop.f32.mrf.mxu0
        %5936 = vmatprep.mubr.bf16.mxu0 0
        %5937 = vmatmul.mubr.bf16.gmra.mxu0 %v5791
        %v5938 = vpop.f32.mrf.mxu0
        %v5939 = vadd.f32 0.0, %v5938
        %v5940 = vpop.f32.mrf.mxu0
        %v5941 = vpop.f32.mrf.mxu0
        %v5942 = vadd.f32 0.0, %v5941
        %v5943 = vpop.f32.mrf.mxu0
        %5944 = vdwg.mxu0
        %v5945 = vadd.f32 %v5648, %v5883
        %v5946 = vadd.f32 %v5649, %v5886
        %v5947 = vadd.f32 %v5650, %v5891
        %v5948 = vadd.f32 %v5651, %v5894
        %v5949 = vadd.f32 %v5652, %v5899
        %v5950 = vadd.f32 %v5653, %v5902
        %v5951 = vadd.f32 %v5654, %v5907
        %v5952 = vadd.f32 %v5655, %v5910
        %v5953 = vadd.f32 %v5656, %v5915
        %v5954 = vadd.f32 %v5657, %v5918
        %v5955 = vadd.f32 %v5658, %v5923
        %v5956 = vadd.f32 %v5659, %v5926
        %v5957 = vadd.f32 %v5660, %v5931
        %v5958 = vadd.f32 %v5661, %v5934
        %v5959 = vadd.f32 %v5662, %v5939
        %v5960 = vadd.f32 %v5663, %v5942
        %s5961 = smul.u32 8, 16
        %s5962 = scalar_lea.vmem %s167, %s5961 [#allocation2]
        %5963 = vst [vmem:[%s5962] sm:$0xff] %v5945
        %5964 = vst [vmem:[%s5962 + $0x8] sm:$0xff] %v5946
        %5965 = vst [vmem:[%s5962 + $0x10] sm:$0xff] %v5947
        %5966 = vst [vmem:[%s5962 + $0x18] sm:$0xff] %v5948
        %5967 = vst [vmem:[%s5962 + $0x20] sm:$0xff] %v5949
        %5968 = vst [vmem:[%s5962 + $0x28] sm:$0xff] %v5950
        %5969 = vst [vmem:[%s5962 + $0x30] sm:$0xff] %v5951
        %5970 = vst [vmem:[%s5962 + $0x38] sm:$0xff] %v5952
        %5971 = vst [vmem:[%s5962 + $0x40] sm:$0xff] %v5953
        %5972 = vst [vmem:[%s5962 + $0x48] sm:$0xff] %v5954
        %5973 = vst [vmem:[%s5962 + $0x50] sm:$0xff] %v5955
        %5974 = vst [vmem:[%s5962 + $0x58] sm:$0xff] %v5956
        %5975 = vst [vmem:[%s5962 + $0x60] sm:$0xff] %v5957
        %5976 = vst [vmem:[%s5962 + $0x68] sm:$0xff] %v5958
        %5977 = vst [vmem:[%s5962 + $0x70] sm:$0xff] %v5959
        %5978 = vst [vmem:[%s5962 + $0x78] sm:$0xff] %v5960
        %v5979 = vadd.f32 %v5945, %v5946
        %v5980 = vadd.f32 %v5979, %v5947
        %v5981 = vadd.f32 %v5980, %v5948
        %v5982 = vadd.f32 %v5981, %v5949
        %v5983 = vadd.f32 %v5982, %v5950
        %v5984 = vadd.f32 %v5983, %v5951
        %v5985 = vadd.f32 %v5984, %v5952
        %v5986 = vadd.f32 %v5985, %v5953
        %v5987 = vadd.f32 %v5986, %v5954
        %v5988 = vadd.f32 %v5987, %v5955
        %v5989 = vadd.f32 %v5988, %v5956
        %v5990 = vadd.f32 %v5989, %v5957
        %v5991 = vadd.f32 %v5990, %v5958
        %v5992 = vadd.f32 %v5991, %v5959
        %v5993 = vadd.f32 %v5992, %v5960
        %v5994 = vrot.slane %v5993, 4
        %v5995 = vadd.f32 %v5993, %v5994
        %v5996 = vrot.slane %v5995, 2
        %v5997 = vadd.f32 %v5995, %v5996
        %v5998 = vrot.slane %v5997, 1
        %v5999 = vadd.f32 %v5997, %v5998
        %v6000 = vadd.f32 %v3078, %v5999
        %v6001 = vmul.f32 %v5945, %v5945
        %v6002 = vmul.f32 %v5946, %v5946
        %v6003 = vmul.f32 %v5947, %v5947
        %v6004 = vmul.f32 %v5948, %v5948
        %v6005 = vmul.f32 %v5949, %v5949
        %v6006 = vmul.f32 %v5950, %v5950
        %v6007 = vmul.f32 %v5951, %v5951
        %v6008 = vmul.f32 %v5952, %v5952
        %v6009 = vmul.f32 %v5953, %v5953
        %v6010 = vmul.f32 %v5954, %v5954
        %v6011 = vmul.f32 %v5955, %v5955
        %v6012 = vmul.f32 %v5956, %v5956
        %v6013 = vmul.f32 %v5957, %v5957
        %v6014 = vmul.f32 %v5958, %v5958
        %v6015 = vmul.f32 %v5959, %v5959
        %v6016 = vmul.f32 %v5960, %v5960
        %v6017 = vadd.f32 %v6001, %v6002
        %v6018 = vadd.f32 %v6017, %v6003
        %v6019 = vadd.f32 %v6018, %v6004
        %v6020 = vadd.f32 %v6019, %v6005
        %v6021 = vadd.f32 %v6020, %v6006
        %v6022 = vadd.f32 %v6021, %v6007
        %v6023 = vadd.f32 %v6022, %v6008
        %v6024 = vadd.f32 %v6023, %v6009
        %v6025 = vadd.f32 %v6024, %v6010
        %v6026 = vadd.f32 %v6025, %v6011
        %v6027 = vadd.f32 %v6026, %v6012
        %v6028 = vadd.f32 %v6027, %v6013
        %v6029 = vadd.f32 %v6028, %v6014
        %v6030 = vadd.f32 %v6029, %v6015
        %v6031 = vadd.f32 %v6030, %v6016
        %v6032 = vrot.slane %v6031, 4
        %v6033 = vadd.f32 %v6031, %v6032
        %v6034 = vrot.slane %v6033, 2
        %v6035 = vadd.f32 %v6033, %v6034
        %v6036 = vrot.slane %v6035, 1
        %v6037 = vadd.f32 %v6035, %v6036
        %v6038 = vadd.f32 %v3116, %v6037
        %6039 = vst [vmem:[%s174] sm:$0x1] %v6000
        %6040 = vst [vmem:[%s174 + $0x1] sm:$0x1] %v6038
        %s6041 = sand.u32 %s76, 1
        %s6042 = scalar_lea.sflag [#allocation3], %s6041
        %s6043 = sand.u32 %s76, 1
        %s6044 = smul.addr %s6043, 256
        %s6045 = scalar_lea.vmem [#allocation2], %s6044
        %s6046 = sand.u32 %s102, 1
        %s6047 = scalar_lea.sflag [#allocation5], %s6046
        %s6048 = sand.u32 %s102, 1
        %s6049 = smul.addr %s6048, 2
        %s6050 = scalar_lea.vmem [#allocation4], %s6049
        // Predicated region
        $region29: #{tpu_custom_call.1} parent=27 // pred_check
          %p6051 = pneg %p86
        $region30: #{tpu_custom_call.1} parent=27 // pred_check_branch
          %6053 = sbr.rel (%p6051) target = $region32
        $region31: #{tpu_custom_call.1} parent=27 // pred_region
          %s6055 = ssub.s32 4096, 4096
          %6056 = vsyncadd %s6042, %s6055
          %s6057 = smul.addr %s21, 32
          %s6058 = smul.addr %s6057, 128
          %s6059 = scalar_lea.hbm %s2, %s6058
          %s6060 = sshll.u32 %s6045, 4
          %s6061 = int_to_ptr.vmem [resolvable:$true] %s6060
          %6066 = dma.vmem_to_hbm [thread:$0]  %s6061, 4096, %s6059, %s6042, 128, 128, 8
        $region32: #{tpu_custom_call.1} parent=27 // pred_fallthru
          _
        // Predicated region
        $region33: #{tpu_custom_call.1} parent=27 // pred_check
          %p6067 = pneg %p112
        $region34: #{tpu_custom_call.1} parent=27 // pred_check_branch
          %6069 = sbr.rel (%p6067) target = $region36
        $region35: #{tpu_custom_call.1} parent=27 // pred_region
          %s6071 = ssub.s32 32, 32
          %6072 = vsyncadd %s6047, %s6071
          %s6073 = smul.addr %s21, 32
          %s6074 = scalar_lea.hbm %s3, %s6073
          %s6076 = sshll.u32 %s6050, 4
          %s6077 = int_to_ptr.vmem [resolvable:$true] %s6076
          %6079 = dma.vmem_to_hbm [thread:$0]  %s6077, 32, %s6074, %s6047
        $region36: #{tpu_custom_call.1} parent=27 // pred_fallthru
          _
      $region28: #{tpu_custom_call.1} parent=5 // pred_fallthru
        _
      %p6080 = scmp.le.s32.totalorder 2, %s16
      // Predicated region
      $region37: #{tpu_custom_call.1} parent=5 // pred_check
        %p6081 = pneg %p6080
      $region38: #{tpu_custom_call.1} parent=5 // pred_check_branch
        %6083 = sbr.rel (%p6081) target = $region40
      $region39: #{tpu_custom_call.1} parent=5 // pred_region
        %s6084 = ssub.s32 %s16, 2
        // Predicated region
        $region41: #{tpu_custom_call.1} parent=39 // pred_check
          %p6085 = pneg %p92
        $region42: #{tpu_custom_call.1} parent=39 // pred_check_branch
          %6087 = sbr.rel (%p6085) target = $region44
        $region43: #{tpu_custom_call.1} parent=39 // pred_region
          %s6088 = sand.u32 %s77, 1
          %s6089 = scalar_lea.sflag [#allocation3], %s6088
          %s6090 = sand.u32 %s77, 1
          %s6091 = smul.addr %s6090, 256
          %s6092 = scalar_lea.vmem [#allocation2], %s6091
          %6093 = dma.done %s6089, 4096
        $region44: #{tpu_custom_call.1} parent=39 // pred_fallthru
          _
        // Predicated region
        $region45: #{tpu_custom_call.1} parent=39 // pred_check
          %p6094 = pneg %p118
        $region46: #{tpu_custom_call.1} parent=39 // pred_check_branch
          %6096 = sbr.rel (%p6094) target = $region48
        $region47: #{tpu_custom_call.1} parent=39 // pred_region
          %s6097 = sand.u32 %s103, 1
          %s6098 = scalar_lea.sflag [#allocation5], %s6097
          %s6099 = sand.u32 %s103, 1
          %s6100 = smul.addr %s6099, 2
          %s6101 = scalar_lea.vmem [#allocation4], %s6100
          %6102 = dma.done %s6098, 32
        $region48: #{tpu_custom_call.1} parent=39 // pred_fallthru
          _
      $region40: #{tpu_custom_call.1} parent=5 // pred_fallthru
        _
    $region6: #{tpu_custom_call.1} parent=1 // loop_footer
      %s20 = sadd.s32 1, %s16
    $region7: #{tpu_custom_call.1} parent=1 // loop_footer_branch
      %15 = sbr.rel target = $region3
    $region8: #{tpu_custom_call.1} parent=1 // loop_exit
      _
    %6103 = vsyncpa [#allocation3], 1
    %s6104 = scalar_lea.sflag [#allocation3], 1
    %6105 = vsyncpa %s6104, 1
    %6106 = vsyncpa [#allocation5], 1
    %s6107 = scalar_lea.sflag [#allocation5], 1
    %6108 = vsyncpa %s6107, 1

</llo_original>
